<compile_context>
chip_gen: v7x
topology: tpu7x:2x2x1
jax: 0.10.0
libtpu: 0.0.40
codegen_flags: <defaults>
</compile_context>

<pallas_src>
import functools

import jax
import jax.numpy as jnp
from jax.experimental import pallas as pl
from jax.experimental.pallas import tpu as pltpu


def _round_up(x, m):
    return ((x + m - 1) // m) * m


def _space_to_depth2(x):
    """(B, H, W, C) -> (B, H/2, W/2, 4C); channel order (a, b, c), c fastest."""
    B, H, W, C = x.shape
    xr = x.reshape(B, H // 2, 2, W // 2, 2, C)
    xr = jnp.transpose(xr, (0, 1, 3, 2, 4, 5))
    return xr.reshape(B, H // 2, W // 2, 4 * C)


def _col_mask(m, width, wo):
    """(m, 1) f32 mask: 1 where the flat row's column index < wo, else 0."""
    col = jnp.arange(m, dtype=jnp.int32) % width
    return (col < wo).astype(jnp.float32).reshape(m, 1)


# ----------------------------- Pallas kernels ------------------------------ #

def _conv_pad_kernel(x_ref, w_ref, b_ref, mask_ref, o_ref, *,
                     offsets, m, dest_off):
    """Conv as a sum of shifted-slab matmuls + bias + ReLU, emitting the
    zero-haloed padded-slab layout the next layer consumes.

    x_ref:    (rows_in, K)   bf16, flattened padded input image
    w_ref:    (ntaps, K, C)  bf16
    b_ref:    (1, C)         f32
    mask_ref: (m, 1)         f32, 1 on valid columns, 0 on garbage columns
    o_ref:    (rows_out, C)  bf16, zero halo + valid data at dest_off + p
    """
    acc = jnp.dot(x_ref[pl.ds(offsets[0], m), :], w_ref[0],
                  preferred_element_type=jnp.float32)
    for k in range(1, len(offsets)):
        acc = acc + jnp.dot(x_ref[pl.ds(offsets[k], m), :], w_ref[k],
                            preferred_element_type=jnp.float32)
    acc = jnp.maximum(acc + b_ref[...], 0.0) * mask_ref[...]
    o_ref[...] = jnp.zeros(o_ref.shape, o_ref.dtype)          # zero halo
    o_ref[pl.ds(dest_off, m), :] = acc.astype(o_ref.dtype)    # valid slab


def _tail_kernel(x_ref, mask_ref, c3w, c3b, r1w1, r1b1, r1w2, r1b2,
                 r2w1, r2b1, r2w2, r2b2, pw, pb, o_ref, buf_a, buf_b,
                 *, offsets, m, dest_off):
    """Fused tail: 3x3 conv + ReLU -> ResBlock -> ResBlock -> 1x1 projection.

    buf_a / buf_b are small bf16 VMEM padded-slab scratches; no intermediate
    ever leaves VMEM.  Accumulation and residual adds stay in f32.
    """
    mask = mask_ref[...]

    def conv3x3(src_ref, wtaps_ref, bias_ref):
        acc = jnp.dot(src_ref[pl.ds(offsets[0], m), :], wtaps_ref[0],
                      preferred_element_type=jnp.float32)
        for k in range(1, len(offsets)):
            acc = acc + jnp.dot(src_ref[pl.ds(offsets[k], m), :],
                                wtaps_ref[k],
                                preferred_element_type=jnp.float32)
        return acc + bias_ref[...]

    def emit_padded(dst_ref, slab_f32):
        dst_ref[...] = jnp.zeros(dst_ref.shape, dst_ref.dtype)
        dst_ref[pl.ds(dest_off, m), :] = (slab_f32 * mask).astype(dst_ref.dtype)

    # conv3: 3x3, 2*n_hid -> 2*n_hid, ReLU
    h = jnp.maximum(conv3x3(x_ref, c3w, c3b), 0.0)
    emit_padded(buf_a, h)

    # ResBlock 1: 3x3 conv + ReLU + 1x1 conv + residual + ReLU
    t = jnp.maximum(conv3x3(buf_a, r1w1, r1b1), 0.0).astype(jnp.bfloat16)
    y = jnp.dot(t, r1w2[0], preferred_element_type=jnp.float32) + r1b2[...]
    h = jnp.maximum(y + h, 0.0)
    emit_padded(buf_b, h)

    # ResBlock 2
    t = jnp.maximum(conv3x3(buf_b, r2w1, r2b1), 0.0).astype(jnp.bfloat16)
    y = jnp.dot(t, r2w2[0], preferred_element_type=jnp.float32) + r2b2[...]
    h = jnp.maximum(y + h, 0.0)

    # 1x1 projection to embedding_dim
    z = jnp.dot(h.astype(jnp.bfloat16), pw[0],
                preferred_element_type=jnp.float32) + pb[...]
    o_ref[...] = z.astype(o_ref.dtype)


# ------------------------------ call wrappers ------------------------------ #

def _conv_pad_call(xf, w_taps, bias, mask, *, offsets, m, dest_off, out_rows):
    B, rows, kdim = xf.shape
    ntap, _, cout = w_taps.shape
    kern = functools.partial(_conv_pad_kernel, offsets=offsets, m=m,
                             dest_off=dest_off)
    return pl.pallas_call(
        kern,
        out_shape=jax.ShapeDtypeStruct((B, out_rows, cout), jnp.bfloat16),
        grid=(B,),
        in_specs=[pl.BlockSpec((None, rows, kdim), lambda b: (b, 0, 0)),
                  pl.BlockSpec((ntap, kdim, cout), lambda b: (0, 0, 0)),
                  pl.BlockSpec((1, cout), lambda b: (0, 0)),
                  pl.BlockSpec((m, 1), lambda b: (0, 0))],
        out_specs=pl.BlockSpec((None, out_rows, cout), lambda b: (b, 0, 0)),
        compiler_params=pltpu.CompilerParams(
            dimension_semantics=("parallel",)),
    )(xf, w_taps, bias, mask)


def _tail_call(x2f, mask, weights, *, offsets, m, dest_off, scratch_rows):
    B, rows, c2 = x2f.shape
    embed = weights[-2].shape[-1]              # pw: (1, 2*n_hid, embedding_dim)
    kern = functools.partial(_tail_kernel, offsets=offsets, m=m,
                             dest_off=dest_off)
    in_specs = [pl.BlockSpec((None, rows, c2), lambda b: (b, 0, 0)),
                pl.BlockSpec((m, 1), lambda b: (0, 0))]
    for w in weights:
        if w.ndim == 3:
            in_specs.append(pl.BlockSpec(w.shape, lambda b: (0, 0, 0)))
        else:
            in_specs.append(pl.BlockSpec(w.shape, lambda b: (0, 0)))
    return pl.pallas_call(
        kern,
        out_shape=jax.ShapeDtypeStruct((B, m, embed), jnp.float32),
        grid=(B,),
        in_specs=in_specs,
        out_specs=pl.BlockSpec((None, m, embed), lambda b: (b, 0, 0)),
        scratch_shapes=[pltpu.VMEM((scratch_rows, c2), jnp.bfloat16),
                        pltpu.VMEM((scratch_rows, c2), jnp.bfloat16)],
        compiler_params=pltpu.CompilerParams(
            dimension_semantics=("parallel",)),
    )(x2f, mask, *weights)


# ------------------------------ forward pass ------------------------------- #

def encoder_forward(x_nchw, pp):
    B, _, H, W = x_nchw.shape
    assert H % 4 == 0 and W % 4 == 0, (H, W)
    Ho1, Wo1 = H // 2, W // 2
    Ho2, Wo2 = H // 4, W // 4
    Ws1 = Wo1 + 4          # conv1 compute width == conv1 padded-slab width
    Wp3 = Wo2 + 2          # conv2 / tail compute width == padded-slab width

    x = jnp.transpose(x_nchw, (0, 2, 3, 1))                    # NCHW -> NHWC

    # conv1: 4x4 stride-2 pad-1 == 2x2 stride-1 conv on space-to-depth input.
    xp = jnp.pad(x, ((0, 0), (1, 3), (1, 7), (0, 0))).astype(jnp.bfloat16)
    xs = _space_to_depth2(xp)                      # (B, Ho1+2, Ws1, 4*Cin)
    xf = xs.reshape(B, (Ho1 + 2) * Ws1, xs.shape[-1])
    off1 = tuple(i * Ws1 + j for i in range(2) for j in range(2))
    mask1 = _col_mask(Ho1 * Ws1, Ws1, Wo1)
    h1 = _conv_pad_call(xf, pp["c1w"], pp["c1b"], mask1,
                        offsets=off1, m=Ho1 * Ws1, dest_off=Ws1 + 1,
                        out_rows=(Ho1 + 4) * Ws1)

    # conv2: zero halo is already baked into h1's layout, only the
    # space-to-depth transpose happens in XLA here (no pad / slice copies).
    h1s = _space_to_depth2(h1.reshape(B, Ho1 + 4, Ws1, -1))    # (B, Ho2+2, Wp3, 4*n_hid)
    h1f = h1s.reshape(B, (Ho2 + 2) * Wp3, h1s.shape[-1])
    off2 = tuple(i * Wp3 + j for i in range(2) for j in range(2))
    mask2 = _col_mask(Ho2 * Wp3, Wp3, Wo2)
    rows2 = _round_up((Ho2 + 2) * Wp3 + 2, 8)
    h2 = _conv_pad_call(h1f, pp["c2w"], pp["c2b"], mask2,
                        offsets=off2, m=Ho2 * Wp3, dest_off=Wp3 + 1,
                        out_rows=rows2)

    # Fused tail: conv3 -> ResBlock -> ResBlock -> 1x1 proj (one pallas_call).
    off3 = tuple(i * Wp3 + j for i in range(3) for j in range(3))
    weights = [pp["c3w"], pp["c3b"],
               pp["res1"]["w1"], pp["res1"]["b1"],
               pp["res1"]["w2"], pp["res1"]["b2"],
               pp["res2"]["w1"], pp["res2"]["b1"],
               pp["res2"]["w2"], pp["res2"]["b2"],
               pp["pw"], pp["pb"]]
    z = _tail_call(h2, mask2, weights, offsets=off3, m=Ho2 * Wp3,
                   dest_off=Wp3 + 1, scratch_rows=rows2)

    z = z.reshape(B, Ho2, Wp3, -1)[:, :, :Wo2, :]   # drop garbage columns
    return jnp.transpose(z, (0, 3, 1, 2))           # NHWC -> NCHW


# ------------------------- one-time weight repacking ------------------------ #

def _prep_taps(w, b):
    """PyTorch (Cout, Cin, kh, kw) -> taps (kh*kw, Cin, Cout) bf16 + (1, Cout) f32."""
    cout, cin, kh, kw = w.shape
    wt = jnp.transpose(w, (2, 3, 1, 0)).reshape(kh * kw, cin, cout)
    return wt.astype(jnp.bfloat16), b.reshape(1, cout).astype(jnp.float32)


def _prep_taps_s2(w, b):
    """4x4 stride-2 weight -> 2x2 taps over space-to-depth input channels."""
    cout, cin, kh, kw = w.shape
    assert kh == 4 and kw == 4
    wt = jnp.transpose(w, (2, 3, 1, 0))            # (4, 4, Cin, Cout) = (kh, kw, c, o)
    wt = wt.reshape(2, 2, 2, 2, cin, cout)         # (i, a, j, b, c, o)
    wt = jnp.transpose(wt, (0, 2, 1, 3, 4, 5))     # (i, j, a, b, c, o)
    wt = wt.reshape(4, 4 * cin, cout)              # matches s2d channel order
    return wt.astype(jnp.bfloat16), b.reshape(1, cout).astype(jnp.float32)


def prepare_params(params):
    """Repack weights once, OUTSIDE the jitted forward pass."""
    pp = {"res1": {}, "res2": {}}
    pp["c1w"], pp["c1b"] = _prep_taps_s2(params["c1w"], params["c1b"])
    pp["c2w"], pp["c2b"] = _prep_taps_s2(params["c2w"], params["c2b"])
    pp["c3w"], pp["c3b"] = _prep_taps(params["c3w"], params["c3b"])
    for name in ("res1", "res2"):
        pp[name]["w1"], pp[name]["b1"] = _prep_taps(params[name]["w1"],
                                                    params[name]["b1"])
        pp[name]["w2"], pp[name]["b2"] = _prep_taps(params[name]["w2"],
                                                    params[name]["b2"])
    pp["pw"], pp["pb"] = _prep_taps(params["pw"], params["pb"])
    return pp


# --------------------------- params & reference ---------------------------- #

def _init_conv(key, cout, cin, kh, kw):
    kw_, kb_ = jax.random.split(key)
    fan_in = cin * kh * kw
    bound = 1.0 / (fan_in ** 0.5)
    w = jax.random.uniform(kw_, (cout, cin, kh, kw), jnp.float32, -bound, bound)
    b = jax.random.uniform(kb_, (cout,), jnp.float32, -bound, bound)
    return w, b


def make_params(key, input_channels, embedding_dim, n_hid):
    ks = jax.random.split(key, 8)
    p = {}
    p["c1w"], p["c1b"] = _init_conv(ks[0], n_hid, input_channels, 4, 4)
    p["c2w"], p["c2b"] = _init_conv(ks[1], 2 * n_hid, n_hid, 4, 4)
    p["c3w"], p["c3b"] = _init_conv(ks[2], 2 * n_hid, 2 * n_hid, 3, 3)
    rch = 2 * n_hid // 4
    for name, k1, k2 in (("res1", ks[3], ks[4]), ("res2", ks[5], ks[6])):
        w1, b1 = _init_conv(k1, rch, 2 * n_hid, 3, 3)
        w2, b2 = _init_conv(k2, 2 * n_hid, rch, 1, 1)
        p[name] = {"w1": w1, "b1": b1, "w2": w2, "b2": b2}
    p["pw"], p["pb"] = _init_conv(ks[7], embedding_dim, 2 * n_hid, 1, 1)
    return p


def _conv_ref(x, w, b, stride, pad):
    y = jax.lax.conv_general_dilated(
        x, w, window_strides=(stride, stride),
        padding=[(pad, pad), (pad, pad)],
        dimension_numbers=("NCHW", "OIHW", "NCHW"))
    return y + b.reshape(1, -1, 1, 1)


def encoder_ref(x, params):
    h = jax.nn.relu(_conv_ref(x, params["c1w"], params["c1b"], 2, 1))
    h = jax.nn.relu(_conv_ref(h, params["c2w"], params["c2b"], 2, 1))
    h = jax.nn.relu(_conv_ref(h, params["c3w"], params["c3b"], 1, 1))
    for rp in (params["res1"], params["res2"]):
        t = jax.nn.relu(_conv_ref(h, rp["w1"], rp["b1"], 1, 1))
        t = _conv_ref(t, rp["w2"], rp["b2"], 1, 0)
        h = jax.nn.relu(t + h)
    return _conv_ref(h, params["pw"], params["pb"], 1, 0)


# ---------------------------------- main ----------------------------------- #

if __name__ == "__main__":
    B, C_IN, H, W = 2, 4, 16, 16
    EMBED, N_HID = 4, 16

    x = jax.random.normal(jax.random.PRNGKey(0), (B, C_IN, H, W), jnp.float32)
    params = make_params(jax.random.PRNGKey(1), C_IN, EMBED, N_HID)

    # One-time weight repack (outside the jitted forward).
    pp = prepare_params(params)

    fwd = jax.jit(encoder_forward)
    z = jax.block_until_ready(fwd(x, pp))

    assert z.shape == (B, EMBED, H // 4, W // 4), z.shape

    z_ref = jax.block_until_ready(encoder_ref(x, params))
    max_err = float(jnp.max(jnp.abs(z - z_ref)))
    assert jnp.allclose(z, z_ref, atol=5e-2, rtol=5e-2), max_err

    print("KERNEL_OK")
</pallas_src>

<mosaic_0001>
module attributes {stable_mosaic.version = 11 : i64} {
  func.func @_conv_pad_kernel(%arg0: i32, %arg1: memref<1x120x16xbf16, #tpu.memory_space<vmem>>, %arg2: memref<4x16x16xbf16, #tpu.memory_space<vmem>>, %arg3: memref<1x16xf32, #tpu.memory_space<vmem>>, %arg4: memref<96x1xf32, #tpu.memory_space<vmem>>, %arg5: memref<1x144x16xbf16, #tpu.memory_space<vmem>>) attributes {dimension_semantics = [#tpu.dimension_semantics<parallel>], iteration_bounds = array<i64: 2>, scalar_prefetch = 0 : i64, scratch_operands = 0 : i64, tpu.core_type = #tpu.core_type<tc>, window_params = [{transform_indices = @transform_0, window_bounds = array<i64: 1, 120, 16>}, {pipeline_mode = #tpu.pipeline_mode<synchronous>, transform_indices = @transform_1, window_bounds = array<i64: 4, 16, 16>}, {pipeline_mode = #tpu.pipeline_mode<synchronous>, transform_indices = @transform_2, window_bounds = array<i64: 1, 16>}, {pipeline_mode = #tpu.pipeline_mode<synchronous>, transform_indices = @transform_3, window_bounds = array<i64: 96, 1>}, {transform_indices = @transform_4, window_bounds = array<i64: 1, 144, 16>}]} {
    %c0 = arith.constant 0 : index
    %c0_0 = arith.constant 0 : index
    %c0_1 = arith.constant 0 : index
    %0 = vector.load %arg1[%c0, %c0_0, %c0_1] : memref<1x120x16xbf16, #tpu.memory_space<vmem>>, vector<1x96x16xbf16>
    %1 = vector.shape_cast %0 : vector<1x96x16xbf16> to vector<96x16xbf16>
    %c0_2 = arith.constant 0 : index
    %c0_3 = arith.constant 0 : index
    %c0_4 = arith.constant 0 : index
    %2 = vector.load %arg2[%c0_2, %c0_3, %c0_4] : memref<4x16x16xbf16, #tpu.memory_space<vmem>>, vector<1x16x16xbf16>
    %3 = vector.shape_cast %2 : vector<1x16x16xbf16> to vector<16x16xbf16>
    %cst = arith.constant dense<0.000000e+00> : vector<96x16xf32>
    %4 = tpu.matmul %1, %3, %cst {dimension_numbers = #tpu.dot_dimension_numbers<[1], [0], [0], [1], [0, 0, 1, 1], [], []>} : vector<96x16xbf16>, vector<16x16xbf16>, vector<96x16xf32> -> vector<96x16xf32>
    %c0_5 = arith.constant 0 : index
    %c1 = arith.constant 1 : index
    %c0_6 = arith.constant 0 : index
    %5 = vector.load %arg1[%c0_5, %c1, %c0_6] : memref<1x120x16xbf16, #tpu.memory_space<vmem>>, vector<1x96x16xbf16>
    %6 = vector.shape_cast %5 : vector<1x96x16xbf16> to vector<96x16xbf16>
    %c1_7 = arith.constant 1 : index
    %c0_8 = arith.constant 0 : index
    %c0_9 = arith.constant 0 : index
    %7 = vector.load %arg2[%c1_7, %c0_8, %c0_9] : memref<4x16x16xbf16, #tpu.memory_space<vmem>>, vector<1x16x16xbf16>
    %8 = vector.shape_cast %7 : vector<1x16x16xbf16> to vector<16x16xbf16>
    %cst_10 = arith.constant dense<0.000000e+00> : vector<96x16xf32>
    %9 = tpu.matmul %6, %8, %cst_10 {dimension_numbers = #tpu.dot_dimension_numbers<[1], [0], [0], [1], [0, 0, 1, 1], [], []>} : vector<96x16xbf16>, vector<16x16xbf16>, vector<96x16xf32> -> vector<96x16xf32>
    %10 = arith.addf %4, %9 : vector<96x16xf32>
    %c0_11 = arith.constant 0 : index
    %c12 = arith.constant 12 : index
    %c0_12 = arith.constant 0 : index
    %11 = vector.load %arg1[%c0_11, %c12, %c0_12] : memref<1x120x16xbf16, #tpu.memory_space<vmem>>, vector<1x96x16xbf16>
    %12 = vector.shape_cast %11 : vector<1x96x16xbf16> to vector<96x16xbf16>
    %c2 = arith.constant 2 : index
    %c0_13 = arith.constant 0 : index
    %c0_14 = arith.constant 0 : index
    %13 = vector.load %arg2[%c2, %c0_13, %c0_14] : memref<4x16x16xbf16, #tpu.memory_space<vmem>>, vector<1x16x16xbf16>
    %14 = vector.shape_cast %13 : vector<1x16x16xbf16> to vector<16x16xbf16>
    %cst_15 = arith.constant dense<0.000000e+00> : vector<96x16xf32>
    %15 = tpu.matmul %12, %14, %cst_15 {dimension_numbers = #tpu.dot_dimension_numbers<[1], [0], [0], [1], [0, 0, 1, 1], [], []>} : vector<96x16xbf16>, vector<16x16xbf16>, vector<96x16xf32> -> vector<96x16xf32>
    %16 = arith.addf %10, %15 : vector<96x16xf32>
    %c0_16 = arith.constant 0 : index
    %c13 = arith.constant 13 : index
    %c0_17 = arith.constant 0 : index
    %17 = vector.load %arg1[%c0_16, %c13, %c0_17] : memref<1x120x16xbf16, #tpu.memory_space<vmem>>, vector<1x96x16xbf16>
    %18 = vector.shape_cast %17 : vector<1x96x16xbf16> to vector<96x16xbf16>
    %c3 = arith.constant 3 : index
    %c0_18 = arith.constant 0 : index
    %c0_19 = arith.constant 0 : index
    %19 = vector.load %arg2[%c3, %c0_18, %c0_19] : memref<4x16x16xbf16, #tpu.memory_space<vmem>>, vector<1x16x16xbf16>
    %20 = vector.shape_cast %19 : vector<1x16x16xbf16> to vector<16x16xbf16>
    %cst_20 = arith.constant dense<0.000000e+00> : vector<96x16xf32>
    %21 = tpu.matmul %18, %20, %cst_20 {dimension_numbers = #tpu.dot_dimension_numbers<[1], [0], [0], [1], [0, 0, 1, 1], [], []>} : vector<96x16xbf16>, vector<16x16xbf16>, vector<96x16xf32> -> vector<96x16xf32>
    %22 = arith.addf %16, %21 : vector<96x16xf32>
    %c0_21 = arith.constant 0 : index
    %c0_22 = arith.constant 0 : index
    %23 = vector.load %arg3[%c0_21, %c0_22] : memref<1x16xf32, #tpu.memory_space<vmem>>, vector<1x16xf32>
    %24 = vector.broadcast %23 : vector<1x16xf32> to vector<96x16xf32>
    %25 = arith.addf %22, %24 : vector<96x16xf32>
    %cst_23 = arith.constant 0.000000e+00 : f32
    %26 = vector.broadcast %cst_23 : f32 to vector<96x16xf32>
    %27 = arith.maximumf %25, %26 : vector<96x16xf32>
    %c0_24 = arith.constant 0 : index
    %c0_25 = arith.constant 0 : index
    %28 = vector.load %arg4[%c0_24, %c0_25] : memref<96x1xf32, #tpu.memory_space<vmem>>, vector<96x1xf32>
    %29 = vector.broadcast %28 : vector<96x1xf32> to vector<96x16xf32>
    %30 = arith.mulf %27, %29 : vector<96x16xf32>
    %cst_26 = arith.constant 0.000000e+00 : bf16
    %31 = vector.broadcast %cst_26 : bf16 to vector<144x16xbf16>
    %c0_27 = arith.constant 0 : index
    %c0_28 = arith.constant 0 : index
    %c0_29 = arith.constant 0 : index
    %32 = vector.load %arg5[%c0_27, %c0_28, %c0_29] : memref<1x144x16xbf16, #tpu.memory_space<vmem>>, vector<1x144x16xbf16>
    %33 = vector.shape_cast %32 : vector<1x144x16xbf16> to vector<144x16xbf16>
    %34 = vector.shape_cast %31 : vector<144x16xbf16> to vector<1x144x16xbf16>
    tpu.vector_store %arg5[%c0_27, %c0_28, %c0_29], %34 {strides = array<i32>} : memref<1x144x16xbf16, #tpu.memory_space<vmem>>, vector<1x144x16xbf16>,
    %35 = arith.truncf %30 : vector<96x16xf32> to vector<96x16xbf16>
    %c0_30 = arith.constant 0 : index
    %c13_31 = arith.constant 13 : index
    %c0_32 = arith.constant 0 : index
    %36 = vector.load %arg5[%c0_30, %c13_31, %c0_32] : memref<1x144x16xbf16, #tpu.memory_space<vmem>>, vector<1x96x16xbf16>
    %37 = vector.shape_cast %36 : vector<1x96x16xbf16> to vector<96x16xbf16>
    %38 = vector.shape_cast %35 : vector<96x16xbf16> to vector<1x96x16xbf16>
    tpu.vector_store %arg5[%c0_30, %c13_31, %c0_32], %38 {strides = array<i32>} : memref<1x144x16xbf16, #tpu.memory_space<vmem>>, vector<1x96x16xbf16>,
    return
  }
  func.func @transform_0(%arg0: i32) -> (i32, i32, i32) {
    %c0_i32 = arith.constant 0 : i32
    %c0_i32_0 = arith.constant 0 : i32
    %c0_i32_1 = arith.constant 0 : i32
    return %arg0, %c0_i32, %c0_i32_0 : i32, i32, i32
  }
  func.func @transform_1(%arg0: i32) -> (i32, i32, i32) {
    %c0_i32 = arith.constant 0 : i32
    %c0_i32_0 = arith.constant 0 : i32
    %c0_i32_1 = arith.constant 0 : i32
    %c0_i32_2 = arith.constant 0 : i32
    return %c0_i32, %c0_i32_0, %c0_i32_1 : i32, i32, i32
  }
  func.func @transform_2(%arg0: i32) -> (i32, i32) {
    %c0_i32 = arith.constant 0 : i32
    %c0_i32_0 = arith.constant 0 : i32
    %c0_i32_1 = arith.constant 0 : i32
    return %c0_i32, %c0_i32_0 : i32, i32
  }
  func.func @transform_3(%arg0: i32) -> (i32, i32) {
    %c0_i32 = arith.constant 0 : i32
    %c0_i32_0 = arith.constant 0 : i32
    %c0_i32_1 = arith.constant 0 : i32
    return %c0_i32, %c0_i32_0 : i32, i32
  }
  func.func @transform_4(%arg0: i32) -> (i32, i32, i32) {
    %c0_i32 = arith.constant 0 : i32
    %c0_i32_0 = arith.constant 0 : i32
    %c0_i32_1 = arith.constant 0 : i32
    return %arg0, %c0_i32, %c0_i32_0 : i32, i32, i32
  }
}

module attributes {stable_mosaic.version = 11 : i64} {
  func.func @_conv_pad_kernel(%arg0: i32, %arg1: memref<1x36x64xbf16, #tpu.memory_space<vmem>>, %arg2: memref<4x64x32xbf16, #tpu.memory_space<vmem>>, %arg3: memref<1x32xf32, #tpu.memory_space<vmem>>, %arg4: memref<24x1xf32, #tpu.memory_space<vmem>>, %arg5: memref<1x40x32xbf16, #tpu.memory_space<vmem>>) attributes {dimension_semantics = [#tpu.dimension_semantics<parallel>], iteration_bounds = array<i64: 2>, scalar_prefetch = 0 : i64, scratch_operands = 0 : i64, tpu.core_type = #tpu.core_type<tc>, window_params = [{transform_indices = @transform_0, window_bounds = array<i64: 1, 36, 64>}, {pipeline_mode = #tpu.pipeline_mode<synchronous>, transform_indices = @transform_1, window_bounds = array<i64: 4, 64, 32>}, {pipeline_mode = #tpu.pipeline_mode<synchronous>, transform_indices = @transform_2, window_bounds = array<i64: 1, 32>}, {pipeline_mode = #tpu.pipeline_mode<synchronous>, transform_indices = @transform_3, window_bounds = array<i64: 24, 1>}, {transform_indices = @transform_4, window_bounds = array<i64: 1, 40, 32>}]} {
    %c0 = arith.constant 0 : index
    %c0_0 = arith.constant 0 : index
    %c0_1 = arith.constant 0 : index
    %0 = vector.load %arg1[%c0, %c0_0, %c0_1] : memref<1x36x64xbf16, #tpu.memory_space<vmem>>, vector<1x24x64xbf16>
    %1 = vector.shape_cast %0 : vector<1x24x64xbf16> to vector<24x64xbf16>
    %c0_2 = arith.constant 0 : index
    %c0_3 = arith.constant 0 : index
    %c0_4 = arith.constant 0 : index
    %2 = vector.load %arg2[%c0_2, %c0_3, %c0_4] : memref<4x64x32xbf16, #tpu.memory_space<vmem>>, vector<1x64x32xbf16>
    %3 = vector.shape_cast %2 : vector<1x64x32xbf16> to vector<64x32xbf16>
    %cst = arith.constant dense<0.000000e+00> : vector<24x32xf32>
    %4 = tpu.matmul %1, %3, %cst {dimension_numbers = #tpu.dot_dimension_numbers<[1], [0], [0], [1], [0, 0, 1, 1], [], []>} : vector<24x64xbf16>, vector<64x32xbf16>, vector<24x32xf32> -> vector<24x32xf32>
    %c0_5 = arith.constant 0 : index
    %c1 = arith.constant 1 : index
    %c0_6 = arith.constant 0 : index
    %5 = vector.load %arg1[%c0_5, %c1, %c0_6] : memref<1x36x64xbf16, #tpu.memory_space<vmem>>, vector<1x24x64xbf16>
    %6 = vector.shape_cast %5 : vector<1x24x64xbf16> to vector<24x64xbf16>
    %c1_7 = arith.constant 1 : index
    %c0_8 = arith.constant 0 : index
    %c0_9 = arith.constant 0 : index
    %7 = vector.load %arg2[%c1_7, %c0_8, %c0_9] : memref<4x64x32xbf16, #tpu.memory_space<vmem>>, vector<1x64x32xbf16>
    %8 = vector.shape_cast %7 : vector<1x64x32xbf16> to vector<64x32xbf16>
    %cst_10 = arith.constant dense<0.000000e+00> : vector<24x32xf32>
    %9 = tpu.matmul %6, %8, %cst_10 {dimension_numbers = #tpu.dot_dimension_numbers<[1], [0], [0], [1], [0, 0, 1, 1], [], []>} : vector<24x64xbf16>, vector<64x32xbf16>, vector<24x32xf32> -> vector<24x32xf32>
    %10 = arith.addf %4, %9 : vector<24x32xf32>
    %c0_11 = arith.constant 0 : index
    %c6 = arith.constant 6 : index
    %c0_12 = arith.constant 0 : index
    %11 = vector.load %arg1[%c0_11, %c6, %c0_12] : memref<1x36x64xbf16, #tpu.memory_space<vmem>>, vector<1x24x64xbf16>
    %12 = vector.shape_cast %11 : vector<1x24x64xbf16> to vector<24x64xbf16>
    %c2 = arith.constant 2 : index
    %c0_13 = arith.constant 0 : index
    %c0_14 = arith.constant 0 : index
    %13 = vector.load %arg2[%c2, %c0_13, %c0_14] : memref<4x64x32xbf16, #tpu.memory_space<vmem>>, vector<1x64x32xbf16>
    %14 = vector.shape_cast %13 : vector<1x64x32xbf16> to vector<64x32xbf16>
    %cst_15 = arith.constant dense<0.000000e+00> : vector<24x32xf32>
    %15 = tpu.matmul %12, %14, %cst_15 {dimension_numbers = #tpu.dot_dimension_numbers<[1], [0], [0], [1], [0, 0, 1, 1], [], []>} : vector<24x64xbf16>, vector<64x32xbf16>, vector<24x32xf32> -> vector<24x32xf32>
    %16 = arith.addf %10, %15 : vector<24x32xf32>
    %c0_16 = arith.constant 0 : index
    %c7 = arith.constant 7 : index
    %c0_17 = arith.constant 0 : index
    %17 = vector.load %arg1[%c0_16, %c7, %c0_17] : memref<1x36x64xbf16, #tpu.memory_space<vmem>>, vector<1x24x64xbf16>
    %18 = vector.shape_cast %17 : vector<1x24x64xbf16> to vector<24x64xbf16>
    %c3 = arith.constant 3 : index
    %c0_18 = arith.constant 0 : index
    %c0_19 = arith.constant 0 : index
    %19 = vector.load %arg2[%c3, %c0_18, %c0_19] : memref<4x64x32xbf16, #tpu.memory_space<vmem>>, vector<1x64x32xbf16>
    %20 = vector.shape_cast %19 : vector<1x64x32xbf16> to vector<64x32xbf16>
    %cst_20 = arith.constant dense<0.000000e+00> : vector<24x32xf32>
    %21 = tpu.matmul %18, %20, %cst_20 {dimension_numbers = #tpu.dot_dimension_numbers<[1], [0], [0], [1], [0, 0, 1, 1], [], []>} : vector<24x64xbf16>, vector<64x32xbf16>, vector<24x32xf32> -> vector<24x32xf32>
    %22 = arith.addf %16, %21 : vector<24x32xf32>
    %c0_21 = arith.constant 0 : index
    %c0_22 = arith.constant 0 : index
    %23 = vector.load %arg3[%c0_21, %c0_22] : memref<1x32xf32, #tpu.memory_space<vmem>>, vector<1x32xf32>
    %24 = vector.broadcast %23 : vector<1x32xf32> to vector<24x32xf32>
    %25 = arith.addf %22, %24 : vector<24x32xf32>
    %cst_23 = arith.constant 0.000000e+00 : f32
    %26 = vector.broadcast %cst_23 : f32 to vector<24x32xf32>
    %27 = arith.maximumf %25, %26 : vector<24x32xf32>
    %c0_24 = arith.constant 0 : index
    %c0_25 = arith.constant 0 : index
    %28 = vector.load %arg4[%c0_24, %c0_25] : memref<24x1xf32, #tpu.memory_space<vmem>>, vector<24x1xf32>
    %29 = vector.broadcast %28 : vector<24x1xf32> to vector<24x32xf32>
    %30 = arith.mulf %27, %29 : vector<24x32xf32>
    %cst_26 = arith.constant 0.000000e+00 : bf16
    %31 = vector.broadcast %cst_26 : bf16 to vector<40x32xbf16>
    %c0_27 = arith.constant 0 : index
    %c0_28 = arith.constant 0 : index
    %c0_29 = arith.constant 0 : index
    %32 = vector.load %arg5[%c0_27, %c0_28, %c0_29] : memref<1x40x32xbf16, #tpu.memory_space<vmem>>, vector<1x40x32xbf16>
    %33 = vector.shape_cast %32 : vector<1x40x32xbf16> to vector<40x32xbf16>
    %34 = vector.shape_cast %31 : vector<40x32xbf16> to vector<1x40x32xbf16>
    tpu.vector_store %arg5[%c0_27, %c0_28, %c0_29], %34 {strides = array<i32>} : memref<1x40x32xbf16, #tpu.memory_space<vmem>>, vector<1x40x32xbf16>,
    %35 = arith.truncf %30 : vector<24x32xf32> to vector<24x32xbf16>
    %c0_30 = arith.constant 0 : index
    %c7_31 = arith.constant 7 : index
    %c0_32 = arith.constant 0 : index
    %36 = vector.load %arg5[%c0_30, %c7_31, %c0_32] : memref<1x40x32xbf16, #tpu.memory_space<vmem>>, vector<1x24x32xbf16>
    %37 = vector.shape_cast %36 : vector<1x24x32xbf16> to vector<24x32xbf16>
    %38 = vector.shape_cast %35 : vector<24x32xbf16> to vector<1x24x32xbf16>
    tpu.vector_store %arg5[%c0_30, %c7_31, %c0_32], %38 {strides = array<i32>} : memref<1x40x32xbf16, #tpu.memory_space<vmem>>, vector<1x24x32xbf16>,
    return
  }
  func.func @transform_0(%arg0: i32) -> (i32, i32, i32) {
    %c0_i32 = arith.constant 0 : i32
    %c0_i32_0 = arith.constant 0 : i32
    %c0_i32_1 = arith.constant 0 : i32
    return %arg0, %c0_i32, %c0_i32_0 : i32, i32, i32
  }
  func.func @transform_1(%arg0: i32) -> (i32, i32, i32) {
    %c0_i32 = arith.constant 0 : i32
    %c0_i32_0 = arith.constant 0 : i32
    %c0_i32_1 = arith.constant 0 : i32
    %c0_i32_2 = arith.constant 0 : i32
    return %c0_i32, %c0_i32_0, %c0_i32_1 : i32, i32, i32
  }
  func.func @transform_2(%arg0: i32) -> (i32, i32) {
    %c0_i32 = arith.constant 0 : i32
    %c0_i32_0 = arith.constant 0 : i32
    %c0_i32_1 = arith.constant 0 : i32
    return %c0_i32, %c0_i32_0 : i32, i32
  }
  func.func @transform_3(%arg0: i32) -> (i32, i32) {
    %c0_i32 = arith.constant 0 : i32
    %c0_i32_0 = arith.constant 0 : i32
    %c0_i32_1 = arith.constant 0 : i32
    return %c0_i32, %c0_i32_0 : i32, i32
  }
  func.func @transform_4(%arg0: i32) -> (i32, i32, i32) {
    %c0_i32 = arith.constant 0 : i32
    %c0_i32_0 = arith.constant 0 : i32
    %c0_i32_1 = arith.constant 0 : i32
    return %arg0, %c0_i32, %c0_i32_0 : i32, i32, i32
  }
}

module attributes {stable_mosaic.version = 11 : i64} {
  func.func @_tail_kernel(%arg0: i32, %arg1: memref<1x40x32xbf16, #tpu.memory_space<vmem>>, %arg2: memref<24x1xf32, #tpu.memory_space<vmem>>, %arg3: memref<9x32x32xbf16, #tpu.memory_space<vmem>>, %arg4: memref<1x32xf32, #tpu.memory_space<vmem>>, %arg5: memref<9x32x8xbf16, #tpu.memory_space<vmem>>, %arg6: memref<1x8xf32, #tpu.memory_space<vmem>>, %arg7: memref<1x8x32xbf16, #tpu.memory_space<vmem>>, %arg8: memref<1x32xf32, #tpu.memory_space<vmem>>, %arg9: memref<9x32x8xbf16, #tpu.memory_space<vmem>>, %arg10: memref<1x8xf32, #tpu.memory_space<vmem>>, %arg11: memref<1x8x32xbf16, #tpu.memory_space<vmem>>, %arg12: memref<1x32xf32, #tpu.memory_space<vmem>>, %arg13: memref<1x32x4xbf16, #tpu.memory_space<vmem>>, %arg14: memref<1x4xf32, #tpu.memory_space<vmem>>, %arg15: memref<1x24x4xf32, #tpu.memory_space<vmem>>, %arg16: memref<40x32xbf16, #tpu.memory_space<vmem>>, %arg17: memref<40x32xbf16, #tpu.memory_space<vmem>>) attributes {dimension_semantics = [#tpu.dimension_semantics<parallel>], iteration_bounds = array<i64: 2>, scalar_prefetch = 0 : i64, scratch_operands = 2 : i64, tpu.core_type = #tpu.core_type<tc>, window_params = [{transform_indices = @transform_0, window_bounds = array<i64: 1, 40, 32>}, {pipeline_mode = #tpu.pipeline_mode<synchronous>, transform_indices = @transform_1, window_bounds = array<i64: 24, 1>}, {pipeline_mode = #tpu.pipeline_mode<synchronous>, transform_indices = @transform_2, window_bounds = array<i64: 9, 32, 32>}, {pipeline_mode = #tpu.pipeline_mode<synchronous>, transform_indices = @transform_3, window_bounds = array<i64: 1, 32>}, {pipeline_mode = #tpu.pipeline_mode<synchronous>, transform_indices = @transform_4, window_bounds = array<i64: 9, 32, 8>}, {pipeline_mode = #tpu.pipeline_mode<synchronous>, transform_indices = @transform_5, window_bounds = array<i64: 1, 8>}, {pipeline_mode = #tpu.pipeline_mode<synchronous>, transform_indices = @transform_6, window_bounds = array<i64: 1, 8, 32>}, {pipeline_mode = #tpu.pipeline_mode<synchronous>, transform_indices = @transform_7, window_bounds = array<i64: 1, 32>}, {pipeline_mode = #tpu.pipeline_mode<synchronous>, transform_indices = @transform_8, window_bounds = array<i64: 9, 32, 8>}, {pipeline_mode = #tpu.pipeline_mode<synchronous>, transform_indices = @transform_9, window_bounds = array<i64: 1, 8>}, {pipeline_mode = #tpu.pipeline_mode<synchronous>, transform_indices = @transform_10, window_bounds = array<i64: 1, 8, 32>}, {pipeline_mode = #tpu.pipeline_mode<synchronous>, transform_indices = @transform_11, window_bounds = array<i64: 1, 32>}, {pipeline_mode = #tpu.pipeline_mode<synchronous>, transform_indices = @transform_12, window_bounds = array<i64: 1, 32, 4>}, {pipeline_mode = #tpu.pipeline_mode<synchronous>, transform_indices = @transform_13, window_bounds = array<i64: 1, 4>}, {transform_indices = @transform_14, window_bounds = array<i64: 1, 24, 4>}]} {
    %c0 = arith.constant 0 : index
    %c0_0 = arith.constant 0 : index
    %0 = vector.load %arg2[%c0, %c0_0] : memref<24x1xf32, #tpu.memory_space<vmem>>, vector<24x1xf32>
    %c0_1 = arith.constant 0 : index
    %c0_2 = arith.constant 0 : index
    %c0_3 = arith.constant 0 : index
    %1 = vector.load %arg1[%c0_1, %c0_2, %c0_3] : memref<1x40x32xbf16, #tpu.memory_space<vmem>>, vector<1x24x32xbf16>
    %2 = vector.shape_cast %1 : vector<1x24x32xbf16> to vector<24x32xbf16>
    %c0_4 = arith.constant 0 : index
    %c0_5 = arith.constant 0 : index
    %c0_6 = arith.constant 0 : index
    %3 = vector.load %arg3[%c0_4, %c0_5, %c0_6] : memref<9x32x32xbf16, #tpu.memory_space<vmem>>, vector<1x32x32xbf16>
    %4 = vector.shape_cast %3 : vector<1x32x32xbf16> to vector<32x32xbf16>
    %cst = arith.constant dense<0.000000e+00> : vector<24x32xf32>
    %5 = tpu.matmul %2, %4, %cst {dimension_numbers = #tpu.dot_dimension_numbers<[1], [0], [0], [1], [0, 0, 1, 1], [], []>} : vector<24x32xbf16>, vector<32x32xbf16>, vector<24x32xf32> -> vector<24x32xf32>
    %c0_7 = arith.constant 0 : index
    %c1 = arith.constant 1 : index
    %c0_8 = arith.constant 0 : index
    %6 = vector.load %arg1[%c0_7, %c1, %c0_8] : memref<1x40x32xbf16, #tpu.memory_space<vmem>>, vector<1x24x32xbf16>
    %7 = vector.shape_cast %6 : vector<1x24x32xbf16> to vector<24x32xbf16>
    %c1_9 = arith.constant 1 : index
    %c0_10 = arith.constant 0 : index
    %c0_11 = arith.constant 0 : index
    %8 = vector.load %arg3[%c1_9, %c0_10, %c0_11] : memref<9x32x32xbf16, #tpu.memory_space<vmem>>, vector<1x32x32xbf16>
    %9 = vector.shape_cast %8 : vector<1x32x32xbf16> to vector<32x32xbf16>
    %cst_12 = arith.constant dense<0.000000e+00> : vector<24x32xf32>
    %10 = tpu.matmul %7, %9, %cst_12 {dimension_numbers = #tpu.dot_dimension_numbers<[1], [0], [0], [1], [0, 0, 1, 1], [], []>} : vector<24x32xbf16>, vector<32x32xbf16>, vector<24x32xf32> -> vector<24x32xf32>
    %11 = arith.addf %5, %10 : vector<24x32xf32>
    %c0_13 = arith.constant 0 : index
    %c2 = arith.constant 2 : index
    %c0_14 = arith.constant 0 : index
    %12 = vector.load %arg1[%c0_13, %c2, %c0_14] : memref<1x40x32xbf16, #tpu.memory_space<vmem>>, vector<1x24x32xbf16>
    %13 = vector.shape_cast %12 : vector<1x24x32xbf16> to vector<24x32xbf16>
    %c2_15 = arith.constant 2 : index
    %c0_16 = arith.constant 0 : index
    %c0_17 = arith.constant 0 : index
    %14 = vector.load %arg3[%c2_15, %c0_16, %c0_17] : memref<9x32x32xbf16, #tpu.memory_space<vmem>>, vector<1x32x32xbf16>
    %15 = vector.shape_cast %14 : vector<1x32x32xbf16> to vector<32x32xbf16>
    %cst_18 = arith.constant dense<0.000000e+00> : vector<24x32xf32>
    %16 = tpu.matmul %13, %15, %cst_18 {dimension_numbers = #tpu.dot_dimension_numbers<[1], [0], [0], [1], [0, 0, 1, 1], [], []>} : vector<24x32xbf16>, vector<32x32xbf16>, vector<24x32xf32> -> vector<24x32xf32>
    %17 = arith.addf %11, %16 : vector<24x32xf32>
    %c0_19 = arith.constant 0 : index
    %c6 = arith.constant 6 : index
    %c0_20 = arith.constant 0 : index
    %18 = vector.load %arg1[%c0_19, %c6, %c0_20] : memref<1x40x32xbf16, #tpu.memory_space<vmem>>, vector<1x24x32xbf16>
    %19 = vector.shape_cast %18 : vector<1x24x32xbf16> to vector<24x32xbf16>
    %c3 = arith.constant 3 : index
    %c0_21 = arith.constant 0 : index
    %c0_22 = arith.constant 0 : index
    %20 = vector.load %arg3[%c3, %c0_21, %c0_22] : memref<9x32x32xbf16, #tpu.memory_space<vmem>>, vector<1x32x32xbf16>
    %21 = vector.shape_cast %20 : vector<1x32x32xbf16> to vector<32x32xbf16>
    %cst_23 = arith.constant dense<0.000000e+00> : vector<24x32xf32>
    %22 = tpu.matmul %19, %21, %cst_23 {dimension_numbers = #tpu.dot_dimension_numbers<[1], [0], [0], [1], [0, 0, 1, 1], [], []>} : vector<24x32xbf16>, vector<32x32xbf16>, vector<24x32xf32> -> vector<24x32xf32>
    %23 = arith.addf %17, %22 : vector<24x32xf32>
    %c0_24 = arith.constant 0 : index
    %c7 = arith.constant 7 : index
    %c0_25 = arith.constant 0 : index
    %24 = vector.load %arg1[%c0_24, %c7, %c0_25] : memref<1x40x32xbf16, #tpu.memory_space<vmem>>, vector<1x24x32xbf16>
    %25 = vector.shape_cast %24 : vector<1x24x32xbf16> to vector<24x32xbf16>
    %c4 = arith.constant 4 : index
    %c0_26 = arith.constant 0 : index
    %c0_27 = arith.constant 0 : index
    %26 = vector.load %arg3[%c4, %c0_26, %c0_27] : memref<9x32x32xbf16, #tpu.memory_space<vmem>>, vector<1x32x32xbf16>
    %27 = vector.shape_cast %26 : vector<1x32x32xbf16> to vector<32x32xbf16>
    %cst_28 = arith.constant dense<0.000000e+00> : vector<24x32xf32>
    %28 = tpu.matmul %25, %27, %cst_28 {dimension_numbers = #tpu.dot_dimension_numbers<[1], [0], [0], [1], [0, 0, 1, 1], [], []>} : vector<24x32xbf16>, vector<32x32xbf16>, vector<24x32xf32> -> vector<24x32xf32>
    %29 = arith.addf %23, %28 : vector<24x32xf32>
    %c0_29 = arith.constant 0 : index
    %c8 = arith.constant 8 : index
    %c0_30 = arith.constant 0 : index
    %30 = vector.load %arg1[%c0_29, %c8, %c0_30] : memref<1x40x32xbf16, #tpu.memory_space<vmem>>, vector<1x24x32xbf16>
    %31 = vector.shape_cast %30 : vector<1x24x32xbf16> to vector<24x32xbf16>
    %c5 = arith.constant 5 : index
    %c0_31 = arith.constant 0 : index
    %c0_32 = arith.constant 0 : index
    %32 = vector.load %arg3[%c5, %c0_31, %c0_32] : memref<9x32x32xbf16, #tpu.memory_space<vmem>>, vector<1x32x32xbf16>
    %33 = vector.shape_cast %32 : vector<1x32x32xbf16> to vector<32x32xbf16>
    %cst_33 = arith.constant dense<0.000000e+00> : vector<24x32xf32>
    %34 = tpu.matmul %31, %33, %cst_33 {dimension_numbers = #tpu.dot_dimension_numbers<[1], [0], [0], [1], [0, 0, 1, 1], [], []>} : vector<24x32xbf16>, vector<32x32xbf16>, vector<24x32xf32> -> vector<24x32xf32>
    %35 = arith.addf %29, %34 : vector<24x32xf32>
    %c0_34 = arith.constant 0 : index
    %c12 = arith.constant 12 : index
    %c0_35 = arith.constant 0 : index
    %36 = vector.load %arg1[%c0_34, %c12, %c0_35] : memref<1x40x32xbf16, #tpu.memory_space<vmem>>, vector<1x24x32xbf16>
    %37 = vector.shape_cast %36 : vector<1x24x32xbf16> to vector<24x32xbf16>
    %c6_36 = arith.constant 6 : index
    %c0_37 = arith.constant 0 : index
    %c0_38 = arith.constant 0 : index
    %38 = vector.load %arg3[%c6_36, %c0_37, %c0_38] : memref<9x32x32xbf16, #tpu.memory_space<vmem>>, vector<1x32x32xbf16>
    %39 = vector.shape_cast %38 : vector<1x32x32xbf16> to vector<32x32xbf16>
    %cst_39 = arith.constant dense<0.000000e+00> : vector<24x32xf32>
    %40 = tpu.matmul %37, %39, %cst_39 {dimension_numbers = #tpu.dot_dimension_numbers<[1], [0], [0], [1], [0, 0, 1, 1], [], []>} : vector<24x32xbf16>, vector<32x32xbf16>, vector<24x32xf32> -> vector<24x32xf32>
    %41 = arith.addf %35, %40 : vector<24x32xf32>
    %c0_40 = arith.constant 0 : index
    %c13 = arith.constant 13 : index
    %c0_41 = arith.constant 0 : index
    %42 = vector.load %arg1[%c0_40, %c13, %c0_41] : memref<1x40x32xbf16, #tpu.memory_space<vmem>>, vector<1x24x32xbf16>
    %43 = vector.shape_cast %42 : vector<1x24x32xbf16> to vector<24x32xbf16>
    %c7_42 = arith.constant 7 : index
    %c0_43 = arith.constant 0 : index
    %c0_44 = arith.constant 0 : index
    %44 = vector.load %arg3[%c7_42, %c0_43, %c0_44] : memref<9x32x32xbf16, #tpu.memory_space<vmem>>, vector<1x32x32xbf16>
    %45 = vector.shape_cast %44 : vector<1x32x32xbf16> to vector<32x32xbf16>
    %cst_45 = arith.constant dense<0.000000e+00> : vector<24x32xf32>
    %46 = tpu.matmul %43, %45, %cst_45 {dimension_numbers = #tpu.dot_dimension_numbers<[1], [0], [0], [1], [0, 0, 1, 1], [], []>} : vector<24x32xbf16>, vector<32x32xbf16>, vector<24x32xf32> -> vector<24x32xf32>
    %47 = arith.addf %41, %46 : vector<24x32xf32>
    %c0_46 = arith.constant 0 : index
    %c14 = arith.constant 14 : index
    %c0_47 = arith.constant 0 : index
    %48 = vector.load %arg1[%c0_46, %c14, %c0_47] : memref<1x40x32xbf16, #tpu.memory_space<vmem>>, vector<1x24x32xbf16>
    %49 = vector.shape_cast %48 : vector<1x24x32xbf16> to vector<24x32xbf16>
    %c8_48 = arith.constant 8 : index
    %c0_49 = arith.constant 0 : index
    %c0_50 = arith.constant 0 : index
    %50 = vector.load %arg3[%c8_48, %c0_49, %c0_50] : memref<9x32x32xbf16, #tpu.memory_space<vmem>>, vector<1x32x32xbf16>
    %51 = vector.shape_cast %50 : vector<1x32x32xbf16> to vector<32x32xbf16>
    %cst_51 = arith.constant dense<0.000000e+00> : vector<24x32xf32>
    %52 = tpu.matmul %49, %51, %cst_51 {dimension_numbers = #tpu.dot_dimension_numbers<[1], [0], [0], [1], [0, 0, 1, 1], [], []>} : vector<24x32xbf16>, vector<32x32xbf16>, vector<24x32xf32> -> vector<24x32xf32>
    %53 = arith.addf %47, %52 : vector<24x32xf32>
    %c0_52 = arith.constant 0 : index
    %c0_53 = arith.constant 0 : index
    %54 = vector.load %arg4[%c0_52, %c0_53] : memref<1x32xf32, #tpu.memory_space<vmem>>, vector<1x32xf32>
    %55 = vector.broadcast %54 : vector<1x32xf32> to vector<24x32xf32>
    %56 = arith.addf %53, %55 : vector<24x32xf32>
    %cst_54 = arith.constant 0.000000e+00 : f32
    %57 = vector.broadcast %cst_54 : f32 to vector<24x32xf32>
    %58 = arith.maximumf %56, %57 : vector<24x32xf32>
    %cst_55 = arith.constant 0.000000e+00 : bf16
    %59 = vector.broadcast %cst_55 : bf16 to vector<40x32xbf16>
    %c0_56 = arith.constant 0 : index
    %c0_57 = arith.constant 0 : index
    %60 = vector.load %arg16[%c0_56, %c0_57] : memref<40x32xbf16, #tpu.memory_space<vmem>>, vector<40x32xbf16>
    tpu.vector_store %arg16[%c0_56, %c0_57], %59 {strides = array<i32>} : memref<40x32xbf16, #tpu.memory_space<vmem>>, vector<40x32xbf16>,
    %61 = vector.broadcast %0 : vector<24x1xf32> to vector<24x32xf32>
    %62 = arith.mulf %58, %61 : vector<24x32xf32>
    %63 = arith.truncf %62 : vector<24x32xf32> to vector<24x32xbf16>
    %c7_58 = arith.constant 7 : index
    %c0_59 = arith.constant 0 : index
    %64 = vector.load %arg16[%c7_58, %c0_59] : memref<40x32xbf16, #tpu.memory_space<vmem>>, vector<24x32xbf16>
    tpu.vector_store %arg16[%c7_58, %c0_59], %63 {strides = array<i32>} : memref<40x32xbf16, #tpu.memory_space<vmem>>, vector<24x32xbf16>,
    %c0_60 = arith.constant 0 : index
    %c0_61 = arith.constant 0 : index
    %65 = vector.load %arg16[%c0_60, %c0_61] : memref<40x32xbf16, #tpu.memory_space<vmem>>, vector<24x32xbf16>
    %c0_62 = arith.constant 0 : index
    %c0_63 = arith.constant 0 : index
    %c0_64 = arith.constant 0 : index
    %66 = vector.load %arg5[%c0_62, %c0_63, %c0_64] : memref<9x32x8xbf16, #tpu.memory_space<vmem>>, vector<1x32x8xbf16>
    %67 = vector.shape_cast %66 : vector<1x32x8xbf16> to vector<32x8xbf16>
    %cst_65 = arith.constant dense<0.000000e+00> : vector<24x8xf32>
    %68 = tpu.matmul %65, %67, %cst_65 {dimension_numbers = #tpu.dot_dimension_numbers<[1], [0], [0], [1], [0, 0, 1, 1], [], []>} : vector<24x32xbf16>, vector<32x8xbf16>, vector<24x8xf32> -> vector<24x8xf32>
    %c1_66 = arith.constant 1 : index
    %c0_67 = arith.constant 0 : index
    %69 = vector.load %arg16[%c1_66, %c0_67] : memref<40x32xbf16, #tpu.memory_space<vmem>>, vector<24x32xbf16>
    %c1_68 = arith.constant 1 : index
    %c0_69 = arith.constant 0 : index
    %c0_70 = arith.constant 0 : index
    %70 = vector.load %arg5[%c1_68, %c0_69, %c0_70] : memref<9x32x8xbf16, #tpu.memory_space<vmem>>, vector<1x32x8xbf16>
    %71 = vector.shape_cast %70 : vector<1x32x8xbf16> to vector<32x8xbf16>
    %cst_71 = arith.constant dense<0.000000e+00> : vector<24x8xf32>
    %72 = tpu.matmul %69, %71, %cst_71 {dimension_numbers = #tpu.dot_dimension_numbers<[1], [0], [0], [1], [0, 0, 1, 1], [], []>} : vector<24x32xbf16>, vector<32x8xbf16>, vector<24x8xf32> -> vector<24x8xf32>
    %73 = arith.addf %68, %72 : vector<24x8xf32>
    %c2_72 = arith.constant 2 : index
    %c0_73 = arith.constant 0 : index
    %74 = vector.load %arg16[%c2_72, %c0_73] : memref<40x32xbf16, #tpu.memory_space<vmem>>, vector<24x32xbf16>
    %c2_74 = arith.constant 2 : index
    %c0_75 = arith.constant 0 : index
    %c0_76 = arith.constant 0 : index
    %75 = vector.load %arg5[%c2_74, %c0_75, %c0_76] : memref<9x32x8xbf16, #tpu.memory_space<vmem>>, vector<1x32x8xbf16>
    %76 = vector.shape_cast %75 : vector<1x32x8xbf16> to vector<32x8xbf16>
    %cst_77 = arith.constant dense<0.000000e+00> : vector<24x8xf32>
    %77 = tpu.matmul %74, %76, %cst_77 {dimension_numbers = #tpu.dot_dimension_numbers<[1], [0], [0], [1], [0, 0, 1, 1], [], []>} : vector<24x32xbf16>, vector<32x8xbf16>, vector<24x8xf32> -> vector<24x8xf32>
    %78 = arith.addf %73, %77 : vector<24x8xf32>
    %c6_78 = arith.constant 6 : index
    %c0_79 = arith.constant 0 : index
    %79 = vector.load %arg16[%c6_78, %c0_79] : memref<40x32xbf16, #tpu.memory_space<vmem>>, vector<24x32xbf16>
    %c3_80 = arith.constant 3 : index
    %c0_81 = arith.constant 0 : index
    %c0_82 = arith.constant 0 : index
    %80 = vector.load %arg5[%c3_80, %c0_81, %c0_82] : memref<9x32x8xbf16, #tpu.memory_space<vmem>>, vector<1x32x8xbf16>
    %81 = vector.shape_cast %80 : vector<1x32x8xbf16> to vector<32x8xbf16>
    %cst_83 = arith.constant dense<0.000000e+00> : vector<24x8xf32>
    %82 = tpu.matmul %79, %81, %cst_83 {dimension_numbers = #tpu.dot_dimension_numbers<[1], [0], [0], [1], [0, 0, 1, 1], [], []>} : vector<24x32xbf16>, vector<32x8xbf16>, vector<24x8xf32> -> vector<24x8xf32>
    %83 = arith.addf %78, %82 : vector<24x8xf32>
    %c7_84 = arith.constant 7 : index
    %c0_85 = arith.constant 0 : index
    %84 = vector.load %arg16[%c7_84, %c0_85] : memref<40x32xbf16, #tpu.memory_space<vmem>>, vector<24x32xbf16>
    %c4_86 = arith.constant 4 : index
    %c0_87 = arith.constant 0 : index
    %c0_88 = arith.constant 0 : index
    %85 = vector.load %arg5[%c4_86, %c0_87, %c0_88] : memref<9x32x8xbf16, #tpu.memory_space<vmem>>, vector<1x32x8xbf16>
    %86 = vector.shape_cast %85 : vector<1x32x8xbf16> to vector<32x8xbf16>
    %cst_89 = arith.constant dense<0.000000e+00> : vector<24x8xf32>
    %87 = tpu.matmul %84, %86, %cst_89 {dimension_numbers = #tpu.dot_dimension_numbers<[1], [0], [0], [1], [0, 0, 1, 1], [], []>} : vector<24x32xbf16>, vector<32x8xbf16>, vector<24x8xf32> -> vector<24x8xf32>
    %88 = arith.addf %83, %87 : vector<24x8xf32>
    %c8_90 = arith.constant 8 : index
    %c0_91 = arith.constant 0 : index
    %89 = vector.load %arg16[%c8_90, %c0_91] : memref<40x32xbf16, #tpu.memory_space<vmem>>, vector<24x32xbf16>
    %c5_92 = arith.constant 5 : index
    %c0_93 = arith.constant 0 : index
    %c0_94 = arith.constant 0 : index
    %90 = vector.load %arg5[%c5_92, %c0_93, %c0_94] : memref<9x32x8xbf16, #tpu.memory_space<vmem>>, vector<1x32x8xbf16>
    %91 = vector.shape_cast %90 : vector<1x32x8xbf16> to vector<32x8xbf16>
    %cst_95 = arith.constant dense<0.000000e+00> : vector<24x8xf32>
    %92 = tpu.matmul %89, %91, %cst_95 {dimension_numbers = #tpu.dot_dimension_numbers<[1], [0], [0], [1], [0, 0, 1, 1], [], []>} : vector<24x32xbf16>, vector<32x8xbf16>, vector<24x8xf32> -> vector<24x8xf32>
    %93 = arith.addf %88, %92 : vector<24x8xf32>
    %c12_96 = arith.constant 12 : index
    %c0_97 = arith.constant 0 : index
    %94 = vector.load %arg16[%c12_96, %c0_97] : memref<40x32xbf16, #tpu.memory_space<vmem>>, vector<24x32xbf16>
    %c6_98 = arith.constant 6 : index
    %c0_99 = arith.constant 0 : index
    %c0_100 = arith.constant 0 : index
    %95 = vector.load %arg5[%c6_98, %c0_99, %c0_100] : memref<9x32x8xbf16, #tpu.memory_space<vmem>>, vector<1x32x8xbf16>
    %96 = vector.shape_cast %95 : vector<1x32x8xbf16> to vector<32x8xbf16>
    %cst_101 = arith.constant dense<0.000000e+00> : vector<24x8xf32>
    %97 = tpu.matmul %94, %96, %cst_101 {dimension_numbers = #tpu.dot_dimension_numbers<[1], [0], [0], [1], [0, 0, 1, 1], [], []>} : vector<24x32xbf16>, vector<32x8xbf16>, vector<24x8xf32> -> vector<24x8xf32>
    %98 = arith.addf %93, %97 : vector<24x8xf32>
    %c13_102 = arith.constant 13 : index
    %c0_103 = arith.constant 0 : index
    %99 = vector.load %arg16[%c13_102, %c0_103] : memref<40x32xbf16, #tpu.memory_space<vmem>>, vector<24x32xbf16>
    %c7_104 = arith.constant 7 : index
    %c0_105 = arith.constant 0 : index
    %c0_106 = arith.constant 0 : index
    %100 = vector.load %arg5[%c7_104, %c0_105, %c0_106] : memref<9x32x8xbf16, #tpu.memory_space<vmem>>, vector<1x32x8xbf16>
    %101 = vector.shape_cast %100 : vector<1x32x8xbf16> to vector<32x8xbf16>
    %cst_107 = arith.constant dense<0.000000e+00> : vector<24x8xf32>
    %102 = tpu.matmul %99, %101, %cst_107 {dimension_numbers = #tpu.dot_dimension_numbers<[1], [0], [0], [1], [0, 0, 1, 1], [], []>} : vector<24x32xbf16>, vector<32x8xbf16>, vector<24x8xf32> -> vector<24x8xf32>
    %103 = arith.addf %98, %102 : vector<24x8xf32>
    %c14_108 = arith.constant 14 : index
    %c0_109 = arith.constant 0 : index
    %104 = vector.load %arg16[%c14_108, %c0_109] : memref<40x32xbf16, #tpu.memory_space<vmem>>, vector<24x32xbf16>
    %c8_110 = arith.constant 8 : index
    %c0_111 = arith.constant 0 : index
    %c0_112 = arith.constant 0 : index
    %105 = vector.load %arg5[%c8_110, %c0_111, %c0_112] : memref<9x32x8xbf16, #tpu.memory_space<vmem>>, vector<1x32x8xbf16>
    %106 = vector.shape_cast %105 : vector<1x32x8xbf16> to vector<32x8xbf16>
    %cst_113 = arith.constant dense<0.000000e+00> : vector<24x8xf32>
    %107 = tpu.matmul %104, %106, %cst_113 {dimension_numbers = #tpu.dot_dimension_numbers<[1], [0], [0], [1], [0, 0, 1, 1], [], []>} : vector<24x32xbf16>, vector<32x8xbf16>, vector<24x8xf32> -> vector<24x8xf32>
    %108 = arith.addf %103, %107 : vector<24x8xf32>
    %c0_114 = arith.constant 0 : index
    %c0_115 = arith.constant 0 : index
    %109 = vector.load %arg6[%c0_114, %c0_115] : memref<1x8xf32, #tpu.memory_space<vmem>>, vector<1x8xf32>
    %110 = vector.broadcast %109 : vector<1x8xf32> to vector<24x8xf32>
    %111 = arith.addf %108, %110 : vector<24x8xf32>
    %cst_116 = arith.constant 0.000000e+00 : f32
    %112 = vector.broadcast %cst_116 : f32 to vector<24x8xf32>
    %113 = arith.maximumf %111, %112 : vector<24x8xf32>
    %114 = arith.truncf %113 : vector<24x8xf32> to vector<24x8xbf16>
    %c0_117 = arith.constant 0 : index
    %c0_118 = arith.constant 0 : index
    %c0_119 = arith.constant 0 : index
    %115 = vector.load %arg7[%c0_117, %c0_118, %c0_119] : memref<1x8x32xbf16, #tpu.memory_space<vmem>>, vector<1x8x32xbf16>
    %116 = vector.shape_cast %115 : vector<1x8x32xbf16> to vector<8x32xbf16>
    %cst_120 = arith.constant dense<0.000000e+00> : vector<24x32xf32>
    %117 = tpu.matmul %114, %116, %cst_120 {dimension_numbers = #tpu.dot_dimension_numbers<[1], [0], [0], [1], [0, 0, 1, 1], [], []>} : vector<24x8xbf16>, vector<8x32xbf16>, vector<24x32xf32> -> vector<24x32xf32>
    %c0_121 = arith.constant 0 : index
    %c0_122 = arith.constant 0 : index
    %118 = vector.load %arg8[%c0_121, %c0_122] : memref<1x32xf32, #tpu.memory_space<vmem>>, vector<1x32xf32>
    %119 = vector.broadcast %118 : vector<1x32xf32> to vector<24x32xf32>
    %120 = arith.addf %117, %119 : vector<24x32xf32>
    %121 = arith.addf %120, %58 : vector<24x32xf32>
    %cst_123 = arith.constant 0.000000e+00 : f32
    %122 = vector.broadcast %cst_123 : f32 to vector<24x32xf32>
    %123 = arith.maximumf %121, %122 : vector<24x32xf32>
    %cst_124 = arith.constant 0.000000e+00 : bf16
    %124 = vector.broadcast %cst_124 : bf16 to vector<40x32xbf16>
    %c0_125 = arith.constant 0 : index
    %c0_126 = arith.constant 0 : index
    %125 = vector.load %arg17[%c0_125, %c0_126] : memref<40x32xbf16, #tpu.memory_space<vmem>>, vector<40x32xbf16>
    tpu.vector_store %arg17[%c0_125, %c0_126], %124 {strides = array<i32>} : memref<40x32xbf16, #tpu.memory_space<vmem>>, vector<40x32xbf16>,
    %126 = vector.broadcast %0 : vector<24x1xf32> to vector<24x32xf32>
    %127 = arith.mulf %123, %126 : vector<24x32xf32>
    %128 = arith.truncf %127 : vector<24x32xf32> to vector<24x32xbf16>
    %c7_127 = arith.constant 7 : index
    %c0_128 = arith.constant 0 : index
    %129 = vector.load %arg17[%c7_127, %c0_128] : memref<40x32xbf16, #tpu.memory_space<vmem>>, vector<24x32xbf16>
    tpu.vector_store %arg17[%c7_127, %c0_128], %128 {strides = array<i32>} : memref<40x32xbf16, #tpu.memory_space<vmem>>, vector<24x32xbf16>,
    %c0_129 = arith.constant 0 : index
    %c0_130 = arith.constant 0 : index
    %130 = vector.load %arg17[%c0_129, %c0_130] : memref<40x32xbf16, #tpu.memory_space<vmem>>, vector<24x32xbf16>
    %c0_131 = arith.constant 0 : index
    %c0_132 = arith.constant 0 : index
    %c0_133 = arith.constant 0 : index
    %131 = vector.load %arg9[%c0_131, %c0_132, %c0_133] : memref<9x32x8xbf16, #tpu.memory_space<vmem>>, vector<1x32x8xbf16>
    %132 = vector.shape_cast %131 : vector<1x32x8xbf16> to vector<32x8xbf16>
    %cst_134 = arith.constant dense<0.000000e+00> : vector<24x8xf32>
    %133 = tpu.matmul %130, %132, %cst_134 {dimension_numbers = #tpu.dot_dimension_numbers<[1], [0], [0], [1], [0, 0, 1, 1], [], []>} : vector<24x32xbf16>, vector<32x8xbf16>, vector<24x8xf32> -> vector<24x8xf32>
    %c1_135 = arith.constant 1 : index
    %c0_136 = arith.constant 0 : index
    %134 = vector.load %arg17[%c1_135, %c0_136] : memref<40x32xbf16, #tpu.memory_space<vmem>>, vector<24x32xbf16>
    %c1_137 = arith.constant 1 : index
    %c0_138 = arith.constant 0 : index
    %c0_139 = arith.constant 0 : index
    %135 = vector.load %arg9[%c1_137, %c0_138, %c0_139] : memref<9x32x8xbf16, #tpu.memory_space<vmem>>, vector<1x32x8xbf16>
    %136 = vector.shape_cast %135 : vector<1x32x8xbf16> to vector<32x8xbf16>
    %cst_140 = arith.constant dense<0.000000e+00> : vector<24x8xf32>
    %137 = tpu.matmul %134, %136, %cst_140 {dimension_numbers = #tpu.dot_dimension_numbers<[1], [0], [0], [1], [0, 0, 1, 1], [], []>} : vector<24x32xbf16>, vector<32x8xbf16>, vector<24x8xf32> -> vector<24x8xf32>
    %138 = arith.addf %133, %137 : vector<24x8xf32>
    %c2_141 = arith.constant 2 : index
    %c0_142 = arith.constant 0 : index
    %139 = vector.load %arg17[%c2_141, %c0_142] : memref<40x32xbf16, #tpu.memory_space<vmem>>, vector<24x32xbf16>
    %c2_143 = arith.constant 2 : index
    %c0_144 = arith.constant 0 : index
    %c0_145 = arith.constant 0 : index
    %140 = vector.load %arg9[%c2_143, %c0_144, %c0_145] : memref<9x32x8xbf16, #tpu.memory_space<vmem>>, vector<1x32x8xbf16>
    %141 = vector.shape_cast %140 : vector<1x32x8xbf16> to vector<32x8xbf16>
    %cst_146 = arith.constant dense<0.000000e+00> : vector<24x8xf32>
    %142 = tpu.matmul %139, %141, %cst_146 {dimension_numbers = #tpu.dot_dimension_numbers<[1], [0], [0], [1], [0, 0, 1, 1], [], []>} : vector<24x32xbf16>, vector<32x8xbf16>, vector<24x8xf32> -> vector<24x8xf32>
    %143 = arith.addf %138, %142 : vector<24x8xf32>
    %c6_147 = arith.constant 6 : index
    %c0_148 = arith.constant 0 : index
    %144 = vector.load %arg17[%c6_147, %c0_148] : memref<40x32xbf16, #tpu.memory_space<vmem>>, vector<24x32xbf16>
    %c3_149 = arith.constant 3 : index
    %c0_150 = arith.constant 0 : index
    %c0_151 = arith.constant 0 : index
    %145 = vector.load %arg9[%c3_149, %c0_150, %c0_151] : memref<9x32x8xbf16, #tpu.memory_space<vmem>>, vector<1x32x8xbf16>
    %146 = vector.shape_cast %145 : vector<1x32x8xbf16> to vector<32x8xbf16>
    %cst_152 = arith.constant dense<0.000000e+00> : vector<24x8xf32>
    %147 = tpu.matmul %144, %146, %cst_152 {dimension_numbers = #tpu.dot_dimension_numbers<[1], [0], [0], [1], [0, 0, 1, 1], [], []>} : vector<24x32xbf16>, vector<32x8xbf16>, vector<24x8xf32> -> vector<24x8xf32>
    %148 = arith.addf %143, %147 : vector<24x8xf32>
    %c7_153 = arith.constant 7 : index
    %c0_154 = arith.constant 0 : index
    %149 = vector.load %arg17[%c7_153, %c0_154] : memref<40x32xbf16, #tpu.memory_space<vmem>>, vector<24x32xbf16>
    %c4_155 = arith.constant 4 : index
    %c0_156 = arith.constant 0 : index
    %c0_157 = arith.constant 0 : index
    %150 = vector.load %arg9[%c4_155, %c0_156, %c0_157] : memref<9x32x8xbf16, #tpu.memory_space<vmem>>, vector<1x32x8xbf16>
    %151 = vector.shape_cast %150 : vector<1x32x8xbf16> to vector<32x8xbf16>
    %cst_158 = arith.constant dense<0.000000e+00> : vector<24x8xf32>
    %152 = tpu.matmul %149, %151, %cst_158 {dimension_numbers = #tpu.dot_dimension_numbers<[1], [0], [0], [1], [0, 0, 1, 1], [], []>} : vector<24x32xbf16>, vector<32x8xbf16>, vector<24x8xf32> -> vector<24x8xf32>
    %153 = arith.addf %148, %152 : vector<24x8xf32>
    %c8_159 = arith.constant 8 : index
    %c0_160 = arith.constant 0 : index
    %154 = vector.load %arg17[%c8_159, %c0_160] : memref<40x32xbf16, #tpu.memory_space<vmem>>, vector<24x32xbf16>
    %c5_161 = arith.constant 5 : index
    %c0_162 = arith.constant 0 : index
    %c0_163 = arith.constant 0 : index
    %155 = vector.load %arg9[%c5_161, %c0_162, %c0_163] : memref<9x32x8xbf16, #tpu.memory_space<vmem>>, vector<1x32x8xbf16>
    %156 = vector.shape_cast %155 : vector<1x32x8xbf16> to vector<32x8xbf16>
    %cst_164 = arith.constant dense<0.000000e+00> : vector<24x8xf32>
    %157 = tpu.matmul %154, %156, %cst_164 {dimension_numbers = #tpu.dot_dimension_numbers<[1], [0], [0], [1], [0, 0, 1, 1], [], []>} : vector<24x32xbf16>, vector<32x8xbf16>, vector<24x8xf32> -> vector<24x8xf32>
    %158 = arith.addf %153, %157 : vector<24x8xf32>
    %c12_165 = arith.constant 12 : index
    %c0_166 = arith.constant 0 : index
    %159 = vector.load %arg17[%c12_165, %c0_166] : memref<40x32xbf16, #tpu.memory_space<vmem>>, vector<24x32xbf16>
    %c6_167 = arith.constant 6 : index
    %c0_168 = arith.constant 0 : index
    %c0_169 = arith.constant 0 : index
    %160 = vector.load %arg9[%c6_167, %c0_168, %c0_169] : memref<9x32x8xbf16, #tpu.memory_space<vmem>>, vector<1x32x8xbf16>
    %161 = vector.shape_cast %160 : vector<1x32x8xbf16> to vector<32x8xbf16>
    %cst_170 = arith.constant dense<0.000000e+00> : vector<24x8xf32>
    %162 = tpu.matmul %159, %161, %cst_170 {dimension_numbers = #tpu.dot_dimension_numbers<[1], [0], [0], [1], [0, 0, 1, 1], [], []>} : vector<24x32xbf16>, vector<32x8xbf16>, vector<24x8xf32> -> vector<24x8xf32>
    %163 = arith.addf %158, %162 : vector<24x8xf32>
    %c13_171 = arith.constant 13 : index
    %c0_172 = arith.constant 0 : index
    %164 = vector.load %arg17[%c13_171, %c0_172] : memref<40x32xbf16, #tpu.memory_space<vmem>>, vector<24x32xbf16>
    %c7_173 = arith.constant 7 : index
    %c0_174 = arith.constant 0 : index
    %c0_175 = arith.constant 0 : index
    %165 = vector.load %arg9[%c7_173, %c0_174, %c0_175] : memref<9x32x8xbf16, #tpu.memory_space<vmem>>, vector<1x32x8xbf16>
    %166 = vector.shape_cast %165 : vector<1x32x8xbf16> to vector<32x8xbf16>
    %cst_176 = arith.constant dense<0.000000e+00> : vector<24x8xf32>
    %167 = tpu.matmul %164, %166, %cst_176 {dimension_numbers = #tpu.dot_dimension_numbers<[1], [0], [0], [1], [0, 0, 1, 1], [], []>} : vector<24x32xbf16>, vector<32x8xbf16>, vector<24x8xf32> -> vector<24x8xf32>
    %168 = arith.addf %163, %167 : vector<24x8xf32>
    %c14_177 = arith.constant 14 : index
    %c0_178 = arith.constant 0 : index
    %169 = vector.load %arg17[%c14_177, %c0_178] : memref<40x32xbf16, #tpu.memory_space<vmem>>, vector<24x32xbf16>
    %c8_179 = arith.constant 8 : index
    %c0_180 = arith.constant 0 : index
    %c0_181 = arith.constant 0 : index
    %170 = vector.load %arg9[%c8_179, %c0_180, %c0_181] : memref<9x32x8xbf16, #tpu.memory_space<vmem>>, vector<1x32x8xbf16>
    %171 = vector.shape_cast %170 : vector<1x32x8xbf16> to vector<32x8xbf16>
    %cst_182 = arith.constant dense<0.000000e+00> : vector<24x8xf32>
    %172 = tpu.matmul %169, %171, %cst_182 {dimension_numbers = #tpu.dot_dimension_numbers<[1], [0], [0], [1], [0, 0, 1, 1], [], []>} : vector<24x32xbf16>, vector<32x8xbf16>, vector<24x8xf32> -> vector<24x8xf32>
    %173 = arith.addf %168, %172 : vector<24x8xf32>
    %c0_183 = arith.constant 0 : index
    %c0_184 = arith.constant 0 : index
    %174 = vector.load %arg10[%c0_183, %c0_184] : memref<1x8xf32, #tpu.memory_space<vmem>>, vector<1x8xf32>
    %175 = vector.broadcast %174 : vector<1x8xf32> to vector<24x8xf32>
    %176 = arith.addf %173, %175 : vector<24x8xf32>
    %cst_185 = arith.constant 0.000000e+00 : f32
    %177 = vector.broadcast %cst_185 : f32 to vector<24x8xf32>
    %178 = arith.maximumf %176, %177 : vector<24x8xf32>
    %179 = arith.truncf %178 : vector<24x8xf32> to vector<24x8xbf16>
    %c0_186 = arith.constant 0 : index
    %c0_187 = arith.constant 0 : index
    %c0_188 = arith.constant 0 : index
    %180 = vector.load %arg11[%c0_186, %c0_187, %c0_188] : memref<1x8x32xbf16, #tpu.memory_space<vmem>>, vector<1x8x32xbf16>
    %181 = vector.shape_cast %180 : vector<1x8x32xbf16> to vector<8x32xbf16>
    %cst_189 = arith.constant dense<0.000000e+00> : vector<24x32xf32>
    %182 = tpu.matmul %179, %181, %cst_189 {dimension_numbers = #tpu.dot_dimension_numbers<[1], [0], [0], [1], [0, 0, 1, 1], [], []>} : vector<24x8xbf16>, vector<8x32xbf16>, vector<24x32xf32> -> vector<24x32xf32>
    %c0_190 = arith.constant 0 : index
    %c0_191 = arith.constant 0 : index
    %183 = vector.load %arg12[%c0_190, %c0_191] : memref<1x32xf32, #tpu.memory_space<vmem>>, vector<1x32xf32>
    %184 = vector.broadcast %183 : vector<1x32xf32> to vector<24x32xf32>
    %185 = arith.addf %182, %184 : vector<24x32xf32>
    %186 = arith.addf %185, %123 : vector<24x32xf32>
    %cst_192 = arith.constant 0.000000e+00 : f32
    %187 = vector.broadcast %cst_192 : f32 to vector<24x32xf32>
    %188 = arith.maximumf %186, %187 : vector<24x32xf32>
    %189 = arith.truncf %188 : vector<24x32xf32> to vector<24x32xbf16>
    %c0_193 = arith.constant 0 : index
    %c0_194 = arith.constant 0 : index
    %c0_195 = arith.constant 0 : index
    %190 = vector.load %arg13[%c0_193, %c0_194, %c0_195] : memref<1x32x4xbf16, #tpu.memory_space<vmem>>, vector<1x32x4xbf16>
    %191 = vector.shape_cast %190 : vector<1x32x4xbf16> to vector<32x4xbf16>
    %cst_196 = arith.constant dense<0.000000e+00> : vector<24x4xf32>
    %192 = tpu.matmul %189, %191, %cst_196 {dimension_numbers = #tpu.dot_dimension_numbers<[1], [0], [0], [1], [0, 0, 1, 1], [], []>} : vector<24x32xbf16>, vector<32x4xbf16>, vector<24x4xf32> -> vector<24x4xf32>
    %c0_197 = arith.constant 0 : index
    %c0_198 = arith.constant 0 : index
    %193 = vector.load %arg14[%c0_197, %c0_198] : memref<1x4xf32, #tpu.memory_space<vmem>>, vector<1x4xf32>
    %194 = vector.broadcast %193 : vector<1x4xf32> to vector<24x4xf32>
    %195 = arith.addf %192, %194 : vector<24x4xf32>
    %c0_199 = arith.constant 0 : index
    %c0_200 = arith.constant 0 : index
    %c0_201 = arith.constant 0 : index
    %196 = vector.load %arg15[%c0_199, %c0_200, %c0_201] : memref<1x24x4xf32, #tpu.memory_space<vmem>>, vector<1x24x4xf32>
    %197 = vector.shape_cast %196 : vector<1x24x4xf32> to vector<24x4xf32>
    %198 = vector.shape_cast %195 : vector<24x4xf32> to vector<1x24x4xf32>
    tpu.vector_store %arg15[%c0_199, %c0_200, %c0_201], %198 {strides = array<i32>} : memref<1x24x4xf32, #tpu.memory_space<vmem>>, vector<1x24x4xf32>,
    return
  }
  func.func @transform_0(%arg0: i32) -> (i32, i32, i32) {
    %c0_i32 = arith.constant 0 : i32
    %c0_i32_0 = arith.constant 0 : i32
    %c0_i32_1 = arith.constant 0 : i32
    return %arg0, %c0_i32, %c0_i32_0 : i32, i32, i32
  }
  func.func @transform_1(%arg0: i32) -> (i32, i32) {
    %c0_i32 = arith.constant 0 : i32
    %c0_i32_0 = arith.constant 0 : i32
    %c0_i32_1 = arith.constant 0 : i32
    return %c0_i32, %c0_i32_0 : i32, i32
  }
  func.func @transform_2(%arg0: i32) -> (i32, i32, i32) {
    %c0_i32 = arith.constant 0 : i32
    %c0_i32_0 = arith.constant 0 : i32
    %c0_i32_1 = arith.constant 0 : i32
    %c0_i32_2 = arith.constant 0 : i32
    return %c0_i32, %c0_i32_0, %c0_i32_1 : i32, i32, i32
  }
  func.func @transform_3(%arg0: i32) -> (i32, i32) {
    %c0_i32 = arith.constant 0 : i32
    %c0_i32_0 = arith.constant 0 : i32
    %c0_i32_1 = arith.constant 0 : i32
    return %c0_i32, %c0_i32_0 : i32, i32
  }
  func.func @transform_4(%arg0: i32) -> (i32, i32, i32) {
    %c0_i32 = arith.constant 0 : i32
    %c0_i32_0 = arith.constant 0 : i32
    %c0_i32_1 = arith.constant 0 : i32
    %c0_i32_2 = arith.constant 0 : i32
    return %c0_i32, %c0_i32_0, %c0_i32_1 : i32, i32, i32
  }
  func.func @transform_5(%arg0: i32) -> (i32, i32) {
    %c0_i32 = arith.constant 0 : i32
    %c0_i32_0 = arith.constant 0 : i32
    %c0_i32_1 = arith.constant 0 : i32
    return %c0_i32, %c0_i32_0 : i32, i32
  }
  func.func @transform_6(%arg0: i32) -> (i32, i32, i32) {
    %c0_i32 = arith.constant 0 : i32
    %c0_i32_0 = arith.constant 0 : i32
    %c0_i32_1 = arith.constant 0 : i32
    %c0_i32_2 = arith.constant 0 : i32
    return %c0_i32, %c0_i32_0, %c0_i32_1 : i32, i32, i32
  }
  func.func @transform_7(%arg0: i32) -> (i32, i32) {
    %c0_i32 = arith.constant 0 : i32
    %c0_i32_0 = arith.constant 0 : i32
    %c0_i32_1 = arith.constant 0 : i32
    return %c0_i32, %c0_i32_0 : i32, i32
  }
  func.func @transform_8(%arg0: i32) -> (i32, i32, i32) {
    %c0_i32 = arith.constant 0 : i32
    %c0_i32_0 = arith.constant 0 : i32
    %c0_i32_1 = arith.constant 0 : i32
    %c0_i32_2 = arith.constant 0 : i32
    return %c0_i32, %c0_i32_0, %c0_i32_1 : i32, i32, i32
  }
  func.func @transform_9(%arg0: i32) -> (i32, i32) {
    %c0_i32 = arith.constant 0 : i32
    %c0_i32_0 = arith.constant 0 : i32
    %c0_i32_1 = arith.constant 0 : i32
    return %c0_i32, %c0_i32_0 : i32, i32
  }
  func.func @transform_10(%arg0: i32) -> (i32, i32, i32) {
    %c0_i32 = arith.constant 0 : i32
    %c0_i32_0 = arith.constant 0 : i32
    %c0_i32_1 = arith.constant 0 : i32
    %c0_i32_2 = arith.constant 0 : i32
    return %c0_i32, %c0_i32_0, %c0_i32_1 : i32, i32, i32
  }
  func.func @transform_11(%arg0: i32) -> (i32, i32) {
    %c0_i32 = arith.constant 0 : i32
    %c0_i32_0 = arith.constant 0 : i32
    %c0_i32_1 = arith.constant 0 : i32
    return %c0_i32, %c0_i32_0 : i32, i32
  }
  func.func @transform_12(%arg0: i32) -> (i32, i32, i32) {
    %c0_i32 = arith.constant 0 : i32
    %c0_i32_0 = arith.constant 0 : i32
    %c0_i32_1 = arith.constant 0 : i32
    %c0_i32_2 = arith.constant 0 : i32
    return %c0_i32, %c0_i32_0, %c0_i32_1 : i32, i32, i32
  }
  func.func @transform_13(%arg0: i32) -> (i32, i32) {
    %c0_i32 = arith.constant 0 : i32
    %c0_i32_0 = arith.constant 0 : i32
    %c0_i32_1 = arith.constant 0 : i32
    return %c0_i32, %c0_i32_0 : i32, i32
  }
  func.func @transform_14(%arg0: i32) -> (i32, i32, i32) {
    %c0_i32 = arith.constant 0 : i32
    %c0_i32_0 = arith.constant 0 : i32
    %c0_i32_1 = arith.constant 0 : i32
    return %arg0, %c0_i32, %c0_i32_0 : i32, i32, i32
  }
}

</mosaic_0001>

<llo_original>
// kernel: encoder_forward.4
$region0: #{encoder_forward.4}
  #allocation0 [shape = 'u32[]', space=smem, size = 0x4, offset = 0x4, fixed_abs, tag = 'smem constant byte address 0x4 - core index']
  #allocation1 [shape = 'u32[144,128]{1,0:T(1,128)}', space=vmem, size = 0x12000, scoped, tag = 'internal scratch']
  %s0 = inlined_call_operand.vmem [shape: bf16[2,36,64], index: 0, kind: input, shape index: {}]
  %s1 = inlined_call_operand.vmem [shape: bf16[4,64,32], index: 1, kind: input, shape index: {}]
  %s2 = inlined_call_operand.vmem [shape: f32[1,32], index: 2, kind: input, shape index: {}]
  %s3 = inlined_call_operand.vmem [shape: f32[24,1], index: 3, kind: input, shape index: {}]
  %s4 = inlined_call_operand.vmem [shape: bf16[2,40,32], index: 4, kind: output, shape index: {}]
  %s5 = sld [smem:[#allocation0]]
  $region49: #{encoder_forward.4} parent=0
    _
  %s7 = ssub.s32 1, %s5
  %s8 = scalar_select 0, %s7, %s5
  loop: start=0, step=1, limit=4
  $region2: #{encoder_forward.4} parent=0 // loop_pre_header
    _
  $region3: #{encoder_forward.4} parent=0 // loop_header
    %s10 = sphi 0, %s14
    %p11 = scmp.ge.s32.totalorder %s10, 4
    %s20 = sphi 0, %s22
    %s23 = sphi 0, %s20
    %s24 = sphi 0, %s23
    %s40 = sphi 0, %s24
    %s44 = sphi 0, %s44
    %s46 = sphi 0, %s44
    %s47 = sphi 0, %s46
    %s61 = sphi 0, %s47
    %s65 = sphi 0, %s65
    %s67 = sphi 0, %s65
    %s68 = sphi 0, %s67
    %s82 = sphi 0, %s68
    %s86 = sphi 0, %s86
    %s88 = sphi 0, %s86
    %s89 = sphi 0, %s88
    %s103 = sphi 0, %s89
    %s109 = sphi 0, %s111
    %s112 = sphi 0, %s109
    %s113 = sphi 0, %s112
    %s129 = sphi 0, %s113
  $region4: #{encoder_forward.4} parent=0 // loop_header_branch
    %13 = sbr.rel (%p11) target = $region8
  $region5: #{encoder_forward.4} parent=0 // loop_body
    %s15 = ssub.s32 %s10, 1
    %s16 = ssub.s32 %s10, 2
    %s17 = sadd.s32 %s10, 1
    %s18 = ssub.s32 %s10, %s17
    %p19 = scmp.eq.s32.totalorder %s18, 0
    %s21 = sadd.s32 %s20, 1
    %s22 = scalar_select %p19, %s20, %s21
    %p25 = pneg %p19
    %p26 = scmp.eq.s32.totalorder %s10, 1
    %p27 = por %p25, %p26
    %p28 = scmp.ne.s32.totalorder %s20, %s23
    %p29 = scmp.eq.s32.totalorder %s10, 0
    %p30 = por %p28, %p29
    %p31 = scmp.ne.s32.totalorder %s20, %s23
    %p32 = scmp.eq.s32.totalorder %s15, 1
    %p33 = por %p31, %p32
    %p34 = scmp.ne.s32.totalorder %s23, %s24
    %p35 = scmp.eq.s32.totalorder %s15, 0
    %p36 = por %p34, %p35
    %p37 = scmp.ne.s32.totalorder %s23, %s24
    %p38 = scmp.eq.s32.totalorder %s16, 1
    %p39 = por %p37, %p38
    %p41 = scmp.ne.s32.totalorder %s24, %s40
    %p42 = scmp.eq.s32.totalorder %s16, 0
    %p43 = por %p41, %p42
    %s45 = sadd.s32 %s44, 1
    %p48 = scmp.eq.s32.totalorder %s10, 1
    %p49 = scmp.ne.s32.totalorder %s44, %s46
    %p50 = scmp.eq.s32.totalorder %s10, 0
    %p51 = por %p49, %p50
    %p52 = scmp.ne.s32.totalorder %s44, %s46
    %p53 = scmp.eq.s32.totalorder %s15, 1
    %p54 = por %p52, %p53
    %p55 = scmp.ne.s32.totalorder %s46, %s47
    %p56 = scmp.eq.s32.totalorder %s15, 0
    %p57 = por %p55, %p56
    %p58 = scmp.ne.s32.totalorder %s46, %s47
    %p59 = scmp.eq.s32.totalorder %s16, 1
    %p60 = por %p58, %p59
    %p62 = scmp.ne.s32.totalorder %s47, %s61
    %p63 = scmp.eq.s32.totalorder %s16, 0
    %p64 = por %p62, %p63
    %s66 = sadd.s32 %s65, 1
    %p69 = scmp.eq.s32.totalorder %s10, 1
    %p70 = scmp.ne.s32.totalorder %s65, %s67
    %p71 = scmp.eq.s32.totalorder %s10, 0
    %p72 = por %p70, %p71
    %p73 = scmp.ne.s32.totalorder %s65, %s67
    %p74 = scmp.eq.s32.totalorder %s15, 1
    %p75 = por %p73, %p74
    %p76 = scmp.ne.s32.totalorder %s67, %s68
    %p77 = scmp.eq.s32.totalorder %s15, 0
    %p78 = por %p76, %p77
    %p79 = scmp.ne.s32.totalorder %s67, %s68
    %p80 = scmp.eq.s32.totalorder %s16, 1
    %p81 = por %p79, %p80
    %p83 = scmp.ne.s32.totalorder %s68, %s82
    %p84 = scmp.eq.s32.totalorder %s16, 0
    %p85 = por %p83, %p84
    %s87 = sadd.s32 %s86, 1
    %p90 = scmp.eq.s32.totalorder %s10, 1
    %p91 = scmp.ne.s32.totalorder %s86, %s88
    %p92 = scmp.eq.s32.totalorder %s10, 0
    %p93 = por %p91, %p92
    %p94 = scmp.ne.s32.totalorder %s86, %s88
    %p95 = scmp.eq.s32.totalorder %s15, 1
    %p96 = por %p94, %p95
    %p97 = scmp.ne.s32.totalorder %s88, %s89
    %p98 = scmp.eq.s32.totalorder %s15, 0
    %p99 = por %p97, %p98
    %p100 = scmp.ne.s32.totalorder %s88, %s89
    %p101 = scmp.eq.s32.totalorder %s16, 1
    %p102 = por %p100, %p101
    %p104 = scmp.ne.s32.totalorder %s89, %s103
    %p105 = scmp.eq.s32.totalorder %s16, 0
    %p106 = por %p104, %p105
    %s107 = ssub.s32 %s10, %s17
    %p108 = scmp.eq.s32.totalorder %s107, 0
    %s110 = sadd.s32 %s109, 1
    %s111 = scalar_select %p108, %s109, %s110
    %p114 = pneg %p108
    %p115 = scmp.eq.s32.totalorder %s10, 1
    %p116 = por %p114, %p115
    %p117 = scmp.ne.s32.totalorder %s109, %s112
    %p118 = scmp.eq.s32.totalorder %s10, 0
    %p119 = por %p117, %p118
    %p120 = scmp.ne.s32.totalorder %s109, %s112
    %p121 = scmp.eq.s32.totalorder %s15, 1
    %p122 = por %p120, %p121
    %p123 = scmp.ne.s32.totalorder %s112, %s113
    %p124 = scmp.eq.s32.totalorder %s15, 0
    %p125 = por %p123, %p124
    %p126 = scmp.ne.s32.totalorder %s112, %s113
    %p127 = scmp.eq.s32.totalorder %s16, 1
    %p128 = por %p126, %p127
    %p130 = scmp.ne.s32.totalorder %s113, %s129
    %p131 = scmp.eq.s32.totalorder %s16, 0
    %p132 = por %p130, %p131
    %p133 = scmp.le.s32.totalorder 1, %s10
    %p134 = scmp.lt.s32.totalorder %s10, 3
    %p135 = pnand %p133, %p134
    %p136 = pneg %p135
    // Predicated region
    $region9: #{encoder_forward.4} parent=5 // pred_check
      _
    $region10: #{encoder_forward.4} parent=5 // pred_check_branch
      %138 = sbr.rel (%p135) target = $region12
    $region11: #{encoder_forward.4} parent=5 // pred_region
      %s139 = ssub.s32 %s10, 1
      // Predicated region
      $region13: #{encoder_forward.4} parent=11 // pred_check
        %p140 = pneg %p57
      $region14: #{encoder_forward.4} parent=11 // pred_check_branch
        %142 = sbr.rel (%p140) target = $region16
      $region15: #{encoder_forward.4} parent=11 // pred_region
        _
      $region16: #{encoder_forward.4} parent=11 // pred_fallthru
        _
      // Predicated region
      $region17: #{encoder_forward.4} parent=11 // pred_check
        %p143 = pneg %p78
      $region18: #{encoder_forward.4} parent=11 // pred_check_branch
        %145 = sbr.rel (%p143) target = $region20
      $region19: #{encoder_forward.4} parent=11 // pred_region
        _
      $region20: #{encoder_forward.4} parent=11 // pred_fallthru
        _
      // Predicated region
      $region21: #{encoder_forward.4} parent=11 // pred_check
        %p146 = pneg %p99
      $region22: #{encoder_forward.4} parent=11 // pred_check_branch
        %148 = sbr.rel (%p146) target = $region24
      $region23: #{encoder_forward.4} parent=11 // pred_region
        _
      $region24: #{encoder_forward.4} parent=11 // pred_fallthru
        _
    $region12: #{encoder_forward.4} parent=5 // pred_fallthru
      _
    %p149 = scmp.lt.s32.totalorder %s10, 2
    // Predicated region
    $region25: #{encoder_forward.4} parent=5 // pred_check
      %p150 = pneg %p149
    $region26: #{encoder_forward.4} parent=5 // pred_check_branch
      %152 = sbr.rel (%p150) target = $region28
    $region27: #{encoder_forward.4} parent=5 // pred_region
      // Predicated region
      $region29: #{encoder_forward.4} parent=27 // pred_check
        %p153 = pneg %p30
      $region30: #{encoder_forward.4} parent=27 // pred_check_branch
        %155 = sbr.rel (%p153) target = $region32
      $region31: #{encoder_forward.4} parent=27 // pred_region
        %p156 = scmp.lt.s32.totalorder %s10, 1
        %s157 = scalar_select %p156, %s10, 1
        %s158 = smul.addr %s157, 5
        %s159 = smul.addr %s158, 4
        %s160 = scalar_lea.vmem %s0, %s159
      $region32: #{encoder_forward.4} parent=27 // pred_fallthru
        _
    $region28: #{encoder_forward.4} parent=5 // pred_fallthru
      _
    %p161 = scmp.le.s32.totalorder 1, %s10
    %p162 = scmp.lt.s32.totalorder %s10, 3
    %p163 = pnand %p161, %p162
    %p164 = pneg %p163
    // Predicated region
    $region33: #{encoder_forward.4} parent=5 // pred_check
      _
    $region34: #{encoder_forward.4} parent=5 // pred_check_branch
      %166 = sbr.rel (%p163) target = $region36
    $region35: #{encoder_forward.4} parent=5 // pred_region
      %s167 = ssub.s32 %s10, 1
      %p168 = scmp.lt.s32.totalorder %s15, 1
      %s169 = scalar_select %p168, %s15, 1
      %s170 = smul.addr %s169, 5
      %s171 = smul.addr %s170, 4
      %s172 = scalar_lea.vmem %s0, %s171
      %p173 = pneg %p36
      %p174 = pneg %p33
      %p175 = pneg %p57
      %p176 = pneg %p54
      %p177 = pneg %p78
      %p178 = pneg %p75
      %p179 = pneg %p99
      %p180 = pneg %p96
      %p181 = pneg %p125
      %p182 = pneg %p122
      %p183 = scmp.lt.s32.totalorder %s15, 1
      %s184 = scalar_select %p183, %s15, 1
      %s185 = smul.addr %s184, 5
      %s186 = smul.addr %s185, 4
      %s187 = scalar_lea.vmem %s4, %s186
      %p188 = scmp.lt.s32.totalorder %s15, 1
      %s189 = scalar_select %p188, %s15, 1
      %s190 = smul.addr %s189, 5
      %s191 = smul.addr %s190, 4
      %s192 = scalar_lea.vmem %s0, %s191
      %p193 = scmp.lt.s32.totalorder %s15, 1
      %s194 = scalar_select %p193, %s15, 1
      %s195 = smul.addr %s194, 5
      %s196 = smul.addr %s195, 4
      %s197 = scalar_lea.vmem %s4, %s196
      %v199 = vld [vmem:[%s192] sm:$0xf]
      %v200 = vld [vmem:[%s192 + $0x4] sm:$0xf]
      %v201 = vld [vmem:[%s192 + $0x8] sm:$0xf]
      %v202 = vld [vmem:[%s1] sm:$0xf]
      %v203 = vld [vmem:[%s1 + $0x4] sm:$0xf]
      %v204 = vld [vmem:[%s1 + $0x8] sm:$0xf]
      %v205 = vld [vmem:[%s1 + $0xc] sm:$0xf]
      %v206 = vld [vmem:[%s1 + $0x10] sm:$0xf]
      %v207 = vld [vmem:[%s1 + $0x14] sm:$0xf]
      %v208 = vld [vmem:[%s1 + $0x18] sm:$0xf]
      %v209 = vld [vmem:[%s1 + $0x1c] sm:$0xf]
      %v210 = vld [vmem:[%s192 + $0xc] sm:$0x1]
      %s211 = scalar_lea.vmem %s1, 32
      %v212 = vld [vmem:[%s211] sm:$0xf]
      %v213 = vld [vmem:[%s211 + $0x4] sm:$0xf]
      %v214 = vld [vmem:[%s211 + $0x8] sm:$0xf]
      %v215 = vld [vmem:[%s211 + $0xc] sm:$0xf]
      %v216 = vld [vmem:[%s211 + $0x10] sm:$0xf]
      %v217 = vld [vmem:[%s211 + $0x14] sm:$0xf]
      %v218 = vld [vmem:[%s211 + $0x18] sm:$0xf]
      %v219 = vld [vmem:[%s211 + $0x1c] sm:$0xf]
      %v224 = vunpack.c.l.b16 %v199
      %v225 = vunpack.c.l.b16 %v200
      %v226 = vunpack.c.l.b16 %v201
      %v227 = vunpack.c.l.b16 %v210
      %v228 = vpack.c.b16 %v225, %v224
      %v229 = vpack.c.b16 %v227, %v226
      %vm230 = vsmask.f32 7424
      %v232 = vshrl.u32 %v228, 16
      %v234 = vshll.u32 %v228, 16
      %v236 = vrot.slane %v234, 1
      %v237 = vor.u32 %v232, %v236
      %v239 = vshll.u32 %v229, 16
      %v241 = vrot.slane %v239, 1
      %v242 = vsel %vm230, %v237, %v241
      %v243 = vshrl.u32 %v229, 16
      %v245 = vor.u32 %v243, %v241
      %v254 = vunpack.c.l.b16 %v212
      %v255 = vunpack.c.l.b16 %v213
      %v256 = vunpack.c.l.b16 %v214
      %v257 = vunpack.c.l.b16 %v215
      %v258 = vunpack.c.l.b16 %v216
      %v259 = vunpack.c.l.b16 %v217
      %v260 = vunpack.c.l.b16 %v218
      %v261 = vunpack.c.l.b16 %v219
      %v262 = vpack.c.b16 %v255, %v254
      %v263 = vpack.c.b16 %v257, %v256
      %v264 = vpack.c.b16 %v259, %v258
      %v265 = vpack.c.b16 %v261, %v260
      %vm270 = vcmask 523264
      %v272 = vsel %vm270, %v242, 0
      %v275 = vsel %vm270, %v245, 0
      %277 = vmatprep.subr.bf16.mxu0 0
      %278 = vmatpush1.bf16.msra.mxu0 %v262
      %279 = vmatprep.subr.bf16.mxu0 0
      %280 = vmatpush1.bf16.msra.mxu0 %v263
      %281 = vmatprep.subr.bf16.mxu0 0
      %282 = vmatpush1.bf16.msra.mxu0 %v264
      %283 = vmatprep.subr.bf16.mxu0 0
      %284 = vmatpush1.bf16.msra.mxu0 %v265
      %285 = vmatprep.subr.bf16.mxu0 0
      %286 = vmatpush1.bf16.msra.mxu0 0
      %287 = vmatprep.subr.bf16.mxu0 0
      %288 = vmatpush1.bf16.msra.mxu0 0
      %289 = vmatprep.subr.bf16.mxu0 0
      %290 = vmatpush1.bf16.msra.mxu0 0
      %291 = vmatprep.subr.bf16.mxu0 0
      %292 = vmatpush1.bf16.msra.mxu0 0
      %293 = vmatprep.subr.bf16.mxu0 0
      %294 = vmatpush1.bf16.msra.mxu0 0
      %295 = vmatprep.subr.bf16.mxu0 0
      %296 = vmatpush1.bf16.msra.mxu0 0
      %297 = vmatprep.subr.bf16.mxu0 0
      %298 = vmatpush1.bf16.msra.mxu0 0
      %299 = vmatprep.subr.bf16.mxu0 0
      %300 = vmatpush1.bf16.msra.mxu0 0
      %301 = vmatprep.subr.bf16.mxu0 0
      %302 = vmatpush1.bf16.msra.mxu0 0
      %303 = vmatprep.subr.bf16.mxu0 0
      %304 = vmatpush1.bf16.msra.mxu0 0
      %305 = vmatprep.subr.bf16.mxu0 0
      %306 = vmatpush1.bf16.msra.mxu0 0
      %307 = vmatprep.subr.bf16.mxu0 0
      %308 = vmatpush1.bf16.msra.mxu0 0
      %309 = vmatprep.mubr.bf16.mxu0 0
      %310 = vmatmul.mubr.bf16.gmra.mrb[0].mxu0 %v272
      %v311 = vpop.f32.mrb[0].mxu0
      %v312 = vadd.f32 0.0, %v311
      %v313 = vpop.f32.mrb[0].mxu0
      %v314 = vpop.f32.mrb[0].mxu0
      %v315 = vadd.f32 0.0, %v314
      %v316 = vpop.f32.mrb[0].mxu0
      %317 = vmatprep.mubr.bf16.mxu0 0
      %318 = vmatmul.mubr.bf16.gmra.mrb[0].mxu0 %v275
      %v319 = vpop.f32.mrb[0].mxu0
      %v320 = vadd.f32 0.0, %v319
      %v321 = vpop.f32.mrb[0].mxu0
      %v322 = vpop.f32.mrb[0].mxu0
      %v323 = vpop.f32.mrb[0].mxu0
      %324 = vdwg.mxu0
      %v325 = vpack.c.b16 %v226, %v226
      %v334 = vunpack.c.l.b16 %v202
      %v335 = vunpack.c.l.b16 %v203
      %v336 = vunpack.c.l.b16 %v204
      %v337 = vunpack.c.l.b16 %v205
      %v338 = vunpack.c.l.b16 %v206
      %v339 = vunpack.c.l.b16 %v207
      %v340 = vunpack.c.l.b16 %v208
      %v341 = vunpack.c.l.b16 %v209
      %v342 = vpack.c.b16 %v335, %v334
      %v343 = vpack.c.b16 %v337, %v336
      %v344 = vpack.c.b16 %v339, %v338
      %v345 = vpack.c.b16 %v341, %v340
      %v350 = vsel %vm270, %v228, 0
      %v353 = vsel %vm270, %v325, 0
      %355 = vmatprep.subr.bf16.mxu0 0
      %356 = vmatpush1.bf16.msra.mxu0 %v342
      %357 = vmatprep.subr.bf16.mxu0 0
      %358 = vmatpush1.bf16.msra.mxu0 %v343
      %359 = vmatprep.subr.bf16.mxu0 0
      %360 = vmatpush1.bf16.msra.mxu0 %v344
      %361 = vmatprep.subr.bf16.mxu0 0
      %362 = vmatpush1.bf16.msra.mxu0 %v345
      %363 = vmatprep.subr.bf16.mxu0 0
      %364 = vmatpush1.bf16.msra.mxu0 0
      %365 = vmatprep.subr.bf16.mxu0 0
      %366 = vmatpush1.bf16.msra.mxu0 0
      %367 = vmatprep.subr.bf16.mxu0 0
      %368 = vmatpush1.bf16.msra.mxu0 0
      %369 = vmatprep.subr.bf16.mxu0 0
      %370 = vmatpush1.bf16.msra.mxu0 0
      %371 = vmatprep.subr.bf16.mxu0 0
      %372 = vmatpush1.bf16.msra.mxu0 0
      %373 = vmatprep.subr.bf16.mxu0 0
      %374 = vmatpush1.bf16.msra.mxu0 0
      %375 = vmatprep.subr.bf16.mxu0 0
      %376 = vmatpush1.bf16.msra.mxu0 0
      %377 = vmatprep.subr.bf16.mxu0 0
      %378 = vmatpush1.bf16.msra.mxu0 0
      %379 = vmatprep.subr.bf16.mxu0 0
      %380 = vmatpush1.bf16.msra.mxu0 0
      %381 = vmatprep.subr.bf16.mxu0 0
      %382 = vmatpush1.bf16.msra.mxu0 0
      %383 = vmatprep.subr.bf16.mxu0 0
      %384 = vmatpush1.bf16.msra.mxu0 0
      %385 = vmatprep.subr.bf16.mxu0 0
      %386 = vmatpush1.bf16.msra.mxu0 0
      %387 = vmatprep.mubr.bf16.mxu0 0
      %388 = vmatmul.mubr.bf16.gmra.mrb[0].mxu0 %v350
      %v389 = vpop.f32.mrb[0].mxu0
      %v390 = vadd.f32 %v312, %v389
      %v391 = vpop.f32.mrb[0].mxu0
      %v392 = vpop.f32.mrb[0].mxu0
      %v393 = vadd.f32 %v315, %v392
      %v394 = vpop.f32.mrb[0].mxu0
      %395 = vmatprep.mubr.bf16.mxu0 0
      %396 = vmatmul.mubr.bf16.gmra.mrb[0].mxu0 %v353
      %v397 = vpop.f32.mrb[0].mxu0
      %v398 = vadd.f32 %v320, %v397
      %v399 = vpop.f32.mrb[0].mxu0
      %v400 = vpop.f32.mrb[0].mxu0
      %v401 = vpop.f32.mrb[0].mxu0
      %402 = vdwg.mxu0
      %v403 = vld [vmem:[%s192] sm:$0x8]
      %v404 = vld [vmem:[%s192 + $0xc] sm:$0x7]
      %s405 = scalar_lea.vmem %s1, 64
      %v406 = vld [vmem:[%s405] sm:$0xf]
      %v407 = vld [vmem:[%s405 + $0x4] sm:$0xf]
      %v408 = vld [vmem:[%s405 + $0x8] sm:$0xf]
      %v409 = vld [vmem:[%s405 + $0xc] sm:$0xf]
      %v410 = vld [vmem:[%s405 + $0x10] sm:$0xf]
      %v411 = vld [vmem:[%s405 + $0x14] sm:$0xf]
      %v412 = vld [vmem:[%s405 + $0x18] sm:$0xf]
      %v413 = vld [vmem:[%s405 + $0x1c] sm:$0xf]
      %v416 = vunpack.c.l.b16 %v403
      %v417 = vunpack.c.l.b16 %v404
      %v418 = vpack.c.b16 %v225, %v416
      %v419 = vpack.c.b16 %v417, %v226
      %vm420 = vcmask 1044480
      %v421 = vrot.slane %v418, 3
      %v422 = vrot.slane %v419, 3
      %v423 = vsel %vm420, %v421, %v422
      %v432 = vunpack.c.l.b16 %v406
      %v433 = vunpack.c.l.b16 %v407
      %v434 = vunpack.c.l.b16 %v408
      %v435 = vunpack.c.l.b16 %v409
      %v436 = vunpack.c.l.b16 %v410
      %v437 = vunpack.c.l.b16 %v411
      %v438 = vunpack.c.l.b16 %v412
      %v439 = vunpack.c.l.b16 %v413
      %v440 = vpack.c.b16 %v433, %v432
      %v441 = vpack.c.b16 %v435, %v434
      %v442 = vpack.c.b16 %v437, %v436
      %v443 = vpack.c.b16 %v439, %v438
      %v449 = vsel %vm270, %v423, 0
      %v452 = vsel %vm270, %v422, 0
      %454 = vmatprep.subr.bf16.mxu0 0
      %455 = vmatpush1.bf16.msra.mxu0 %v440
      %456 = vmatprep.subr.bf16.mxu0 0
      %457 = vmatpush1.bf16.msra.mxu0 %v441
      %458 = vmatprep.subr.bf16.mxu0 0
      %459 = vmatpush1.bf16.msra.mxu0 %v442
      %460 = vmatprep.subr.bf16.mxu0 0
      %461 = vmatpush1.bf16.msra.mxu0 %v443
      %462 = vmatprep.subr.bf16.mxu0 0
      %463 = vmatpush1.bf16.msra.mxu0 0
      %464 = vmatprep.subr.bf16.mxu0 0
      %465 = vmatpush1.bf16.msra.mxu0 0
      %466 = vmatprep.subr.bf16.mxu0 0
      %467 = vmatpush1.bf16.msra.mxu0 0
      %468 = vmatprep.subr.bf16.mxu0 0
      %469 = vmatpush1.bf16.msra.mxu0 0
      %470 = vmatprep.subr.bf16.mxu0 0
      %471 = vmatpush1.bf16.msra.mxu0 0
      %472 = vmatprep.subr.bf16.mxu0 0
      %473 = vmatpush1.bf16.msra.mxu0 0
      %474 = vmatprep.subr.bf16.mxu0 0
      %475 = vmatpush1.bf16.msra.mxu0 0
      %476 = vmatprep.subr.bf16.mxu0 0
      %477 = vmatpush1.bf16.msra.mxu0 0
      %478 = vmatprep.subr.bf16.mxu0 0
      %479 = vmatpush1.bf16.msra.mxu0 0
      %480 = vmatprep.subr.bf16.mxu0 0
      %481 = vmatpush1.bf16.msra.mxu0 0
      %482 = vmatprep.subr.bf16.mxu0 0
      %483 = vmatpush1.bf16.msra.mxu0 0
      %484 = vmatprep.subr.bf16.mxu0 0
      %485 = vmatpush1.bf16.msra.mxu0 0
      %486 = vmatprep.mubr.bf16.mxu0 0
      %487 = vmatmul.mubr.bf16.gmra.mrb[0].mxu0 %v449
      %v488 = vpop.f32.mrb[0].mxu0
      %v489 = vadd.f32 0.0, %v488
      %v490 = vpop.f32.mrb[0].mxu0
      %v491 = vpop.f32.mrb[0].mxu0
      %v492 = vadd.f32 0.0, %v491
      %v493 = vpop.f32.mrb[0].mxu0
      %494 = vmatprep.mubr.bf16.mxu0 0
      %495 = vmatmul.mubr.bf16.gmra.mrb[0].mxu0 %v452
      %v496 = vpop.f32.mrb[0].mxu0
      %v497 = vadd.f32 0.0, %v496
      %v498 = vpop.f32.mrb[0].mxu0
      %v499 = vpop.f32.mrb[0].mxu0
      %v500 = vpop.f32.mrb[0].mxu0
      %501 = vdwg.mxu0
      %v502 = vadd.f32 %v390, %v489
      %v503 = vadd.f32 %v393, %v492
      %v504 = vadd.f32 %v398, %v497
      %v505 = vld [vmem:[%s192 + $0xc] sm:$0xf]
      %s506 = scalar_lea.vmem %s1, 96
      %v507 = vld [vmem:[%s506] sm:$0xf]
      %v508 = vld [vmem:[%s506 + $0x4] sm:$0xf]
      %v509 = vld [vmem:[%s506 + $0x8] sm:$0xf]
      %v510 = vld [vmem:[%s506 + $0xc] sm:$0xf]
      %v511 = vld [vmem:[%s506 + $0x10] sm:$0xf]
      %v512 = vld [vmem:[%s506 + $0x14] sm:$0xf]
      %v513 = vld [vmem:[%s506 + $0x18] sm:$0xf]
      %v514 = vld [vmem:[%s506 + $0x1c] sm:$0xf]
      %v516 = vunpack.c.l.b16 %v505
      %v517 = vpack.c.b16 %v516, %v226
      %vm518 = vsmask.f32 4352
      %v520 = vshrl.u32 %v418, 16
      %v522 = vrot.slane %v520, 3
      %v523 = vshll.u32 %v418, 16
      %v525 = vrot.slane %v523, 4
      %v526 = vor.u32 %v522, %v525
      %v528 = vshrl.u32 %v517, 16
      %v530 = vrot.slane %v528, 3
      %v531 = vshll.u32 %v517, 16
      %v533 = vrot.slane %v531, 4
      %v534 = vor.u32 %v530, %v533
      %v535 = vsel %vm518, %v526, %v534
      %v544 = vunpack.c.l.b16 %v507
      %v545 = vunpack.c.l.b16 %v508
      %v546 = vunpack.c.l.b16 %v509
      %v547 = vunpack.c.l.b16 %v510
      %v548 = vunpack.c.l.b16 %v511
      %v549 = vunpack.c.l.b16 %v512
      %v550 = vunpack.c.l.b16 %v513
      %v551 = vunpack.c.l.b16 %v514
      %v552 = vpack.c.b16 %v545, %v544
      %v553 = vpack.c.b16 %v547, %v546
      %v554 = vpack.c.b16 %v549, %v548
      %v555 = vpack.c.b16 %v551, %v550
      %v561 = vsel %vm270, %v535, 0
      %v564 = vsel %vm270, %v534, 0
      %566 = vmatprep.subr.bf16.mxu0 0
      %567 = vmatpush1.bf16.msra.mxu0 %v552
      %568 = vmatprep.subr.bf16.mxu0 0
      %569 = vmatpush1.bf16.msra.mxu0 %v553
      %570 = vmatprep.subr.bf16.mxu0 0
      %571 = vmatpush1.bf16.msra.mxu0 %v554
      %572 = vmatprep.subr.bf16.mxu0 0
      %573 = vmatpush1.bf16.msra.mxu0 %v555
      %574 = vmatprep.subr.bf16.mxu0 0
      %575 = vmatpush1.bf16.msra.mxu0 0
      %576 = vmatprep.subr.bf16.mxu0 0
      %577 = vmatpush1.bf16.msra.mxu0 0
      %578 = vmatprep.subr.bf16.mxu0 0
      %579 = vmatpush1.bf16.msra.mxu0 0
      %580 = vmatprep.subr.bf16.mxu0 0
      %581 = vmatpush1.bf16.msra.mxu0 0
      %582 = vmatprep.subr.bf16.mxu0 0
      %583 = vmatpush1.bf16.msra.mxu0 0
      %584 = vmatprep.subr.bf16.mxu0 0
      %585 = vmatpush1.bf16.msra.mxu0 0
      %586 = vmatprep.subr.bf16.mxu0 0
      %587 = vmatpush1.bf16.msra.mxu0 0
      %588 = vmatprep.subr.bf16.mxu0 0
      %589 = vmatpush1.bf16.msra.mxu0 0
      %590 = vmatprep.subr.bf16.mxu0 0
      %591 = vmatpush1.bf16.msra.mxu0 0
      %592 = vmatprep.subr.bf16.mxu0 0
      %593 = vmatpush1.bf16.msra.mxu0 0
      %594 = vmatprep.subr.bf16.mxu0 0
      %595 = vmatpush1.bf16.msra.mxu0 0
      %596 = vmatprep.subr.bf16.mxu0 0
      %597 = vmatpush1.bf16.msra.mxu0 0
      %598 = vmatprep.mubr.bf16.mxu0 0
      %599 = vmatmul.mubr.bf16.gmra.mrb[0].mxu0 %v561
      %v600 = vpop.f32.mrb[0].mxu0
      %v601 = vadd.f32 0.0, %v600
      %v602 = vpop.f32.mrb[0].mxu0
      %v603 = vpop.f32.mrb[0].mxu0
      %v604 = vadd.f32 0.0, %v603
      %v605 = vpop.f32.mrb[0].mxu0
      %606 = vmatprep.mubr.bf16.mxu0 0
      %607 = vmatmul.mubr.bf16.gmra.mrb[0].mxu0 %v564
      %v608 = vpop.f32.mrb[0].mxu0
      %v609 = vadd.f32 0.0, %v608
      %v610 = vpop.f32.mrb[0].mxu0
      %v611 = vpop.f32.mrb[0].mxu0
      %v612 = vpop.f32.mrb[0].mxu0
      %613 = vdwg.mxu0
      %v614 = vadd.f32 %v502, %v601
      %v615 = vadd.f32 %v503, %v604
      %v616 = vadd.f32 %v504, %v609
      %v617 = vld [vmem:[%s2] sm:$0x1]
      %v619 = vlaneseq
      %v620 = vshrl.u32 %v619, 7
      %v621 = vsub.s32 0, %v620
      %v622 = vrot.slane %v617, %v621
      %v624 = vadd.f32 %v614, %v622
      %v625 = vadd.f32 %v615, %v622
      %v626 = vadd.f32 %v616, %v622
      %v627 = vmax.f32 %v624, 0.0
      %v628 = vmax.f32 %v625, 0.0
      %v629 = vmax.f32 %v626, 0.0
      %v630 = vld [vmem:[%s3] sm:$0xff]
      %v631 = vld [vmem:[%s3 + $0x8] sm:$0xff]
      %v632 = vld [vmem:[%s3 + $0x10] sm:$0xff]
      %634 = vset.pattern.permute.xlu0 0
      %635 = vperm.xlu0 %634, %v630
      %v636 = vpop.permute.xlu0 %635
      %639 = vset.pattern.permute.xlu0 0
      %640 = vperm.xlu0 %639, %v631
      %v641 = vpop.permute.xlu0 %640
      %644 = vset.pattern.permute.xlu0 0
      %645 = vperm.xlu0 %644, %v632
      %v646 = vpop.permute.xlu0 %645
      %v648 = vmul.f32 %v627, %v636
      %v649 = vmul.f32 %v628, %v641
      %v650 = vmul.f32 %v629, %v646
      %vm651 = vcmask 257024
      %652 = vst.msk [vmem:[%s197] sm:$0xf] %vm651, 0
      %653 = vst.msk [vmem:[%s197 + $0x4] sm:$0xf] %vm651, 0
      %654 = vst.msk [vmem:[%s197 + $0x8] sm:$0xf] %vm651, 0
      %655 = vst.msk [vmem:[%s197 + $0xc] sm:$0xf] %vm651, 0
      %656 = vst.msk [vmem:[%s197 + $0x10] sm:$0xf] %vm651, 0
      %v657 = vpack.c.bf16 %v649, %v648
      %v658 = vpack.c.bf16 %v650, %v650
      %v661 = vunpack.c.l.b16 %v657
      %v662 = vunpack.c.h.b16 %v657
      %v663 = vunpack.c.l.b16 %v658
      %v664 = vpack.c.b16 %v661, %v661
      %v665 = vpack.c.b16 %v662, %v662
      %v666 = vpack.c.b16 %v663, %v663
      %vm667 = vsmask.f32 3328
      %vm668 = vsmask.f32 7440
      %vm669 = vmor %vm667, %vm668
      %v671 = vshll.u32 %v664, 16
      %v673 = vrot.slane %v671, 5
      %v674 = vshrl.u32 %v664, 16
      %v676 = vrot.slane %v674, 4
      %v677 = vor.u32 %v676, %v673
      %v678 = vrot.slane %v677, 4
      %v680 = vshll.u32 %v665, 16
      %v682 = vrot.slane %v680, 5
      %v683 = vsel %vm669, %v678, %v682
      %v684 = vshrl.u32 %v665, 16
      %v686 = vrot.slane %v684, 4
      %v687 = vor.u32 %v686, %v682
      %v688 = vrot.slane %v687, 4
      %v690 = vshll.u32 %v666, 16
      %v692 = vrot.slane %v690, 5
      %v693 = vsel %vm669, %v688, %v692
      %v694 = vshrl.u32 %v666, 16
      %v696 = vrot.slane %v694, 4
      %v697 = vor.u32 %v696, %v692
      %v698 = vrot.slane %v697, 4
      %vm703 = vcmask 257027
      %vm704 = vsmask.f32 7950
      %vm705 = vmand %vm703, %vm704
      %v706 = vld [vmem:[%s197] sm:$0x8]
      %v707 = vsel %vm705, %v673, %v706
      %708 = vst [vmem:[%s197] sm:$0x8] %v707
      %709 = vst.msk [vmem:[%s197 + $0x4] sm:$0xf] %vm651, %v683
      %710 = vst.msk [vmem:[%s197 + $0x8] sm:$0xf] %vm651, %v693
      %vm711 = vcmask 257024
      %vm712 = vmand %vm711, %vm667
      %v713 = vld [vmem:[%s197 + $0xc] sm:$0xf]
      %v714 = vsel %vm712, %v698, %v713
      %715 = vst [vmem:[%s197 + $0xc] sm:$0xf] %v714
      %p716 = scmp.lt.s32.totalorder %s15, 1
      %s717 = scalar_select %p716, %s15, 1
      %s718 = smul.addr %s717, 5
      %s719 = smul.addr %s718, 4
      %s720 = scalar_lea.vmem %s4, %s719
      // Predicated region
      $region37: #{encoder_forward.4} parent=35 // pred_check
        %p721 = pneg %p122
      $region38: #{encoder_forward.4} parent=35 // pred_check_branch
        %723 = sbr.rel (%p721) target = $region40
      $region39: #{encoder_forward.4} parent=35 // pred_region
        _
      $region40: #{encoder_forward.4} parent=35 // pred_fallthru
        _
    $region36: #{encoder_forward.4} parent=5 // pred_fallthru
      _
    %p724 = scmp.le.s32.totalorder 2, %s10
    // Predicated region
    $region41: #{encoder_forward.4} parent=5 // pred_check
      %p725 = pneg %p724
    $region42: #{encoder_forward.4} parent=5 // pred_check_branch
      %727 = sbr.rel (%p725) target = $region44
    $region43: #{encoder_forward.4} parent=5 // pred_region
      %s728 = ssub.s32 %s10, 2
      // Predicated region
      $region45: #{encoder_forward.4} parent=43 // pred_check
        %p729 = pneg %p128
      $region46: #{encoder_forward.4} parent=43 // pred_check_branch
        %731 = sbr.rel (%p729) target = $region48
      $region47: #{encoder_forward.4} parent=43 // pred_region
        %p732 = scmp.lt.s32.totalorder %s16, 1
        %s733 = scalar_select %p732, %s16, 1
        %s734 = smul.addr %s733, 5
        %s735 = smul.addr %s734, 4
        %s736 = scalar_lea.vmem %s4, %s735
      $region48: #{encoder_forward.4} parent=43 // pred_fallthru
        _
    $region44: #{encoder_forward.4} parent=5 // pred_fallthru
      _
  $region6: #{encoder_forward.4} parent=0 // loop_footer
    %s14 = sadd.s32 1, %s10
  $region7: #{encoder_forward.4} parent=0 // loop_footer_branch
    %9 = sbr.rel target = $region3
  $region8: #{encoder_forward.4} parent=0 // loop_exit
    _

// kernel: encoder_forward.3
$region0: #{encoder_forward.3}
  #allocation0 [shape = 'u32[]', space=smem, size = 0x4, offset = 0x4, fixed_abs, tag = 'smem constant byte address 0x4 - core index']
  #allocation1 [shape = 'u32[144,128]{1,0:T(1,128)}', space=vmem, size = 0x12000, scoped, tag = 'internal scratch']
  %s0 = inlined_call_operand.vmem [shape: bf16[2,120,16], index: 0, kind: input, shape index: {}]
  %s1 = inlined_call_operand.vmem [shape: bf16[4,16,16], index: 1, kind: input, shape index: {}]
  %s2 = inlined_call_operand.vmem [shape: f32[1,16], index: 2, kind: input, shape index: {}]
  %s3 = inlined_call_operand.vmem [shape: f32[96,1], index: 3, kind: input, shape index: {}]
  %s4 = inlined_call_operand.vmem [shape: bf16[2,144,16], index: 4, kind: output, shape index: {}]
  %s5 = sld [smem:[#allocation0]]
  $region49: #{encoder_forward.3} parent=0
    _
  %s7 = ssub.s32 1, %s5
  %s8 = scalar_select 0, %s7, %s5
  loop: start=0, step=1, limit=4
  $region2: #{encoder_forward.3} parent=0 // loop_pre_header
    _
  $region3: #{encoder_forward.3} parent=0 // loop_header
    %s10 = sphi 0, %s14
    %p11 = scmp.ge.s32.totalorder %s10, 4
    %s20 = sphi 0, %s22
    %s23 = sphi 0, %s20
    %s24 = sphi 0, %s23
    %s40 = sphi 0, %s24
    %s44 = sphi 0, %s44
    %s46 = sphi 0, %s44
    %s47 = sphi 0, %s46
    %s61 = sphi 0, %s47
    %s65 = sphi 0, %s65
    %s67 = sphi 0, %s65
    %s68 = sphi 0, %s67
    %s82 = sphi 0, %s68
    %s86 = sphi 0, %s86
    %s88 = sphi 0, %s86
    %s89 = sphi 0, %s88
    %s103 = sphi 0, %s89
    %s109 = sphi 0, %s111
    %s112 = sphi 0, %s109
    %s113 = sphi 0, %s112
    %s129 = sphi 0, %s113
  $region4: #{encoder_forward.3} parent=0 // loop_header_branch
    %13 = sbr.rel (%p11) target = $region8
  $region5: #{encoder_forward.3} parent=0 // loop_body
    %s15 = ssub.s32 %s10, 1
    %s16 = ssub.s32 %s10, 2
    %s17 = sadd.s32 %s10, 1
    %s18 = ssub.s32 %s10, %s17
    %p19 = scmp.eq.s32.totalorder %s18, 0
    %s21 = sadd.s32 %s20, 1
    %s22 = scalar_select %p19, %s20, %s21
    %p25 = pneg %p19
    %p26 = scmp.eq.s32.totalorder %s10, 1
    %p27 = por %p25, %p26
    %p28 = scmp.ne.s32.totalorder %s20, %s23
    %p29 = scmp.eq.s32.totalorder %s10, 0
    %p30 = por %p28, %p29
    %p31 = scmp.ne.s32.totalorder %s20, %s23
    %p32 = scmp.eq.s32.totalorder %s15, 1
    %p33 = por %p31, %p32
    %p34 = scmp.ne.s32.totalorder %s23, %s24
    %p35 = scmp.eq.s32.totalorder %s15, 0
    %p36 = por %p34, %p35
    %p37 = scmp.ne.s32.totalorder %s23, %s24
    %p38 = scmp.eq.s32.totalorder %s16, 1
    %p39 = por %p37, %p38
    %p41 = scmp.ne.s32.totalorder %s24, %s40
    %p42 = scmp.eq.s32.totalorder %s16, 0
    %p43 = por %p41, %p42
    %s45 = sadd.s32 %s44, 1
    %p48 = scmp.eq.s32.totalorder %s10, 1
    %p49 = scmp.ne.s32.totalorder %s44, %s46
    %p50 = scmp.eq.s32.totalorder %s10, 0
    %p51 = por %p49, %p50
    %p52 = scmp.ne.s32.totalorder %s44, %s46
    %p53 = scmp.eq.s32.totalorder %s15, 1
    %p54 = por %p52, %p53
    %p55 = scmp.ne.s32.totalorder %s46, %s47
    %p56 = scmp.eq.s32.totalorder %s15, 0
    %p57 = por %p55, %p56
    %p58 = scmp.ne.s32.totalorder %s46, %s47
    %p59 = scmp.eq.s32.totalorder %s16, 1
    %p60 = por %p58, %p59
    %p62 = scmp.ne.s32.totalorder %s47, %s61
    %p63 = scmp.eq.s32.totalorder %s16, 0
    %p64 = por %p62, %p63
    %s66 = sadd.s32 %s65, 1
    %p69 = scmp.eq.s32.totalorder %s10, 1
    %p70 = scmp.ne.s32.totalorder %s65, %s67
    %p71 = scmp.eq.s32.totalorder %s10, 0
    %p72 = por %p70, %p71
    %p73 = scmp.ne.s32.totalorder %s65, %s67
    %p74 = scmp.eq.s32.totalorder %s15, 1
    %p75 = por %p73, %p74
    %p76 = scmp.ne.s32.totalorder %s67, %s68
    %p77 = scmp.eq.s32.totalorder %s15, 0
    %p78 = por %p76, %p77
    %p79 = scmp.ne.s32.totalorder %s67, %s68
    %p80 = scmp.eq.s32.totalorder %s16, 1
    %p81 = por %p79, %p80
    %p83 = scmp.ne.s32.totalorder %s68, %s82
    %p84 = scmp.eq.s32.totalorder %s16, 0
    %p85 = por %p83, %p84
    %s87 = sadd.s32 %s86, 1
    %p90 = scmp.eq.s32.totalorder %s10, 1
    %p91 = scmp.ne.s32.totalorder %s86, %s88
    %p92 = scmp.eq.s32.totalorder %s10, 0
    %p93 = por %p91, %p92
    %p94 = scmp.ne.s32.totalorder %s86, %s88
    %p95 = scmp.eq.s32.totalorder %s15, 1
    %p96 = por %p94, %p95
    %p97 = scmp.ne.s32.totalorder %s88, %s89
    %p98 = scmp.eq.s32.totalorder %s15, 0
    %p99 = por %p97, %p98
    %p100 = scmp.ne.s32.totalorder %s88, %s89
    %p101 = scmp.eq.s32.totalorder %s16, 1
    %p102 = por %p100, %p101
    %p104 = scmp.ne.s32.totalorder %s89, %s103
    %p105 = scmp.eq.s32.totalorder %s16, 0
    %p106 = por %p104, %p105
    %s107 = ssub.s32 %s10, %s17
    %p108 = scmp.eq.s32.totalorder %s107, 0
    %s110 = sadd.s32 %s109, 1
    %s111 = scalar_select %p108, %s109, %s110
    %p114 = pneg %p108
    %p115 = scmp.eq.s32.totalorder %s10, 1
    %p116 = por %p114, %p115
    %p117 = scmp.ne.s32.totalorder %s109, %s112
    %p118 = scmp.eq.s32.totalorder %s10, 0
    %p119 = por %p117, %p118
    %p120 = scmp.ne.s32.totalorder %s109, %s112
    %p121 = scmp.eq.s32.totalorder %s15, 1
    %p122 = por %p120, %p121
    %p123 = scmp.ne.s32.totalorder %s112, %s113
    %p124 = scmp.eq.s32.totalorder %s15, 0
    %p125 = por %p123, %p124
    %p126 = scmp.ne.s32.totalorder %s112, %s113
    %p127 = scmp.eq.s32.totalorder %s16, 1
    %p128 = por %p126, %p127
    %p130 = scmp.ne.s32.totalorder %s113, %s129
    %p131 = scmp.eq.s32.totalorder %s16, 0
    %p132 = por %p130, %p131
    %p133 = scmp.le.s32.totalorder 1, %s10
    %p134 = scmp.lt.s32.totalorder %s10, 3
    %p135 = pnand %p133, %p134
    %p136 = pneg %p135
    // Predicated region
    $region9: #{encoder_forward.3} parent=5 // pred_check
      _
    $region10: #{encoder_forward.3} parent=5 // pred_check_branch
      %138 = sbr.rel (%p135) target = $region12
    $region11: #{encoder_forward.3} parent=5 // pred_region
      %s139 = ssub.s32 %s10, 1
      // Predicated region
      $region13: #{encoder_forward.3} parent=11 // pred_check
        %p140 = pneg %p57
      $region14: #{encoder_forward.3} parent=11 // pred_check_branch
        %142 = sbr.rel (%p140) target = $region16
      $region15: #{encoder_forward.3} parent=11 // pred_region
        _
      $region16: #{encoder_forward.3} parent=11 // pred_fallthru
        _
      // Predicated region
      $region17: #{encoder_forward.3} parent=11 // pred_check
        %p143 = pneg %p78
      $region18: #{encoder_forward.3} parent=11 // pred_check_branch
        %145 = sbr.rel (%p143) target = $region20
      $region19: #{encoder_forward.3} parent=11 // pred_region
        _
      $region20: #{encoder_forward.3} parent=11 // pred_fallthru
        _
      // Predicated region
      $region21: #{encoder_forward.3} parent=11 // pred_check
        %p146 = pneg %p99
      $region22: #{encoder_forward.3} parent=11 // pred_check_branch
        %148 = sbr.rel (%p146) target = $region24
      $region23: #{encoder_forward.3} parent=11 // pred_region
        _
      $region24: #{encoder_forward.3} parent=11 // pred_fallthru
        _
    $region12: #{encoder_forward.3} parent=5 // pred_fallthru
      _
    %p149 = scmp.lt.s32.totalorder %s10, 2
    // Predicated region
    $region25: #{encoder_forward.3} parent=5 // pred_check
      %p150 = pneg %p149
    $region26: #{encoder_forward.3} parent=5 // pred_check_branch
      %152 = sbr.rel (%p150) target = $region28
    $region27: #{encoder_forward.3} parent=5 // pred_region
      // Predicated region
      $region29: #{encoder_forward.3} parent=27 // pred_check
        %p153 = pneg %p30
      $region30: #{encoder_forward.3} parent=27 // pred_check_branch
        %155 = sbr.rel (%p153) target = $region32
      $region31: #{encoder_forward.3} parent=27 // pred_region
        %p156 = scmp.lt.s32.totalorder %s10, 1
        %s157 = scalar_select %p156, %s10, 1
        %s158 = smul.addr %s157, 15
        %s159 = smul.addr %s158, 4
        %s160 = scalar_lea.vmem %s0, %s159
      $region32: #{encoder_forward.3} parent=27 // pred_fallthru
        _
    $region28: #{encoder_forward.3} parent=5 // pred_fallthru
      _
    %p161 = scmp.le.s32.totalorder 1, %s10
    %p162 = scmp.lt.s32.totalorder %s10, 3
    %p163 = pnand %p161, %p162
    %p164 = pneg %p163
    // Predicated region
    $region33: #{encoder_forward.3} parent=5 // pred_check
      _
    $region34: #{encoder_forward.3} parent=5 // pred_check_branch
      %166 = sbr.rel (%p163) target = $region36
    $region35: #{encoder_forward.3} parent=5 // pred_region
      %s167 = ssub.s32 %s10, 1
      %p168 = scmp.lt.s32.totalorder %s15, 1
      %s169 = scalar_select %p168, %s15, 1
      %s170 = smul.addr %s169, 15
      %s171 = smul.addr %s170, 4
      %s172 = scalar_lea.vmem %s0, %s171
      %p173 = pneg %p36
      %p174 = pneg %p33
      %p175 = pneg %p57
      %p176 = pneg %p54
      %p177 = pneg %p78
      %p178 = pneg %p75
      %p179 = pneg %p99
      %p180 = pneg %p96
      %p181 = pneg %p125
      %p182 = pneg %p122
      %p183 = scmp.lt.s32.totalorder %s15, 1
      %s184 = scalar_select %p183, %s15, 1
      %s185 = smul.addr %s184, 18
      %s186 = smul.addr %s185, 4
      %s187 = scalar_lea.vmem %s4, %s186
      %p188 = scmp.lt.s32.totalorder %s15, 1
      %s189 = scalar_select %p188, %s15, 1
      %s190 = smul.addr %s189, 15
      %s191 = smul.addr %s190, 4
      %s192 = scalar_lea.vmem %s0, %s191
      %p193 = scmp.lt.s32.totalorder %s15, 1
      %s194 = scalar_select %p193, %s15, 1
      %s195 = smul.addr %s194, 18
      %s196 = smul.addr %s195, 4
      %s197 = scalar_lea.vmem %s4, %s196
      %v199 = vld [vmem:[%s192] sm:$0xf]
      %v200 = vld [vmem:[%s192 + $0x4] sm:$0xf]
      %v201 = vld [vmem:[%s192 + $0x8] sm:$0xf]
      %v202 = vld [vmem:[%s192 + $0xc] sm:$0xf]
      %v203 = vld [vmem:[%s192 + $0x10] sm:$0xf]
      %v204 = vld [vmem:[%s192 + $0x14] sm:$0xf]
      %v205 = vld [vmem:[%s192 + $0x18] sm:$0xf]
      %v206 = vld [vmem:[%s192 + $0x1c] sm:$0xf]
      %v207 = vld [vmem:[%s192 + $0x20] sm:$0xf]
      %v208 = vld [vmem:[%s192 + $0x24] sm:$0xf]
      %v209 = vld [vmem:[%s192 + $0x28] sm:$0xf]
      %v210 = vld [vmem:[%s192 + $0x2c] sm:$0xf]
      %v211 = vld [vmem:[%s1] sm:$0xf]
      %v212 = vld [vmem:[%s1 + $0x4] sm:$0xf]
      %v213 = vld [vmem:[%s192 + $0x30] sm:$0x1]
      %s214 = scalar_lea.vmem %s1, 8
      %v215 = vld [vmem:[%s214] sm:$0xf]
      %v216 = vld [vmem:[%s214 + $0x4] sm:$0xf]
      %v230 = vunpack.c.l.b16 %v199
      %v231 = vunpack.c.l.b16 %v200
      %v232 = vunpack.c.l.b16 %v201
      %v233 = vunpack.c.l.b16 %v202
      %v234 = vunpack.c.l.b16 %v203
      %v235 = vunpack.c.l.b16 %v204
      %v236 = vunpack.c.l.b16 %v205
      %v237 = vunpack.c.l.b16 %v206
      %v238 = vunpack.c.l.b16 %v207
      %v239 = vunpack.c.l.b16 %v208
      %v240 = vunpack.c.l.b16 %v209
      %v241 = vunpack.c.l.b16 %v210
      %v242 = vunpack.c.l.b16 %v213
      %v243 = vpack.c.b16 %v231, %v230
      %v244 = vpack.c.b16 %v233, %v232
      %v245 = vpack.c.b16 %v235, %v234
      %v246 = vpack.c.b16 %v237, %v236
      %v247 = vpack.c.b16 %v239, %v238
      %v248 = vpack.c.b16 %v241, %v240
      %v249 = vpack.c.b16 %v242, %v242
      %vm250 = vsmask.f32 7424
      %v252 = vshrl.u32 %v243, 16
      %v254 = vshll.u32 %v243, 16
      %v256 = vrot.slane %v254, 1
      %v257 = vor.u32 %v252, %v256
      %v259 = vshll.u32 %v244, 16
      %v261 = vrot.slane %v259, 1
      %v262 = vsel %vm250, %v257, %v261
      %v263 = vshrl.u32 %v244, 16
      %v265 = vor.u32 %v263, %v261
      %v267 = vshll.u32 %v245, 16
      %v269 = vrot.slane %v267, 1
      %v270 = vsel %vm250, %v265, %v269
      %v271 = vshrl.u32 %v245, 16
      %v273 = vor.u32 %v271, %v269
      %v275 = vshll.u32 %v246, 16
      %v277 = vrot.slane %v275, 1
      %v278 = vsel %vm250, %v273, %v277
      %v279 = vshrl.u32 %v246, 16
      %v281 = vor.u32 %v279, %v277
      %v283 = vshll.u32 %v247, 16
      %v285 = vrot.slane %v283, 1
      %v286 = vsel %vm250, %v281, %v285
      %v287 = vshrl.u32 %v247, 16
      %v289 = vor.u32 %v287, %v285
      %v291 = vshll.u32 %v248, 16
      %v293 = vrot.slane %v291, 1
      %v294 = vsel %vm250, %v289, %v293
      %v295 = vshrl.u32 %v248, 16
      %v297 = vor.u32 %v295, %v293
      %v299 = vshll.u32 %v249, 16
      %v301 = vrot.slane %v299, 1
      %v302 = vsel %vm250, %v297, %v301
      %v305 = vunpack.c.l.b16 %v215
      %v306 = vunpack.c.l.b16 %v216
      %v307 = vpack.c.b16 %v306, %v305
      %vm309 = vcmask 130048
      %v311 = vsel %vm309, %v262, 0
      %v314 = vsel %vm309, %v270, 0
      %v317 = vsel %vm309, %v278, 0
      %v320 = vsel %vm309, %v286, 0
      %v323 = vsel %vm309, %v294, 0
      %v326 = vsel %vm309, %v302, 0
      %328 = vmatprep.subr.bf16.mxu0 0
      %329 = vmatpush1.bf16.msra.mxu0 %v307
      %330 = vmatprep.subr.bf16.mxu0 0
      %331 = vmatpush1.bf16.msra.mxu0 0
      %332 = vmatprep.subr.bf16.mxu0 0
      %333 = vmatpush1.bf16.msra.mxu0 0
      %334 = vmatprep.subr.bf16.mxu0 0
      %335 = vmatpush1.bf16.msra.mxu0 0
      %336 = vmatprep.subr.bf16.mxu0 0
      %337 = vmatpush1.bf16.msra.mxu0 0
      %338 = vmatprep.subr.bf16.mxu0 0
      %339 = vmatpush1.bf16.msra.mxu0 0
      %340 = vmatprep.subr.bf16.mxu0 0
      %341 = vmatpush1.bf16.msra.mxu0 0
      %342 = vmatprep.subr.bf16.mxu0 0
      %343 = vmatpush1.bf16.msra.mxu0 0
      %344 = vmatprep.subr.bf16.mxu0 0
      %345 = vmatpush1.bf16.msra.mxu0 0
      %346 = vmatprep.subr.bf16.mxu0 0
      %347 = vmatpush1.bf16.msra.mxu0 0
      %348 = vmatprep.subr.bf16.mxu0 0
      %349 = vmatpush1.bf16.msra.mxu0 0
      %350 = vmatprep.subr.bf16.mxu0 0
      %351 = vmatpush1.bf16.msra.mxu0 0
      %352 = vmatprep.subr.bf16.mxu0 0
      %353 = vmatpush1.bf16.msra.mxu0 0
      %354 = vmatprep.subr.bf16.mxu0 0
      %355 = vmatpush1.bf16.msra.mxu0 0
      %356 = vmatprep.subr.bf16.mxu0 0
      %357 = vmatpush1.bf16.msra.mxu0 0
      %358 = vmatprep.subr.bf16.mxu0 0
      %359 = vmatpush1.bf16.msra.mxu0 0
      %360 = vmatprep.mubr.bf16.mxu0 0
      %361 = vmatmul.mubr.bf16.gmra.mrb[0].mxu0 %v311
      %v362 = vpop.f32.mrb[0].mxu0
      %v363 = vadd.f32 0.0, %v362
      %v364 = vpop.f32.mrb[0].mxu0
      %v365 = vpop.f32.mrb[0].mxu0
      %v366 = vadd.f32 0.0, %v365
      %v367 = vpop.f32.mrb[0].mxu0
      %368 = vmatprep.mubr.bf16.mxu0 0
      %369 = vmatmul.mubr.bf16.gmra.mrb[0].mxu0 %v314
      %v370 = vpop.f32.mrb[0].mxu0
      %v371 = vadd.f32 0.0, %v370
      %v372 = vpop.f32.mrb[0].mxu0
      %v373 = vpop.f32.mrb[0].mxu0
      %v374 = vadd.f32 0.0, %v373
      %v375 = vpop.f32.mrb[0].mxu0
      %376 = vmatprep.mubr.bf16.mxu0 0
      %377 = vmatmul.mubr.bf16.gmra.mrb[0].mxu0 %v317
      %v378 = vpop.f32.mrb[0].mxu0
      %v379 = vadd.f32 0.0, %v378
      %v380 = vpop.f32.mrb[0].mxu0
      %v381 = vpop.f32.mrb[0].mxu0
      %v382 = vadd.f32 0.0, %v381
      %v383 = vpop.f32.mrb[0].mxu0
      %384 = vmatprep.mubr.bf16.mxu0 0
      %385 = vmatmul.mubr.bf16.gmra.mrb[0].mxu0 %v320
      %v386 = vpop.f32.mrb[0].mxu0
      %v387 = vadd.f32 0.0, %v386
      %v388 = vpop.f32.mrb[0].mxu0
      %v389 = vpop.f32.mrb[0].mxu0
      %v390 = vadd.f32 0.0, %v389
      %v391 = vpop.f32.mrb[0].mxu0
      %392 = vmatprep.mubr.bf16.mxu0 0
      %393 = vmatmul.mubr.bf16.gmra.mrb[0].mxu0 %v323
      %v394 = vpop.f32.mrb[0].mxu0
      %v395 = vadd.f32 0.0, %v394
      %v396 = vpop.f32.mrb[0].mxu0
      %v397 = vpop.f32.mrb[0].mxu0
      %v398 = vadd.f32 0.0, %v397
      %v399 = vpop.f32.mrb[0].mxu0
      %400 = vmatprep.mubr.bf16.mxu0 0
      %401 = vmatmul.mubr.bf16.gmra.mrb[0].mxu0 %v326
      %v402 = vpop.f32.mrb[0].mxu0
      %v403 = vadd.f32 0.0, %v402
      %v404 = vpop.f32.mrb[0].mxu0
      %v405 = vpop.f32.mrb[0].mxu0
      %v406 = vadd.f32 0.0, %v405
      %v407 = vpop.f32.mrb[0].mxu0
      %408 = vdwg.mxu0
      %v411 = vunpack.c.l.b16 %v211
      %v412 = vunpack.c.l.b16 %v212
      %v413 = vpack.c.b16 %v412, %v411
      %v415 = vsel %vm309, %v243, 0
      %v417 = vsel %vm309, %v244, 0
      %v419 = vsel %vm309, %v245, 0
      %v421 = vsel %vm309, %v246, 0
      %v423 = vsel %vm309, %v247, 0
      %v425 = vsel %vm309, %v248, 0
      %427 = vmatprep.subr.bf16.mxu0 0
      %428 = vmatpush1.bf16.msra.mxu0 %v413
      %429 = vmatprep.subr.bf16.mxu0 0
      %430 = vmatpush1.bf16.msra.mxu0 0
      %431 = vmatprep.subr.bf16.mxu0 0
      %432 = vmatpush1.bf16.msra.mxu0 0
      %433 = vmatprep.subr.bf16.mxu0 0
      %434 = vmatpush1.bf16.msra.mxu0 0
      %435 = vmatprep.subr.bf16.mxu0 0
      %436 = vmatpush1.bf16.msra.mxu0 0
      %437 = vmatprep.subr.bf16.mxu0 0
      %438 = vmatpush1.bf16.msra.mxu0 0
      %439 = vmatprep.subr.bf16.mxu0 0
      %440 = vmatpush1.bf16.msra.mxu0 0
      %441 = vmatprep.subr.bf16.mxu0 0
      %442 = vmatpush1.bf16.msra.mxu0 0
      %443 = vmatprep.subr.bf16.mxu0 0
      %444 = vmatpush1.bf16.msra.mxu0 0
      %445 = vmatprep.subr.bf16.mxu0 0
      %446 = vmatpush1.bf16.msra.mxu0 0
      %447 = vmatprep.subr.bf16.mxu0 0
      %448 = vmatpush1.bf16.msra.mxu0 0
      %449 = vmatprep.subr.bf16.mxu0 0
      %450 = vmatpush1.bf16.msra.mxu0 0
      %451 = vmatprep.subr.bf16.mxu0 0
      %452 = vmatpush1.bf16.msra.mxu0 0
      %453 = vmatprep.subr.bf16.mxu0 0
      %454 = vmatpush1.bf16.msra.mxu0 0
      %455 = vmatprep.subr.bf16.mxu0 0
      %456 = vmatpush1.bf16.msra.mxu0 0
      %457 = vmatprep.subr.bf16.mxu0 0
      %458 = vmatpush1.bf16.msra.mxu0 0
      %459 = vmatprep.mubr.bf16.mxu0 0
      %460 = vmatmul.mubr.bf16.gmra.mrb[0].mxu0 %v415
      %v461 = vpop.f32.mrb[0].mxu0
      %v462 = vadd.f32 %v363, %v461
      %v463 = vpop.f32.mrb[0].mxu0
      %v464 = vpop.f32.mrb[0].mxu0
      %v465 = vadd.f32 %v366, %v464
      %v466 = vpop.f32.mrb[0].mxu0
      %467 = vmatprep.mubr.bf16.mxu0 0
      %468 = vmatmul.mubr.bf16.gmra.mrb[0].mxu0 %v417
      %v469 = vpop.f32.mrb[0].mxu0
      %v470 = vadd.f32 %v371, %v469
      %v471 = vpop.f32.mrb[0].mxu0
      %v472 = vpop.f32.mrb[0].mxu0
      %v473 = vadd.f32 %v374, %v472
      %v474 = vpop.f32.mrb[0].mxu0
      %475 = vmatprep.mubr.bf16.mxu0 0
      %476 = vmatmul.mubr.bf16.gmra.mrb[0].mxu0 %v419
      %v477 = vpop.f32.mrb[0].mxu0
      %v478 = vadd.f32 %v379, %v477
      %v479 = vpop.f32.mrb[0].mxu0
      %v480 = vpop.f32.mrb[0].mxu0
      %v481 = vadd.f32 %v382, %v480
      %v482 = vpop.f32.mrb[0].mxu0
      %483 = vmatprep.mubr.bf16.mxu0 0
      %484 = vmatmul.mubr.bf16.gmra.mrb[0].mxu0 %v421
      %v485 = vpop.f32.mrb[0].mxu0
      %v486 = vadd.f32 %v387, %v485
      %v487 = vpop.f32.mrb[0].mxu0
      %v488 = vpop.f32.mrb[0].mxu0
      %v489 = vadd.f32 %v390, %v488
      %v490 = vpop.f32.mrb[0].mxu0
      %491 = vmatprep.mubr.bf16.mxu0 0
      %492 = vmatmul.mubr.bf16.gmra.mrb[0].mxu0 %v423
      %v493 = vpop.f32.mrb[0].mxu0
      %v494 = vadd.f32 %v395, %v493
      %v495 = vpop.f32.mrb[0].mxu0
      %v496 = vpop.f32.mrb[0].mxu0
      %v497 = vadd.f32 %v398, %v496
      %v498 = vpop.f32.mrb[0].mxu0
      %499 = vmatprep.mubr.bf16.mxu0 0
      %500 = vmatmul.mubr.bf16.gmra.mrb[0].mxu0 %v425
      %v501 = vpop.f32.mrb[0].mxu0
      %v502 = vadd.f32 %v403, %v501
      %v503 = vpop.f32.mrb[0].mxu0
      %v504 = vpop.f32.mrb[0].mxu0
      %v505 = vadd.f32 %v406, %v504
      %v506 = vpop.f32.mrb[0].mxu0
      %507 = vdwg.mxu0
      %v508 = vld [vmem:[%s192 + $0x4] sm:$0xc]
      %v509 = vld [vmem:[%s192 + $0x8] sm:$0xf]
      %v510 = vld [vmem:[%s192 + $0xc] sm:$0xf]
      %v511 = vld [vmem:[%s192 + $0x10] sm:$0xf]
      %v512 = vld [vmem:[%s192 + $0x14] sm:$0xf]
      %v513 = vld [vmem:[%s192 + $0x18] sm:$0xf]
      %v514 = vld [vmem:[%s192 + $0x1c] sm:$0xf]
      %v515 = vld [vmem:[%s192 + $0x20] sm:$0xf]
      %v516 = vld [vmem:[%s192 + $0x24] sm:$0xf]
      %v517 = vld [vmem:[%s192 + $0x28] sm:$0xf]
      %v518 = vld [vmem:[%s192 + $0x2c] sm:$0xf]
      %v519 = vld [vmem:[%s192 + $0x30] sm:$0xf]
      %v520 = vld [vmem:[%s192 + $0x34] sm:$0x3]
      %s521 = scalar_lea.vmem %s1, 16
      %v522 = vld [vmem:[%s521] sm:$0xf]
      %v523 = vld [vmem:[%s521 + $0x4] sm:$0xf]
      %v537 = vunpack.c.l.b16 %v508
      %v538 = vunpack.c.l.b16 %v509
      %v539 = vunpack.c.l.b16 %v510
      %v540 = vunpack.c.l.b16 %v511
      %v541 = vunpack.c.l.b16 %v512
      %v542 = vunpack.c.l.b16 %v513
      %v543 = vunpack.c.l.b16 %v514
      %v544 = vunpack.c.l.b16 %v515
      %v545 = vunpack.c.l.b16 %v516
      %v546 = vunpack.c.l.b16 %v517
      %v547 = vunpack.c.l.b16 %v518
      %v548 = vunpack.c.l.b16 %v519
      %v549 = vunpack.c.l.b16 %v520
      %v550 = vpack.c.b16 %v538, %v537
      %v551 = vpack.c.b16 %v540, %v539
      %v552 = vpack.c.b16 %v542, %v541
      %v553 = vpack.c.b16 %v544, %v543
      %v554 = vpack.c.b16 %v546, %v545
      %v555 = vpack.c.b16 %v548, %v547
      %v556 = vpack.c.b16 %v549, %v549
      %vm557 = vcmask 1045504
      %v558 = vrot.slane %v550, 2
      %v559 = vrot.slane %v551, 2
      %v560 = vsel %vm557, %v558, %v559
      %v561 = vrot.slane %v552, 2
      %v562 = vsel %vm557, %v559, %v561
      %v563 = vrot.slane %v553, 2
      %v564 = vsel %vm557, %v561, %v563
      %v565 = vrot.slane %v554, 2
      %v566 = vsel %vm557, %v563, %v565
      %v567 = vrot.slane %v555, 2
      %v568 = vsel %vm557, %v565, %v567
      %v569 = vrot.slane %v556, 2
      %v570 = vsel %vm557, %v567, %v569
      %v573 = vunpack.c.l.b16 %v522
      %v574 = vunpack.c.l.b16 %v523
      %v575 = vpack.c.b16 %v574, %v573
      %v578 = vsel %vm309, %v560, 0
      %v581 = vsel %vm309, %v562, 0
      %v584 = vsel %vm309, %v564, 0
      %v587 = vsel %vm309, %v566, 0
      %v590 = vsel %vm309, %v568, 0
      %v593 = vsel %vm309, %v570, 0
      %595 = vmatprep.subr.bf16.mxu0 0
      %596 = vmatpush1.bf16.msra.mxu0 %v575
      %597 = vmatprep.subr.bf16.mxu0 0
      %598 = vmatpush1.bf16.msra.mxu0 0
      %599 = vmatprep.subr.bf16.mxu0 0
      %600 = vmatpush1.bf16.msra.mxu0 0
      %601 = vmatprep.subr.bf16.mxu0 0
      %602 = vmatpush1.bf16.msra.mxu0 0
      %603 = vmatprep.subr.bf16.mxu0 0
      %604 = vmatpush1.bf16.msra.mxu0 0
      %605 = vmatprep.subr.bf16.mxu0 0
      %606 = vmatpush1.bf16.msra.mxu0 0
      %607 = vmatprep.subr.bf16.mxu0 0
      %608 = vmatpush1.bf16.msra.mxu0 0
      %609 = vmatprep.subr.bf16.mxu0 0
      %610 = vmatpush1.bf16.msra.mxu0 0
      %611 = vmatprep.subr.bf16.mxu0 0
      %612 = vmatpush1.bf16.msra.mxu0 0
      %613 = vmatprep.subr.bf16.mxu0 0
      %614 = vmatpush1.bf16.msra.mxu0 0
      %615 = vmatprep.subr.bf16.mxu0 0
      %616 = vmatpush1.bf16.msra.mxu0 0
      %617 = vmatprep.subr.bf16.mxu0 0
      %618 = vmatpush1.bf16.msra.mxu0 0
      %619 = vmatprep.subr.bf16.mxu0 0
      %620 = vmatpush1.bf16.msra.mxu0 0
      %621 = vmatprep.subr.bf16.mxu0 0
      %622 = vmatpush1.bf16.msra.mxu0 0
      %623 = vmatprep.subr.bf16.mxu0 0
      %624 = vmatpush1.bf16.msra.mxu0 0
      %625 = vmatprep.subr.bf16.mxu0 0
      %626 = vmatpush1.bf16.msra.mxu0 0
      %627 = vmatprep.mubr.bf16.mxu0 0
      %628 = vmatmul.mubr.bf16.gmra.mrb[0].mxu0 %v578
      %v629 = vpop.f32.mrb[0].mxu0
      %v630 = vadd.f32 0.0, %v629
      %v631 = vpop.f32.mrb[0].mxu0
      %v632 = vpop.f32.mrb[0].mxu0
      %v633 = vadd.f32 0.0, %v632
      %v634 = vpop.f32.mrb[0].mxu0
      %635 = vmatprep.mubr.bf16.mxu0 0
      %636 = vmatmul.mubr.bf16.gmra.mrb[0].mxu0 %v581
      %v637 = vpop.f32.mrb[0].mxu0
      %v638 = vadd.f32 0.0, %v637
      %v639 = vpop.f32.mrb[0].mxu0
      %v640 = vpop.f32.mrb[0].mxu0
      %v641 = vadd.f32 0.0, %v640
      %v642 = vpop.f32.mrb[0].mxu0
      %643 = vmatprep.mubr.bf16.mxu0 0
      %644 = vmatmul.mubr.bf16.gmra.mrb[0].mxu0 %v584
      %v645 = vpop.f32.mrb[0].mxu0
      %v646 = vadd.f32 0.0, %v645
      %v647 = vpop.f32.mrb[0].mxu0
      %v648 = vpop.f32.mrb[0].mxu0
      %v649 = vadd.f32 0.0, %v648
      %v650 = vpop.f32.mrb[0].mxu0
      %651 = vmatprep.mubr.bf16.mxu0 0
      %652 = vmatmul.mubr.bf16.gmra.mrb[0].mxu0 %v587
      %v653 = vpop.f32.mrb[0].mxu0
      %v654 = vadd.f32 0.0, %v653
      %v655 = vpop.f32.mrb[0].mxu0
      %v656 = vpop.f32.mrb[0].mxu0
      %v657 = vadd.f32 0.0, %v656
      %v658 = vpop.f32.mrb[0].mxu0
      %659 = vmatprep.mubr.bf16.mxu0 0
      %660 = vmatmul.mubr.bf16.gmra.mrb[0].mxu0 %v590
      %v661 = vpop.f32.mrb[0].mxu0
      %v662 = vadd.f32 0.0, %v661
      %v663 = vpop.f32.mrb[0].mxu0
      %v664 = vpop.f32.mrb[0].mxu0
      %v665 = vadd.f32 0.0, %v664
      %v666 = vpop.f32.mrb[0].mxu0
      %667 = vmatprep.mubr.bf16.mxu0 0
      %668 = vmatmul.mubr.bf16.gmra.mrb[0].mxu0 %v593
      %v669 = vpop.f32.mrb[0].mxu0
      %v670 = vadd.f32 0.0, %v669
      %v671 = vpop.f32.mrb[0].mxu0
      %v672 = vpop.f32.mrb[0].mxu0
      %v673 = vadd.f32 0.0, %v672
      %v674 = vpop.f32.mrb[0].mxu0
      %675 = vdwg.mxu0
      %v676 = vadd.f32 %v462, %v630
      %v677 = vadd.f32 %v465, %v633
      %v678 = vadd.f32 %v470, %v638
      %v679 = vadd.f32 %v473, %v641
      %v680 = vadd.f32 %v478, %v646
      %v681 = vadd.f32 %v481, %v649
      %v682 = vadd.f32 %v486, %v654
      %v683 = vadd.f32 %v489, %v657
      %v684 = vadd.f32 %v494, %v662
      %v685 = vadd.f32 %v497, %v665
      %v686 = vadd.f32 %v502, %v670
      %v687 = vadd.f32 %v505, %v673
      %v688 = vld [vmem:[%s192 + $0x34] sm:$0x7]
      %s689 = scalar_lea.vmem %s1, 24
      %v690 = vld [vmem:[%s689] sm:$0xf]
      %v691 = vld [vmem:[%s689 + $0x4] sm:$0xf]
      %v693 = vunpack.c.l.b16 %v688
      %v694 = vpack.c.b16 %v693, %v693
      %vm695 = vsmask.f32 5376
      %v697 = vshrl.u32 %v550, 16
      %v699 = vrot.slane %v697, 2
      %v700 = vshll.u32 %v550, 16
      %v702 = vrot.slane %v700, 3
      %v703 = vor.u32 %v699, %v702
      %v705 = vshrl.u32 %v551, 16
      %v707 = vrot.slane %v705, 2
      %v708 = vshll.u32 %v551, 16
      %v710 = vrot.slane %v708, 3
      %v711 = vor.u32 %v707, %v710
      %v712 = vsel %vm695, %v703, %v711
      %v714 = vshrl.u32 %v552, 16
      %v716 = vrot.slane %v714, 2
      %v717 = vshll.u32 %v552, 16
      %v719 = vrot.slane %v717, 3
      %v720 = vor.u32 %v716, %v719
      %v721 = vsel %vm695, %v711, %v720
      %v723 = vshrl.u32 %v553, 16
      %v725 = vrot.slane %v723, 2
      %v726 = vshll.u32 %v553, 16
      %v728 = vrot.slane %v726, 3
      %v729 = vor.u32 %v725, %v728
      %v730 = vsel %vm695, %v720, %v729
      %v732 = vshrl.u32 %v554, 16
      %v734 = vrot.slane %v732, 2
      %v735 = vshll.u32 %v554, 16
      %v737 = vrot.slane %v735, 3
      %v738 = vor.u32 %v734, %v737
      %v739 = vsel %vm695, %v729, %v738
      %v741 = vshrl.u32 %v555, 16
      %v743 = vrot.slane %v741, 2
      %v744 = vshll.u32 %v555, 16
      %v746 = vrot.slane %v744, 3
      %v747 = vor.u32 %v743, %v746
      %v748 = vsel %vm695, %v738, %v747
      %v750 = vshrl.u32 %v694, 16
      %v752 = vrot.slane %v750, 2
      %v753 = vshll.u32 %v694, 16
      %v755 = vrot.slane %v753, 3
      %v756 = vor.u32 %v752, %v755
      %v757 = vsel %vm695, %v747, %v756
      %v760 = vunpack.c.l.b16 %v690
      %v761 = vunpack.c.l.b16 %v691
      %v762 = vpack.c.b16 %v761, %v760
      %v765 = vsel %vm309, %v712, 0
      %v768 = vsel %vm309, %v721, 0
      %v771 = vsel %vm309, %v730, 0
      %v774 = vsel %vm309, %v739, 0
      %v777 = vsel %vm309, %v748, 0
      %v780 = vsel %vm309, %v757, 0
      %782 = vmatprep.subr.bf16.mxu0 0
      %783 = vmatpush1.bf16.msra.mxu0 %v762
      %784 = vmatprep.subr.bf16.mxu0 0
      %785 = vmatpush1.bf16.msra.mxu0 0
      %786 = vmatprep.subr.bf16.mxu0 0
      %787 = vmatpush1.bf16.msra.mxu0 0
      %788 = vmatprep.subr.bf16.mxu0 0
      %789 = vmatpush1.bf16.msra.mxu0 0
      %790 = vmatprep.subr.bf16.mxu0 0
      %791 = vmatpush1.bf16.msra.mxu0 0
      %792 = vmatprep.subr.bf16.mxu0 0
      %793 = vmatpush1.bf16.msra.mxu0 0
      %794 = vmatprep.subr.bf16.mxu0 0
      %795 = vmatpush1.bf16.msra.mxu0 0
      %796 = vmatprep.subr.bf16.mxu0 0
      %797 = vmatpush1.bf16.msra.mxu0 0
      %798 = vmatprep.subr.bf16.mxu0 0
      %799 = vmatpush1.bf16.msra.mxu0 0
      %800 = vmatprep.subr.bf16.mxu0 0
      %801 = vmatpush1.bf16.msra.mxu0 0
      %802 = vmatprep.subr.bf16.mxu0 0
      %803 = vmatpush1.bf16.msra.mxu0 0
      %804 = vmatprep.subr.bf16.mxu0 0
      %805 = vmatpush1.bf16.msra.mxu0 0
      %806 = vmatprep.subr.bf16.mxu0 0
      %807 = vmatpush1.bf16.msra.mxu0 0
      %808 = vmatprep.subr.bf16.mxu0 0
      %809 = vmatpush1.bf16.msra.mxu0 0
      %810 = vmatprep.subr.bf16.mxu0 0
      %811 = vmatpush1.bf16.msra.mxu0 0
      %812 = vmatprep.subr.bf16.mxu0 0
      %813 = vmatpush1.bf16.msra.mxu0 0
      %814 = vmatprep.mubr.bf16.mxu0 0
      %815 = vmatmul.mubr.bf16.gmra.mrb[0].mxu0 %v765
      %v816 = vpop.f32.mrb[0].mxu0
      %v817 = vadd.f32 0.0, %v816
      %v818 = vpop.f32.mrb[0].mxu0
      %v819 = vpop.f32.mrb[0].mxu0
      %v820 = vadd.f32 0.0, %v819
      %v821 = vpop.f32.mrb[0].mxu0
      %822 = vmatprep.mubr.bf16.mxu0 0
      %823 = vmatmul.mubr.bf16.gmra.mrb[0].mxu0 %v768
      %v824 = vpop.f32.mrb[0].mxu0
      %v825 = vadd.f32 0.0, %v824
      %v826 = vpop.f32.mrb[0].mxu0
      %v827 = vpop.f32.mrb[0].mxu0
      %v828 = vadd.f32 0.0, %v827
      %v829 = vpop.f32.mrb[0].mxu0
      %830 = vmatprep.mubr.bf16.mxu0 0
      %831 = vmatmul.mubr.bf16.gmra.mrb[0].mxu0 %v771
      %v832 = vpop.f32.mrb[0].mxu0
      %v833 = vadd.f32 0.0, %v832
      %v834 = vpop.f32.mrb[0].mxu0
      %v835 = vpop.f32.mrb[0].mxu0
      %v836 = vadd.f32 0.0, %v835
      %v837 = vpop.f32.mrb[0].mxu0
      %838 = vmatprep.mubr.bf16.mxu0 0
      %839 = vmatmul.mubr.bf16.gmra.mrb[0].mxu0 %v774
      %v840 = vpop.f32.mrb[0].mxu0
      %v841 = vadd.f32 0.0, %v840
      %v842 = vpop.f32.mrb[0].mxu0
      %v843 = vpop.f32.mrb[0].mxu0
      %v844 = vadd.f32 0.0, %v843
      %v845 = vpop.f32.mrb[0].mxu0
      %846 = vmatprep.mubr.bf16.mxu0 0
      %847 = vmatmul.mubr.bf16.gmra.mrb[0].mxu0 %v777
      %v848 = vpop.f32.mrb[0].mxu0
      %v849 = vadd.f32 0.0, %v848
      %v850 = vpop.f32.mrb[0].mxu0
      %v851 = vpop.f32.mrb[0].mxu0
      %v852 = vadd.f32 0.0, %v851
      %v853 = vpop.f32.mrb[0].mxu0
      %854 = vmatprep.mubr.bf16.mxu0 0
      %855 = vmatmul.mubr.bf16.gmra.mrb[0].mxu0 %v780
      %v856 = vpop.f32.mrb[0].mxu0
      %v857 = vadd.f32 0.0, %v856
      %v858 = vpop.f32.mrb[0].mxu0
      %v859 = vpop.f32.mrb[0].mxu0
      %v860 = vadd.f32 0.0, %v859
      %v861 = vpop.f32.mrb[0].mxu0
      %862 = vdwg.mxu0
      %v863 = vadd.f32 %v676, %v817
      %v864 = vadd.f32 %v677, %v820
      %v865 = vadd.f32 %v678, %v825
      %v866 = vadd.f32 %v679, %v828
      %v867 = vadd.f32 %v680, %v833
      %v868 = vadd.f32 %v681, %v836
      %v869 = vadd.f32 %v682, %v841
      %v870 = vadd.f32 %v683, %v844
      %v871 = vadd.f32 %v684, %v849
      %v872 = vadd.f32 %v685, %v852
      %v873 = vadd.f32 %v686, %v857
      %v874 = vadd.f32 %v687, %v860
      %v875 = vld [vmem:[%s2] sm:$0x1]
      %v877 = vlaneseq
      %v878 = vshrl.u32 %v877, 7
      %v879 = vsub.s32 0, %v878
      %v880 = vrot.slane %v875, %v879
      %v882 = vadd.f32 %v863, %v880
      %v883 = vadd.f32 %v864, %v880
      %v884 = vadd.f32 %v865, %v880
      %v885 = vadd.f32 %v866, %v880
      %v886 = vadd.f32 %v867, %v880
      %v887 = vadd.f32 %v868, %v880
      %v888 = vadd.f32 %v869, %v880
      %v889 = vadd.f32 %v870, %v880
      %v890 = vadd.f32 %v871, %v880
      %v891 = vadd.f32 %v872, %v880
      %v892 = vadd.f32 %v873, %v880
      %v893 = vadd.f32 %v874, %v880
      %v894 = vmax.f32 %v882, 0.0
      %v895 = vmax.f32 %v883, 0.0
      %v896 = vmax.f32 %v884, 0.0
      %v897 = vmax.f32 %v885, 0.0
      %v898 = vmax.f32 %v886, 0.0
      %v899 = vmax.f32 %v887, 0.0
      %v900 = vmax.f32 %v888, 0.0
      %v901 = vmax.f32 %v889, 0.0
      %v902 = vmax.f32 %v890, 0.0
      %v903 = vmax.f32 %v891, 0.0
      %v904 = vmax.f32 %v892, 0.0
      %v905 = vmax.f32 %v893, 0.0
      %v906 = vld [vmem:[%s3] sm:$0xff]
      %v907 = vld [vmem:[%s3 + $0x8] sm:$0xff]
      %v908 = vld [vmem:[%s3 + $0x10] sm:$0xff]
      %v909 = vld [vmem:[%s3 + $0x18] sm:$0xff]
      %v910 = vld [vmem:[%s3 + $0x20] sm:$0xff]
      %v911 = vld [vmem:[%s3 + $0x28] sm:$0xff]
      %v912 = vld [vmem:[%s3 + $0x30] sm:$0xff]
      %v913 = vld [vmem:[%s3 + $0x38] sm:$0xff]
      %v914 = vld [vmem:[%s3 + $0x40] sm:$0xff]
      %v915 = vld [vmem:[%s3 + $0x48] sm:$0xff]
      %v916 = vld [vmem:[%s3 + $0x50] sm:$0xff]
      %v917 = vld [vmem:[%s3 + $0x58] sm:$0xff]
      %919 = vset.pattern.permute.xlu0 0
      %920 = vperm.xlu0 %919, %v906
      %v921 = vpop.permute.xlu0 %920
      %924 = vset.pattern.permute.xlu0 0
      %925 = vperm.xlu0 %924, %v907
      %v926 = vpop.permute.xlu0 %925
      %929 = vset.pattern.permute.xlu0 0
      %930 = vperm.xlu0 %929, %v908
      %v931 = vpop.permute.xlu0 %930
      %934 = vset.pattern.permute.xlu0 0
      %935 = vperm.xlu0 %934, %v909
      %v936 = vpop.permute.xlu0 %935
      %939 = vset.pattern.permute.xlu0 0
      %940 = vperm.xlu0 %939, %v910
      %v941 = vpop.permute.xlu0 %940
      %944 = vset.pattern.permute.xlu0 0
      %945 = vperm.xlu0 %944, %v911
      %v946 = vpop.permute.xlu0 %945
      %949 = vset.pattern.permute.xlu0 0
      %950 = vperm.xlu0 %949, %v912
      %v951 = vpop.permute.xlu0 %950
      %954 = vset.pattern.permute.xlu0 0
      %955 = vperm.xlu0 %954, %v913
      %v956 = vpop.permute.xlu0 %955
      %959 = vset.pattern.permute.xlu0 0
      %960 = vperm.xlu0 %959, %v914
      %v961 = vpop.permute.xlu0 %960
      %964 = vset.pattern.permute.xlu0 0
      %965 = vperm.xlu0 %964, %v915
      %v966 = vpop.permute.xlu0 %965
      %969 = vset.pattern.permute.xlu0 0
      %970 = vperm.xlu0 %969, %v916
      %v971 = vpop.permute.xlu0 %970
      %974 = vset.pattern.permute.xlu0 0
      %975 = vperm.xlu0 %974, %v917
      %v976 = vpop.permute.xlu0 %975
      %v978 = vmul.f32 %v894, %v921
      %v979 = vmul.f32 %v895, %v926
      %v980 = vmul.f32 %v896, %v931
      %v981 = vmul.f32 %v897, %v936
      %v982 = vmul.f32 %v898, %v941
      %v983 = vmul.f32 %v899, %v946
      %v984 = vmul.f32 %v900, %v951
      %v985 = vmul.f32 %v901, %v956
      %v986 = vmul.f32 %v902, %v961
      %v987 = vmul.f32 %v903, %v966
      %v988 = vmul.f32 %v904, %v971
      %v989 = vmul.f32 %v905, %v976
      %vm990 = vcmask 125952
      %991 = vst.msk [vmem:[%s197] sm:$0xf] %vm990, 0
      %992 = vst.msk [vmem:[%s197 + $0x4] sm:$0xf] %vm990, 0
      %993 = vst.msk [vmem:[%s197 + $0x8] sm:$0xf] %vm990, 0
      %994 = vst.msk [vmem:[%s197 + $0xc] sm:$0xf] %vm990, 0
      %995 = vst.msk [vmem:[%s197 + $0x10] sm:$0xf] %vm990, 0
      %996 = vst.msk [vmem:[%s197 + $0x14] sm:$0xf] %vm990, 0
      %997 = vst.msk [vmem:[%s197 + $0x18] sm:$0xf] %vm990, 0
      %998 = vst.msk [vmem:[%s197 + $0x1c] sm:$0xf] %vm990, 0
      %999 = vst.msk [vmem:[%s197 + $0x20] sm:$0xf] %vm990, 0
      %1000 = vst.msk [vmem:[%s197 + $0x24] sm:$0xf] %vm990, 0
      %1001 = vst.msk [vmem:[%s197 + $0x28] sm:$0xf] %vm990, 0
      %1002 = vst.msk [vmem:[%s197 + $0x2c] sm:$0xf] %vm990, 0
      %1003 = vst.msk [vmem:[%s197 + $0x30] sm:$0xf] %vm990, 0
      %1004 = vst.msk [vmem:[%s197 + $0x34] sm:$0xf] %vm990, 0
      %1005 = vst.msk [vmem:[%s197 + $0x38] sm:$0xf] %vm990, 0
      %1006 = vst.msk [vmem:[%s197 + $0x3c] sm:$0xf] %vm990, 0
      %1007 = vst.msk [vmem:[%s197 + $0x40] sm:$0xf] %vm990, 0
      %1008 = vst.msk [vmem:[%s197 + $0x44] sm:$0xf] %vm990, 0
      %v1009 = vpack.c.bf16 %v979, %v978
      %v1010 = vpack.c.bf16 %v981, %v980
      %v1011 = vpack.c.bf16 %v983, %v982
      %v1012 = vpack.c.bf16 %v985, %v984
      %v1013 = vpack.c.bf16 %v987, %v986
      %v1014 = vpack.c.bf16 %v989, %v988
      %v1021 = vunpack.c.l.b16 %v1009
      %v1022 = vunpack.c.h.b16 %v1009
      %v1023 = vunpack.c.l.b16 %v1010
      %v1024 = vunpack.c.h.b16 %v1010
      %v1025 = vunpack.c.l.b16 %v1011
      %v1026 = vunpack.c.h.b16 %v1011
      %v1027 = vunpack.c.l.b16 %v1012
      %v1028 = vunpack.c.h.b16 %v1012
      %v1029 = vunpack.c.l.b16 %v1013
      %v1030 = vunpack.c.h.b16 %v1013
      %v1031 = vunpack.c.l.b16 %v1014
      %v1032 = vunpack.c.h.b16 %v1014
      %v1033 = vpack.c.b16 %v1021, %v1021
      %v1034 = vpack.c.b16 %v1022, %v1022
      %v1035 = vpack.c.b16 %v1023, %v1023
      %v1036 = vpack.c.b16 %v1024, %v1024
      %v1037 = vpack.c.b16 %v1025, %v1025
      %v1038 = vpack.c.b16 %v1026, %v1026
      %v1039 = vpack.c.b16 %v1027, %v1027
      %v1040 = vpack.c.b16 %v1028, %v1028
      %v1041 = vpack.c.b16 %v1029, %v1029
      %v1042 = vpack.c.b16 %v1030, %v1030
      %v1043 = vpack.c.b16 %v1031, %v1031
      %v1044 = vpack.c.b16 %v1032, %v1032
      %vm1045 = vsmask.f32 2304
      %vm1046 = vsmask.f32 6416
      %vm1047 = vmor %vm1045, %vm1046
      %v1049 = vshrl.u32 %v1033, 16
      %v1051 = vrot.slane %v1049, 5
      %v1052 = vshll.u32 %v1033, 16
      %v1054 = vrot.slane %v1052, 6
      %v1055 = vor.u32 %v1051, %v1054
      %v1056 = vrot.slane %v1055, 4
      %v1058 = vshrl.u32 %v1034, 16
      %v1060 = vrot.slane %v1058, 5
      %v1061 = vshll.u32 %v1034, 16
      %v1063 = vrot.slane %v1061, 6
      %v1064 = vor.u32 %v1060, %v1063
      %v1065 = vsel %vm1047, %v1056, %v1064
      %v1066 = vrot.slane %v1064, 4
      %v1068 = vshrl.u32 %v1035, 16
      %v1070 = vrot.slane %v1068, 5
      %v1071 = vshll.u32 %v1035, 16
      %v1073 = vrot.slane %v1071, 6
      %v1074 = vor.u32 %v1070, %v1073
      %v1075 = vsel %vm1047, %v1066, %v1074
      %v1076 = vrot.slane %v1074, 4
      %v1078 = vshrl.u32 %v1036, 16
      %v1080 = vrot.slane %v1078, 5
      %v1081 = vshll.u32 %v1036, 16
      %v1083 = vrot.slane %v1081, 6
      %v1084 = vor.u32 %v1080, %v1083
      %v1085 = vsel %vm1047, %v1076, %v1084
      %v1086 = vrot.slane %v1084, 4
      %v1088 = vshrl.u32 %v1037, 16
      %v1090 = vrot.slane %v1088, 5
      %v1091 = vshll.u32 %v1037, 16
      %v1093 = vrot.slane %v1091, 6
      %v1094 = vor.u32 %v1090, %v1093
      %v1095 = vsel %vm1047, %v1086, %v1094
      %v1096 = vrot.slane %v1094, 4
      %v1098 = vshrl.u32 %v1038, 16
      %v1100 = vrot.slane %v1098, 5
      %v1101 = vshll.u32 %v1038, 16
      %v1103 = vrot.slane %v1101, 6
      %v1104 = vor.u32 %v1100, %v1103
      %v1105 = vsel %vm1047, %v1096, %v1104
      %v1106 = vrot.slane %v1104, 4
      %v1108 = vshrl.u32 %v1039, 16
      %v1110 = vrot.slane %v1108, 5
      %v1111 = vshll.u32 %v1039, 16
      %v1113 = vrot.slane %v1111, 6
      %v1114 = vor.u32 %v1110, %v1113
      %v1115 = vsel %vm1047, %v1106, %v1114
      %v1116 = vrot.slane %v1114, 4
      %v1118 = vshrl.u32 %v1040, 16
      %v1120 = vrot.slane %v1118, 5
      %v1121 = vshll.u32 %v1040, 16
      %v1123 = vrot.slane %v1121, 6
      %v1124 = vor.u32 %v1120, %v1123
      %v1125 = vsel %vm1047, %v1116, %v1124
      %v1126 = vrot.slane %v1124, 4
      %v1128 = vshrl.u32 %v1041, 16
      %v1130 = vrot.slane %v1128, 5
      %v1131 = vshll.u32 %v1041, 16
      %v1133 = vrot.slane %v1131, 6
      %v1134 = vor.u32 %v1130, %v1133
      %v1135 = vsel %vm1047, %v1126, %v1134
      %v1136 = vrot.slane %v1134, 4
      %v1138 = vshrl.u32 %v1042, 16
      %v1140 = vrot.slane %v1138, 5
      %v1141 = vshll.u32 %v1042, 16
      %v1143 = vrot.slane %v1141, 6
      %v1144 = vor.u32 %v1140, %v1143
      %v1145 = vsel %vm1047, %v1136, %v1144
      %v1146 = vrot.slane %v1144, 4
      %v1148 = vshrl.u32 %v1043, 16
      %v1150 = vrot.slane %v1148, 5
      %v1151 = vshll.u32 %v1043, 16
      %v1153 = vrot.slane %v1151, 6
      %v1154 = vor.u32 %v1150, %v1153
      %v1155 = vsel %vm1047, %v1146, %v1154
      %v1156 = vrot.slane %v1154, 4
      %v1158 = vshrl.u32 %v1044, 16
      %v1160 = vrot.slane %v1158, 5
      %v1161 = vshll.u32 %v1044, 16
      %v1163 = vrot.slane %v1161, 6
      %v1164 = vor.u32 %v1160, %v1163
      %v1165 = vsel %vm1047, %v1156, %v1164
      %v1166 = vrot.slane %v1164, 4
      %vm1180 = vcmask 125954
      %vm1181 = vsmask.f32 7946
      %vm1182 = vmand %vm1180, %vm1181
      %v1183 = vld [vmem:[%s197 + $0x4] sm:$0xc]
      %v1184 = vsel %vm1182, %v1055, %v1183
      %1185 = vst [vmem:[%s197 + $0x4] sm:$0xc] %v1184
      %1186 = vst.msk [vmem:[%s197 + $0x8] sm:$0xf] %vm990, %v1065
      %1187 = vst.msk [vmem:[%s197 + $0xc] sm:$0xf] %vm990, %v1075
      %1188 = vst.msk [vmem:[%s197 + $0x10] sm:$0xf] %vm990, %v1085
      %1189 = vst.msk [vmem:[%s197 + $0x14] sm:$0xf] %vm990, %v1095
      %1190 = vst.msk [vmem:[%s197 + $0x18] sm:$0xf] %vm990, %v1105
      %1191 = vst.msk [vmem:[%s197 + $0x1c] sm:$0xf] %vm990, %v1115
      %1192 = vst.msk [vmem:[%s197 + $0x20] sm:$0xf] %vm990, %v1125
      %1193 = vst.msk [vmem:[%s197 + $0x24] sm:$0xf] %vm990, %v1135
      %1194 = vst.msk [vmem:[%s197 + $0x28] sm:$0xf] %vm990, %v1145
      %1195 = vst.msk [vmem:[%s197 + $0x2c] sm:$0xf] %vm990, %v1155
      %1196 = vst.msk [vmem:[%s197 + $0x30] sm:$0xf] %vm990, %v1165
      %vm1197 = vcmask 124928
      %vm1198 = vmand %vm1197, %vm1045
      %v1199 = vld [vmem:[%s197 + $0x34] sm:$0x7]
      %v1200 = vsel %vm1198, %v1166, %v1199
      %1201 = vst [vmem:[%s197 + $0x34] sm:$0x7] %v1200
      %p1202 = scmp.lt.s32.totalorder %s15, 1
      %s1203 = scalar_select %p1202, %s15, 1
      %s1204 = smul.addr %s1203, 18
      %s1205 = smul.addr %s1204, 4
      %s1206 = scalar_lea.vmem %s4, %s1205
      // Predicated region
      $region37: #{encoder_forward.3} parent=35 // pred_check
        %p1207 = pneg %p122
      $region38: #{encoder_forward.3} parent=35 // pred_check_branch
        %1209 = sbr.rel (%p1207) target = $region40
      $region39: #{encoder_forward.3} parent=35 // pred_region
        _
      $region40: #{encoder_forward.3} parent=35 // pred_fallthru
        _
    $region36: #{encoder_forward.3} parent=5 // pred_fallthru
      _
    %p1210 = scmp.le.s32.totalorder 2, %s10
    // Predicated region
    $region41: #{encoder_forward.3} parent=5 // pred_check
      %p1211 = pneg %p1210
    $region42: #{encoder_forward.3} parent=5 // pred_check_branch
      %1213 = sbr.rel (%p1211) target = $region44
    $region43: #{encoder_forward.3} parent=5 // pred_region
      %s1214 = ssub.s32 %s10, 2
      // Predicated region
      $region45: #{encoder_forward.3} parent=43 // pred_check
        %p1215 = pneg %p128
      $region46: #{encoder_forward.3} parent=43 // pred_check_branch
        %1217 = sbr.rel (%p1215) target = $region48
      $region47: #{encoder_forward.3} parent=43 // pred_region
        %p1218 = scmp.lt.s32.totalorder %s16, 1
        %s1219 = scalar_select %p1218, %s16, 1
        %s1220 = smul.addr %s1219, 18
        %s1221 = smul.addr %s1220, 4
        %s1222 = scalar_lea.vmem %s4, %s1221
      $region48: #{encoder_forward.3} parent=43 // pred_fallthru
        _
    $region44: #{encoder_forward.3} parent=5 // pred_fallthru
      _
  $region6: #{encoder_forward.3} parent=0 // loop_footer
    %s14 = sadd.s32 1, %s10
  $region7: #{encoder_forward.3} parent=0 // loop_footer_branch
    %9 = sbr.rel target = $region3
  $region8: #{encoder_forward.3} parent=0 // loop_exit
    _

// kernel: encoder_forward.5
$region0: #{encoder_forward.5}
  #allocation0 [shape = 'u32[]', space=smem, size = 0x4, offset = 0x4, fixed_abs, tag = 'smem constant byte address 0x4 - core index']
  #allocation1 [shape = 'u32[144,128]{1,0:T(1,128)}', space=vmem, size = 0x12000, scoped, tag = 'internal scratch']
  #allocation2 [shape = 'bf16[40,32]{1,0:T(8,128)(2,1)}', space=vmem, size = 0x2800, scoped, tag = 'scratch operand']
  #allocation3 [shape = 'bf16[40,32]{1,0:T(8,128)(2,1)}', space=vmem, size = 0x2800, scoped, tag = 'scratch operand']
  %s0 = inlined_call_operand.vmem [shape: bf16[2,40,32], index: 0, kind: input, shape index: {}]
  %s1 = inlined_call_operand.vmem [shape: f32[24,1], index: 1, kind: input, shape index: {}]
  %s2 = inlined_call_operand.vmem [shape: bf16[9,32,32], index: 2, kind: input, shape index: {}]
  %s3 = inlined_call_operand.vmem [shape: f32[1,32], index: 3, kind: input, shape index: {}]
  %s4 = inlined_call_operand.vmem [shape: bf16[9,32,8], index: 4, kind: input, shape index: {}]
  %s5 = inlined_call_operand.vmem [shape: f32[1,8], index: 5, kind: input, shape index: {}]
  %s6 = inlined_call_operand.vmem [shape: bf16[1,8,32], index: 6, kind: input, shape index: {}]
  %s7 = inlined_call_operand.vmem [shape: f32[1,32], index: 7, kind: input, shape index: {}]
  %s8 = inlined_call_operand.vmem [shape: bf16[9,32,8], index: 8, kind: input, shape index: {}]
  %s9 = inlined_call_operand.vmem [shape: f32[1,8], index: 9, kind: input, shape index: {}]
  %s10 = inlined_call_operand.vmem [shape: bf16[1,8,32], index: 10, kind: input, shape index: {}]
  %s11 = inlined_call_operand.vmem [shape: f32[1,32], index: 11, kind: input, shape index: {}]
  %s12 = inlined_call_operand.vmem [shape: bf16[1,32,4], index: 12, kind: input, shape index: {}]
  %s13 = inlined_call_operand.vmem [shape: f32[1,4], index: 13, kind: input, shape index: {}]
  %s14 = inlined_call_operand.vmem [shape: f32[2,24,4], index: 14, kind: output, shape index: {}]
  %s15 = sld [smem:[#allocation0]]
  $region89: #{encoder_forward.5} parent=0
    _
  %s17 = ssub.s32 1, %s15
  %s18 = scalar_select 0, %s17, %s15
  loop: start=0, step=1, limit=4
  $region2: #{encoder_forward.5} parent=0 // loop_pre_header
    _
  $region3: #{encoder_forward.5} parent=0 // loop_header
    %s20 = sphi 0, %s24
    %p21 = scmp.ge.s32.totalorder %s20, 4
    %s30 = sphi 0, %s32
    %s33 = sphi 0, %s30
    %s34 = sphi 0, %s33
    %s50 = sphi 0, %s34
    %s54 = sphi 0, %s54
    %s56 = sphi 0, %s54
    %s57 = sphi 0, %s56
    %s71 = sphi 0, %s57
    %s75 = sphi 0, %s75
    %s77 = sphi 0, %s75
    %s78 = sphi 0, %s77
    %s92 = sphi 0, %s78
    %s96 = sphi 0, %s96
    %s98 = sphi 0, %s96
    %s99 = sphi 0, %s98
    %s113 = sphi 0, %s99
    %s117 = sphi 0, %s117
    %s119 = sphi 0, %s117
    %s120 = sphi 0, %s119
    %s134 = sphi 0, %s120
    %s138 = sphi 0, %s138
    %s140 = sphi 0, %s138
    %s141 = sphi 0, %s140
    %s155 = sphi 0, %s141
    %s159 = sphi 0, %s159
    %s161 = sphi 0, %s159
    %s162 = sphi 0, %s161
    %s176 = sphi 0, %s162
    %s180 = sphi 0, %s180
    %s182 = sphi 0, %s180
    %s183 = sphi 0, %s182
    %s197 = sphi 0, %s183
    %s201 = sphi 0, %s201
    %s203 = sphi 0, %s201
    %s204 = sphi 0, %s203
    %s218 = sphi 0, %s204
    %s222 = sphi 0, %s222
    %s224 = sphi 0, %s222
    %s225 = sphi 0, %s224
    %s239 = sphi 0, %s225
    %s243 = sphi 0, %s243
    %s245 = sphi 0, %s243
    %s246 = sphi 0, %s245
    %s260 = sphi 0, %s246
    %s264 = sphi 0, %s264
    %s266 = sphi 0, %s264
    %s267 = sphi 0, %s266
    %s281 = sphi 0, %s267
    %s285 = sphi 0, %s285
    %s287 = sphi 0, %s285
    %s288 = sphi 0, %s287
    %s302 = sphi 0, %s288
    %s306 = sphi 0, %s306
    %s308 = sphi 0, %s306
    %s309 = sphi 0, %s308
    %s323 = sphi 0, %s309
    %s329 = sphi 0, %s331
    %s332 = sphi 0, %s329
    %s333 = sphi 0, %s332
    %s349 = sphi 0, %s333
  $region4: #{encoder_forward.5} parent=0 // loop_header_branch
    %23 = sbr.rel (%p21) target = $region8
  $region5: #{encoder_forward.5} parent=0 // loop_body
    %s25 = ssub.s32 %s20, 1
    %s26 = ssub.s32 %s20, 2
    %s27 = sadd.s32 %s20, 1
    %s28 = ssub.s32 %s20, %s27
    %p29 = scmp.eq.s32.totalorder %s28, 0
    %s31 = sadd.s32 %s30, 1
    %s32 = scalar_select %p29, %s30, %s31
    %p35 = pneg %p29
    %p36 = scmp.eq.s32.totalorder %s20, 1
    %p37 = por %p35, %p36
    %p38 = scmp.ne.s32.totalorder %s30, %s33
    %p39 = scmp.eq.s32.totalorder %s20, 0
    %p40 = por %p38, %p39
    %p41 = scmp.ne.s32.totalorder %s30, %s33
    %p42 = scmp.eq.s32.totalorder %s25, 1
    %p43 = por %p41, %p42
    %p44 = scmp.ne.s32.totalorder %s33, %s34
    %p45 = scmp.eq.s32.totalorder %s25, 0
    %p46 = por %p44, %p45
    %p47 = scmp.ne.s32.totalorder %s33, %s34
    %p48 = scmp.eq.s32.totalorder %s26, 1
    %p49 = por %p47, %p48
    %p51 = scmp.ne.s32.totalorder %s34, %s50
    %p52 = scmp.eq.s32.totalorder %s26, 0
    %p53 = por %p51, %p52
    %s55 = sadd.s32 %s54, 1
    %p58 = scmp.eq.s32.totalorder %s20, 1
    %p59 = scmp.ne.s32.totalorder %s54, %s56
    %p60 = scmp.eq.s32.totalorder %s20, 0
    %p61 = por %p59, %p60
    %p62 = scmp.ne.s32.totalorder %s54, %s56
    %p63 = scmp.eq.s32.totalorder %s25, 1
    %p64 = por %p62, %p63
    %p65 = scmp.ne.s32.totalorder %s56, %s57
    %p66 = scmp.eq.s32.totalorder %s25, 0
    %p67 = por %p65, %p66
    %p68 = scmp.ne.s32.totalorder %s56, %s57
    %p69 = scmp.eq.s32.totalorder %s26, 1
    %p70 = por %p68, %p69
    %p72 = scmp.ne.s32.totalorder %s57, %s71
    %p73 = scmp.eq.s32.totalorder %s26, 0
    %p74 = por %p72, %p73
    %s76 = sadd.s32 %s75, 1
    %p79 = scmp.eq.s32.totalorder %s20, 1
    %p80 = scmp.ne.s32.totalorder %s75, %s77
    %p81 = scmp.eq.s32.totalorder %s20, 0
    %p82 = por %p80, %p81
    %p83 = scmp.ne.s32.totalorder %s75, %s77
    %p84 = scmp.eq.s32.totalorder %s25, 1
    %p85 = por %p83, %p84
    %p86 = scmp.ne.s32.totalorder %s77, %s78
    %p87 = scmp.eq.s32.totalorder %s25, 0
    %p88 = por %p86, %p87
    %p89 = scmp.ne.s32.totalorder %s77, %s78
    %p90 = scmp.eq.s32.totalorder %s26, 1
    %p91 = por %p89, %p90
    %p93 = scmp.ne.s32.totalorder %s78, %s92
    %p94 = scmp.eq.s32.totalorder %s26, 0
    %p95 = por %p93, %p94
    %s97 = sadd.s32 %s96, 1
    %p100 = scmp.eq.s32.totalorder %s20, 1
    %p101 = scmp.ne.s32.totalorder %s96, %s98
    %p102 = scmp.eq.s32.totalorder %s20, 0
    %p103 = por %p101, %p102
    %p104 = scmp.ne.s32.totalorder %s96, %s98
    %p105 = scmp.eq.s32.totalorder %s25, 1
    %p106 = por %p104, %p105
    %p107 = scmp.ne.s32.totalorder %s98, %s99
    %p108 = scmp.eq.s32.totalorder %s25, 0
    %p109 = por %p107, %p108
    %p110 = scmp.ne.s32.totalorder %s98, %s99
    %p111 = scmp.eq.s32.totalorder %s26, 1
    %p112 = por %p110, %p111
    %p114 = scmp.ne.s32.totalorder %s99, %s113
    %p115 = scmp.eq.s32.totalorder %s26, 0
    %p116 = por %p114, %p115
    %s118 = sadd.s32 %s117, 1
    %p121 = scmp.eq.s32.totalorder %s20, 1
    %p122 = scmp.ne.s32.totalorder %s117, %s119
    %p123 = scmp.eq.s32.totalorder %s20, 0
    %p124 = por %p122, %p123
    %p125 = scmp.ne.s32.totalorder %s117, %s119
    %p126 = scmp.eq.s32.totalorder %s25, 1
    %p127 = por %p125, %p126
    %p128 = scmp.ne.s32.totalorder %s119, %s120
    %p129 = scmp.eq.s32.totalorder %s25, 0
    %p130 = por %p128, %p129
    %p131 = scmp.ne.s32.totalorder %s119, %s120
    %p132 = scmp.eq.s32.totalorder %s26, 1
    %p133 = por %p131, %p132
    %p135 = scmp.ne.s32.totalorder %s120, %s134
    %p136 = scmp.eq.s32.totalorder %s26, 0
    %p137 = por %p135, %p136
    %s139 = sadd.s32 %s138, 1
    %p142 = scmp.eq.s32.totalorder %s20, 1
    %p143 = scmp.ne.s32.totalorder %s138, %s140
    %p144 = scmp.eq.s32.totalorder %s20, 0
    %p145 = por %p143, %p144
    %p146 = scmp.ne.s32.totalorder %s138, %s140
    %p147 = scmp.eq.s32.totalorder %s25, 1
    %p148 = por %p146, %p147
    %p149 = scmp.ne.s32.totalorder %s140, %s141
    %p150 = scmp.eq.s32.totalorder %s25, 0
    %p151 = por %p149, %p150
    %p152 = scmp.ne.s32.totalorder %s140, %s141
    %p153 = scmp.eq.s32.totalorder %s26, 1
    %p154 = por %p152, %p153
    %p156 = scmp.ne.s32.totalorder %s141, %s155
    %p157 = scmp.eq.s32.totalorder %s26, 0
    %p158 = por %p156, %p157
    %s160 = sadd.s32 %s159, 1
    %p163 = scmp.eq.s32.totalorder %s20, 1
    %p164 = scmp.ne.s32.totalorder %s159, %s161
    %p165 = scmp.eq.s32.totalorder %s20, 0
    %p166 = por %p164, %p165
    %p167 = scmp.ne.s32.totalorder %s159, %s161
    %p168 = scmp.eq.s32.totalorder %s25, 1
    %p169 = por %p167, %p168
    %p170 = scmp.ne.s32.totalorder %s161, %s162
    %p171 = scmp.eq.s32.totalorder %s25, 0
    %p172 = por %p170, %p171
    %p173 = scmp.ne.s32.totalorder %s161, %s162
    %p174 = scmp.eq.s32.totalorder %s26, 1
    %p175 = por %p173, %p174
    %p177 = scmp.ne.s32.totalorder %s162, %s176
    %p178 = scmp.eq.s32.totalorder %s26, 0
    %p179 = por %p177, %p178
    %s181 = sadd.s32 %s180, 1
    %p184 = scmp.eq.s32.totalorder %s20, 1
    %p185 = scmp.ne.s32.totalorder %s180, %s182
    %p186 = scmp.eq.s32.totalorder %s20, 0
    %p187 = por %p185, %p186
    %p188 = scmp.ne.s32.totalorder %s180, %s182
    %p189 = scmp.eq.s32.totalorder %s25, 1
    %p190 = por %p188, %p189
    %p191 = scmp.ne.s32.totalorder %s182, %s183
    %p192 = scmp.eq.s32.totalorder %s25, 0
    %p193 = por %p191, %p192
    %p194 = scmp.ne.s32.totalorder %s182, %s183
    %p195 = scmp.eq.s32.totalorder %s26, 1
    %p196 = por %p194, %p195
    %p198 = scmp.ne.s32.totalorder %s183, %s197
    %p199 = scmp.eq.s32.totalorder %s26, 0
    %p200 = por %p198, %p199
    %s202 = sadd.s32 %s201, 1
    %p205 = scmp.eq.s32.totalorder %s20, 1
    %p206 = scmp.ne.s32.totalorder %s201, %s203
    %p207 = scmp.eq.s32.totalorder %s20, 0
    %p208 = por %p206, %p207
    %p209 = scmp.ne.s32.totalorder %s201, %s203
    %p210 = scmp.eq.s32.totalorder %s25, 1
    %p211 = por %p209, %p210
    %p212 = scmp.ne.s32.totalorder %s203, %s204
    %p213 = scmp.eq.s32.totalorder %s25, 0
    %p214 = por %p212, %p213
    %p215 = scmp.ne.s32.totalorder %s203, %s204
    %p216 = scmp.eq.s32.totalorder %s26, 1
    %p217 = por %p215, %p216
    %p219 = scmp.ne.s32.totalorder %s204, %s218
    %p220 = scmp.eq.s32.totalorder %s26, 0
    %p221 = por %p219, %p220
    %s223 = sadd.s32 %s222, 1
    %p226 = scmp.eq.s32.totalorder %s20, 1
    %p227 = scmp.ne.s32.totalorder %s222, %s224
    %p228 = scmp.eq.s32.totalorder %s20, 0
    %p229 = por %p227, %p228
    %p230 = scmp.ne.s32.totalorder %s222, %s224
    %p231 = scmp.eq.s32.totalorder %s25, 1
    %p232 = por %p230, %p231
    %p233 = scmp.ne.s32.totalorder %s224, %s225
    %p234 = scmp.eq.s32.totalorder %s25, 0
    %p235 = por %p233, %p234
    %p236 = scmp.ne.s32.totalorder %s224, %s225
    %p237 = scmp.eq.s32.totalorder %s26, 1
    %p238 = por %p236, %p237
    %p240 = scmp.ne.s32.totalorder %s225, %s239
    %p241 = scmp.eq.s32.totalorder %s26, 0
    %p242 = por %p240, %p241
    %s244 = sadd.s32 %s243, 1
    %p247 = scmp.eq.s32.totalorder %s20, 1
    %p248 = scmp.ne.s32.totalorder %s243, %s245
    %p249 = scmp.eq.s32.totalorder %s20, 0
    %p250 = por %p248, %p249
    %p251 = scmp.ne.s32.totalorder %s243, %s245
    %p252 = scmp.eq.s32.totalorder %s25, 1
    %p253 = por %p251, %p252
    %p254 = scmp.ne.s32.totalorder %s245, %s246
    %p255 = scmp.eq.s32.totalorder %s25, 0
    %p256 = por %p254, %p255
    %p257 = scmp.ne.s32.totalorder %s245, %s246
    %p258 = scmp.eq.s32.totalorder %s26, 1
    %p259 = por %p257, %p258
    %p261 = scmp.ne.s32.totalorder %s246, %s260
    %p262 = scmp.eq.s32.totalorder %s26, 0
    %p263 = por %p261, %p262
    %s265 = sadd.s32 %s264, 1
    %p268 = scmp.eq.s32.totalorder %s20, 1
    %p269 = scmp.ne.s32.totalorder %s264, %s266
    %p270 = scmp.eq.s32.totalorder %s20, 0
    %p271 = por %p269, %p270
    %p272 = scmp.ne.s32.totalorder %s264, %s266
    %p273 = scmp.eq.s32.totalorder %s25, 1
    %p274 = por %p272, %p273
    %p275 = scmp.ne.s32.totalorder %s266, %s267
    %p276 = scmp.eq.s32.totalorder %s25, 0
    %p277 = por %p275, %p276
    %p278 = scmp.ne.s32.totalorder %s266, %s267
    %p279 = scmp.eq.s32.totalorder %s26, 1
    %p280 = por %p278, %p279
    %p282 = scmp.ne.s32.totalorder %s267, %s281
    %p283 = scmp.eq.s32.totalorder %s26, 0
    %p284 = por %p282, %p283
    %s286 = sadd.s32 %s285, 1
    %p289 = scmp.eq.s32.totalorder %s20, 1
    %p290 = scmp.ne.s32.totalorder %s285, %s287
    %p291 = scmp.eq.s32.totalorder %s20, 0
    %p292 = por %p290, %p291
    %p293 = scmp.ne.s32.totalorder %s285, %s287
    %p294 = scmp.eq.s32.totalorder %s25, 1
    %p295 = por %p293, %p294
    %p296 = scmp.ne.s32.totalorder %s287, %s288
    %p297 = scmp.eq.s32.totalorder %s25, 0
    %p298 = por %p296, %p297
    %p299 = scmp.ne.s32.totalorder %s287, %s288
    %p300 = scmp.eq.s32.totalorder %s26, 1
    %p301 = por %p299, %p300
    %p303 = scmp.ne.s32.totalorder %s288, %s302
    %p304 = scmp.eq.s32.totalorder %s26, 0
    %p305 = por %p303, %p304
    %s307 = sadd.s32 %s306, 1
    %p310 = scmp.eq.s32.totalorder %s20, 1
    %p311 = scmp.ne.s32.totalorder %s306, %s308
    %p312 = scmp.eq.s32.totalorder %s20, 0
    %p313 = por %p311, %p312
    %p314 = scmp.ne.s32.totalorder %s306, %s308
    %p315 = scmp.eq.s32.totalorder %s25, 1
    %p316 = por %p314, %p315
    %p317 = scmp.ne.s32.totalorder %s308, %s309
    %p318 = scmp.eq.s32.totalorder %s25, 0
    %p319 = por %p317, %p318
    %p320 = scmp.ne.s32.totalorder %s308, %s309
    %p321 = scmp.eq.s32.totalorder %s26, 1
    %p322 = por %p320, %p321
    %p324 = scmp.ne.s32.totalorder %s309, %s323
    %p325 = scmp.eq.s32.totalorder %s26, 0
    %p326 = por %p324, %p325
    %s327 = ssub.s32 %s20, %s27
    %p328 = scmp.eq.s32.totalorder %s327, 0
    %s330 = sadd.s32 %s329, 1
    %s331 = scalar_select %p328, %s329, %s330
    %p334 = pneg %p328
    %p335 = scmp.eq.s32.totalorder %s20, 1
    %p336 = por %p334, %p335
    %p337 = scmp.ne.s32.totalorder %s329, %s332
    %p338 = scmp.eq.s32.totalorder %s20, 0
    %p339 = por %p337, %p338
    %p340 = scmp.ne.s32.totalorder %s329, %s332
    %p341 = scmp.eq.s32.totalorder %s25, 1
    %p342 = por %p340, %p341
    %p343 = scmp.ne.s32.totalorder %s332, %s333
    %p344 = scmp.eq.s32.totalorder %s25, 0
    %p345 = por %p343, %p344
    %p346 = scmp.ne.s32.totalorder %s332, %s333
    %p347 = scmp.eq.s32.totalorder %s26, 1
    %p348 = por %p346, %p347
    %p350 = scmp.ne.s32.totalorder %s333, %s349
    %p351 = scmp.eq.s32.totalorder %s26, 0
    %p352 = por %p350, %p351
    %p353 = scmp.le.s32.totalorder 1, %s20
    %p354 = scmp.lt.s32.totalorder %s20, 3
    %p355 = pnand %p353, %p354
    %p356 = pneg %p355
    // Predicated region
    $region9: #{encoder_forward.5} parent=5 // pred_check
      _
    $region10: #{encoder_forward.5} parent=5 // pred_check_branch
      %358 = sbr.rel (%p355) target = $region12
    $region11: #{encoder_forward.5} parent=5 // pred_region
      %s359 = ssub.s32 %s20, 1
      // Predicated region
      $region13: #{encoder_forward.5} parent=11 // pred_check
        %p360 = pneg %p67
      $region14: #{encoder_forward.5} parent=11 // pred_check_branch
        %362 = sbr.rel (%p360) target = $region16
      $region15: #{encoder_forward.5} parent=11 // pred_region
        _
      $region16: #{encoder_forward.5} parent=11 // pred_fallthru
        _
      // Predicated region
      $region17: #{encoder_forward.5} parent=11 // pred_check
        %p363 = pneg %p88
      $region18: #{encoder_forward.5} parent=11 // pred_check_branch
        %365 = sbr.rel (%p363) target = $region20
      $region19: #{encoder_forward.5} parent=11 // pred_region
        _
      $region20: #{encoder_forward.5} parent=11 // pred_fallthru
        _
      // Predicated region
      $region21: #{encoder_forward.5} parent=11 // pred_check
        %p366 = pneg %p109
      $region22: #{encoder_forward.5} parent=11 // pred_check_branch
        %368 = sbr.rel (%p366) target = $region24
      $region23: #{encoder_forward.5} parent=11 // pred_region
        _
      $region24: #{encoder_forward.5} parent=11 // pred_fallthru
        _
      // Predicated region
      $region25: #{encoder_forward.5} parent=11 // pred_check
        %p369 = pneg %p130
      $region26: #{encoder_forward.5} parent=11 // pred_check_branch
        %371 = sbr.rel (%p369) target = $region28
      $region27: #{encoder_forward.5} parent=11 // pred_region
        _
      $region28: #{encoder_forward.5} parent=11 // pred_fallthru
        _
      // Predicated region
      $region29: #{encoder_forward.5} parent=11 // pred_check
        %p372 = pneg %p151
      $region30: #{encoder_forward.5} parent=11 // pred_check_branch
        %374 = sbr.rel (%p372) target = $region32
      $region31: #{encoder_forward.5} parent=11 // pred_region
        _
      $region32: #{encoder_forward.5} parent=11 // pred_fallthru
        _
      // Predicated region
      $region33: #{encoder_forward.5} parent=11 // pred_check
        %p375 = pneg %p172
      $region34: #{encoder_forward.5} parent=11 // pred_check_branch
        %377 = sbr.rel (%p375) target = $region36
      $region35: #{encoder_forward.5} parent=11 // pred_region
        _
      $region36: #{encoder_forward.5} parent=11 // pred_fallthru
        _
      // Predicated region
      $region37: #{encoder_forward.5} parent=11 // pred_check
        %p378 = pneg %p193
      $region38: #{encoder_forward.5} parent=11 // pred_check_branch
        %380 = sbr.rel (%p378) target = $region40
      $region39: #{encoder_forward.5} parent=11 // pred_region
        _
      $region40: #{encoder_forward.5} parent=11 // pred_fallthru
        _
      // Predicated region
      $region41: #{encoder_forward.5} parent=11 // pred_check
        %p381 = pneg %p214
      $region42: #{encoder_forward.5} parent=11 // pred_check_branch
        %383 = sbr.rel (%p381) target = $region44
      $region43: #{encoder_forward.5} parent=11 // pred_region
        _
      $region44: #{encoder_forward.5} parent=11 // pred_fallthru
        _
      // Predicated region
      $region45: #{encoder_forward.5} parent=11 // pred_check
        %p384 = pneg %p235
      $region46: #{encoder_forward.5} parent=11 // pred_check_branch
        %386 = sbr.rel (%p384) target = $region48
      $region47: #{encoder_forward.5} parent=11 // pred_region
        _
      $region48: #{encoder_forward.5} parent=11 // pred_fallthru
        _
      // Predicated region
      $region49: #{encoder_forward.5} parent=11 // pred_check
        %p387 = pneg %p256
      $region50: #{encoder_forward.5} parent=11 // pred_check_branch
        %389 = sbr.rel (%p387) target = $region52
      $region51: #{encoder_forward.5} parent=11 // pred_region
        _
      $region52: #{encoder_forward.5} parent=11 // pred_fallthru
        _
      // Predicated region
      $region53: #{encoder_forward.5} parent=11 // pred_check
        %p390 = pneg %p277
      $region54: #{encoder_forward.5} parent=11 // pred_check_branch
        %392 = sbr.rel (%p390) target = $region56
      $region55: #{encoder_forward.5} parent=11 // pred_region
        _
      $region56: #{encoder_forward.5} parent=11 // pred_fallthru
        _
      // Predicated region
      $region57: #{encoder_forward.5} parent=11 // pred_check
        %p393 = pneg %p298
      $region58: #{encoder_forward.5} parent=11 // pred_check_branch
        %395 = sbr.rel (%p393) target = $region60
      $region59: #{encoder_forward.5} parent=11 // pred_region
        _
      $region60: #{encoder_forward.5} parent=11 // pred_fallthru
        _
      // Predicated region
      $region61: #{encoder_forward.5} parent=11 // pred_check
        %p396 = pneg %p319
      $region62: #{encoder_forward.5} parent=11 // pred_check_branch
        %398 = sbr.rel (%p396) target = $region64
      $region63: #{encoder_forward.5} parent=11 // pred_region
        _
      $region64: #{encoder_forward.5} parent=11 // pred_fallthru
        _
    $region12: #{encoder_forward.5} parent=5 // pred_fallthru
      _
    %p399 = scmp.lt.s32.totalorder %s20, 2
    // Predicated region
    $region65: #{encoder_forward.5} parent=5 // pred_check
      %p400 = pneg %p399
    $region66: #{encoder_forward.5} parent=5 // pred_check_branch
      %402 = sbr.rel (%p400) target = $region68
    $region67: #{encoder_forward.5} parent=5 // pred_region
      // Predicated region
      $region69: #{encoder_forward.5} parent=67 // pred_check
        %p403 = pneg %p40
      $region70: #{encoder_forward.5} parent=67 // pred_check_branch
        %405 = sbr.rel (%p403) target = $region72
      $region71: #{encoder_forward.5} parent=67 // pred_region
        %p406 = scmp.lt.s32.totalorder %s20, 1
        %s407 = scalar_select %p406, %s20, 1
        %s408 = smul.addr %s407, 5
        %s409 = smul.addr %s408, 4
        %s410 = scalar_lea.vmem %s0, %s409
      $region72: #{encoder_forward.5} parent=67 // pred_fallthru
        _
    $region68: #{encoder_forward.5} parent=5 // pred_fallthru
      _
    %p411 = scmp.le.s32.totalorder 1, %s20
    %p412 = scmp.lt.s32.totalorder %s20, 3
    %p413 = pnand %p411, %p412
    %p414 = pneg %p413
    // Predicated region
    $region73: #{encoder_forward.5} parent=5 // pred_check
      _
    $region74: #{encoder_forward.5} parent=5 // pred_check_branch
      %416 = sbr.rel (%p413) target = $region76
    $region75: #{encoder_forward.5} parent=5 // pred_region
      %s417 = ssub.s32 %s20, 1
      %p418 = scmp.lt.s32.totalorder %s25, 1
      %s419 = scalar_select %p418, %s25, 1
      %s420 = smul.addr %s419, 5
      %s421 = smul.addr %s420, 4
      %s422 = scalar_lea.vmem %s0, %s421
      %p423 = pneg %p46
      %p424 = pneg %p43
      %p425 = pneg %p67
      %p426 = pneg %p64
      %p427 = pneg %p88
      %p428 = pneg %p85
      %p429 = pneg %p109
      %p430 = pneg %p106
      %p431 = pneg %p130
      %p432 = pneg %p127
      %p433 = pneg %p151
      %p434 = pneg %p148
      %p435 = pneg %p172
      %p436 = pneg %p169
      %p437 = pneg %p193
      %p438 = pneg %p190
      %p439 = pneg %p214
      %p440 = pneg %p211
      %p441 = pneg %p235
      %p442 = pneg %p232
      %p443 = pneg %p256
      %p444 = pneg %p253
      %p445 = pneg %p277
      %p446 = pneg %p274
      %p447 = pneg %p298
      %p448 = pneg %p295
      %p449 = pneg %p319
      %p450 = pneg %p316
      %p451 = pneg %p345
      %p452 = pneg %p342
      %p453 = scmp.lt.s32.totalorder %s25, 1
      %s454 = scalar_select %p453, %s25, 1
      %s455 = smul.addr %s454, 3
      %s456 = smul.addr %s455, 8
      %s457 = scalar_lea.vmem %s14, %s456
      %p458 = scmp.lt.s32.totalorder %s25, 1
      %s459 = scalar_select %p458, %s25, 1
      %s460 = smul.addr %s459, 5
      %s461 = smul.addr %s460, 4
      %s462 = scalar_lea.vmem %s0, %s461
      %p463 = scmp.lt.s32.totalorder %s25, 1
      %s464 = scalar_select %p463, %s25, 1
      %s465 = smul.addr %s464, 3
      %s466 = smul.addr %s465, 8
      %s467 = scalar_lea.vmem %s14, %s466
      %v469 = vld [vmem:[%s1] sm:$0xff]
      %v470 = vld [vmem:[%s1 + $0x8] sm:$0xff]
      %v471 = vld [vmem:[%s1 + $0x10] sm:$0xff]
      %v472 = vld [vmem:[%s462] sm:$0xf]
      %v473 = vld [vmem:[%s462 + $0x4] sm:$0xf]
      %v474 = vld [vmem:[%s462 + $0x8] sm:$0xf]
      %v475 = vld [vmem:[%s2] sm:$0xf]
      %v476 = vld [vmem:[%s2 + $0x4] sm:$0xf]
      %v477 = vld [vmem:[%s2 + $0x8] sm:$0xf]
      %v478 = vld [vmem:[%s2 + $0xc] sm:$0xf]
      %v479 = vld [vmem:[%s462 + $0xc] sm:$0x1]
      %s480 = scalar_lea.vmem %s2, 16
      %v481 = vld [vmem:[%s480] sm:$0xf]
      %v482 = vld [vmem:[%s480 + $0x4] sm:$0xf]
      %v483 = vld [vmem:[%s480 + $0x8] sm:$0xf]
      %v484 = vld [vmem:[%s480 + $0xc] sm:$0xf]
      %v489 = vunpack.c.l.b16 %v472
      %v490 = vunpack.c.l.b16 %v473
      %v491 = vunpack.c.l.b16 %v474
      %v492 = vunpack.c.l.b16 %v479
      %v493 = vpack.c.b16 %v490, %v489
      %v494 = vpack.c.b16 %v492, %v491
      %vm495 = vsmask.f32 7424
      %v497 = vshrl.u32 %v493, 16
      %v499 = vshll.u32 %v493, 16
      %v501 = vrot.slane %v499, 1
      %v502 = vor.u32 %v497, %v501
      %v504 = vshll.u32 %v494, 16
      %v506 = vrot.slane %v504, 1
      %v507 = vsel %vm495, %v502, %v506
      %v508 = vshrl.u32 %v494, 16
      %v510 = vor.u32 %v508, %v506
      %v515 = vunpack.c.l.b16 %v481
      %v516 = vunpack.c.l.b16 %v482
      %v517 = vunpack.c.l.b16 %v483
      %v518 = vunpack.c.l.b16 %v484
      %v519 = vpack.c.b16 %v516, %v515
      %v520 = vpack.c.b16 %v518, %v517
      %vm523 = vcmask 261120
      %v525 = vsel %vm523, %v507, 0
      %v528 = vsel %vm523, %v510, 0
      %530 = vmatprep.subr.bf16.mxu0 0
      %531 = vmatpush1.bf16.msra.mxu0 %v519
      %532 = vmatprep.subr.bf16.mxu0 0
      %533 = vmatpush1.bf16.msra.mxu0 %v520
      %534 = vmatprep.subr.bf16.mxu0 0
      %535 = vmatpush1.bf16.msra.mxu0 0
      %536 = vmatprep.subr.bf16.mxu0 0
      %537 = vmatpush1.bf16.msra.mxu0 0
      %538 = vmatprep.subr.bf16.mxu0 0
      %539 = vmatpush1.bf16.msra.mxu0 0
      %540 = vmatprep.subr.bf16.mxu0 0
      %541 = vmatpush1.bf16.msra.mxu0 0
      %542 = vmatprep.subr.bf16.mxu0 0
      %543 = vmatpush1.bf16.msra.mxu0 0
      %544 = vmatprep.subr.bf16.mxu0 0
      %545 = vmatpush1.bf16.msra.mxu0 0
      %546 = vmatprep.subr.bf16.mxu0 0
      %547 = vmatpush1.bf16.msra.mxu0 0
      %548 = vmatprep.subr.bf16.mxu0 0
      %549 = vmatpush1.bf16.msra.mxu0 0
      %550 = vmatprep.subr.bf16.mxu0 0
      %551 = vmatpush1.bf16.msra.mxu0 0
      %552 = vmatprep.subr.bf16.mxu0 0
      %553 = vmatpush1.bf16.msra.mxu0 0
      %554 = vmatprep.subr.bf16.mxu0 0
      %555 = vmatpush1.bf16.msra.mxu0 0
      %556 = vmatprep.subr.bf16.mxu0 0
      %557 = vmatpush1.bf16.msra.mxu0 0
      %558 = vmatprep.subr.bf16.mxu0 0
      %559 = vmatpush1.bf16.msra.mxu0 0
      %560 = vmatprep.subr.bf16.mxu0 0
      %561 = vmatpush1.bf16.msra.mxu0 0
      %562 = vmatprep.mubr.bf16.mxu0 0
      %563 = vmatmul.mubr.bf16.gmra.mrb[0].mxu0 %v525
      %v564 = vpop.f32.mrb[0].mxu0
      %v565 = vadd.f32 0.0, %v564
      %v566 = vpop.f32.mrb[0].mxu0
      %v567 = vpop.f32.mrb[0].mxu0
      %v568 = vadd.f32 0.0, %v567
      %v569 = vpop.f32.mrb[0].mxu0
      %570 = vmatprep.mubr.bf16.mxu0 0
      %571 = vmatmul.mubr.bf16.gmra.mrb[0].mxu0 %v528
      %v572 = vpop.f32.mrb[0].mxu0
      %v573 = vadd.f32 0.0, %v572
      %v574 = vpop.f32.mrb[0].mxu0
      %v575 = vpop.f32.mrb[0].mxu0
      %v576 = vpop.f32.mrb[0].mxu0
      %577 = vdwg.mxu0
      %v578 = vpack.c.b16 %v491, %v491
      %v583 = vunpack.c.l.b16 %v475
      %v584 = vunpack.c.l.b16 %v476
      %v585 = vunpack.c.l.b16 %v477
      %v586 = vunpack.c.l.b16 %v478
      %v587 = vpack.c.b16 %v584, %v583
      %v588 = vpack.c.b16 %v586, %v585
      %v591 = vsel %vm523, %v493, 0
      %v594 = vsel %vm523, %v578, 0
      %596 = vmatprep.subr.bf16.mxu0 0
      %597 = vmatpush1.bf16.msra.mxu0 %v587
      %598 = vmatprep.subr.bf16.mxu0 0
      %599 = vmatpush1.bf16.msra.mxu0 %v588
      %600 = vmatprep.subr.bf16.mxu0 0
      %601 = vmatpush1.bf16.msra.mxu0 0
      %602 = vmatprep.subr.bf16.mxu0 0
      %603 = vmatpush1.bf16.msra.mxu0 0
      %604 = vmatprep.subr.bf16.mxu0 0
      %605 = vmatpush1.bf16.msra.mxu0 0
      %606 = vmatprep.subr.bf16.mxu0 0
      %607 = vmatpush1.bf16.msra.mxu0 0
      %608 = vmatprep.subr.bf16.mxu0 0
      %609 = vmatpush1.bf16.msra.mxu0 0
      %610 = vmatprep.subr.bf16.mxu0 0
      %611 = vmatpush1.bf16.msra.mxu0 0
      %612 = vmatprep.subr.bf16.mxu0 0
      %613 = vmatpush1.bf16.msra.mxu0 0
      %614 = vmatprep.subr.bf16.mxu0 0
      %615 = vmatpush1.bf16.msra.mxu0 0
      %616 = vmatprep.subr.bf16.mxu0 0
      %617 = vmatpush1.bf16.msra.mxu0 0
      %618 = vmatprep.subr.bf16.mxu0 0
      %619 = vmatpush1.bf16.msra.mxu0 0
      %620 = vmatprep.subr.bf16.mxu0 0
      %621 = vmatpush1.bf16.msra.mxu0 0
      %622 = vmatprep.subr.bf16.mxu0 0
      %623 = vmatpush1.bf16.msra.mxu0 0
      %624 = vmatprep.subr.bf16.mxu0 0
      %625 = vmatpush1.bf16.msra.mxu0 0
      %626 = vmatprep.subr.bf16.mxu0 0
      %627 = vmatpush1.bf16.msra.mxu0 0
      %628 = vmatprep.mubr.bf16.mxu0 0
      %629 = vmatmul.mubr.bf16.gmra.mrb[0].mxu0 %v591
      %v630 = vpop.f32.mrb[0].mxu0
      %v631 = vadd.f32 %v565, %v630
      %v632 = vpop.f32.mrb[0].mxu0
      %v633 = vpop.f32.mrb[0].mxu0
      %v634 = vadd.f32 %v568, %v633
      %v635 = vpop.f32.mrb[0].mxu0
      %636 = vmatprep.mubr.bf16.mxu0 0
      %637 = vmatmul.mubr.bf16.gmra.mrb[0].mxu0 %v594
      %v638 = vpop.f32.mrb[0].mxu0
      %v639 = vadd.f32 %v573, %v638
      %v640 = vpop.f32.mrb[0].mxu0
      %v641 = vpop.f32.mrb[0].mxu0
      %v642 = vpop.f32.mrb[0].mxu0
      %643 = vdwg.mxu0
      %v644 = vld [vmem:[%s462] sm:$0xe]
      %s645 = scalar_lea.vmem %s2, 32
      %v646 = vld [vmem:[%s645] sm:$0xf]
      %v647 = vld [vmem:[%s645 + $0x4] sm:$0xf]
      %v648 = vld [vmem:[%s645 + $0x8] sm:$0xf]
      %v649 = vld [vmem:[%s645 + $0xc] sm:$0xf]
      %v651 = vunpack.c.l.b16 %v644
      %v652 = vpack.c.b16 %v490, %v651
      %vm653 = vcmask 1046528
      %v654 = vrot.slane %v652, 1
      %v655 = vrot.slane %v494, 1
      %v656 = vsel %vm653, %v654, %v655
      %v661 = vunpack.c.l.b16 %v646
      %v662 = vunpack.c.l.b16 %v647
      %v663 = vunpack.c.l.b16 %v648
      %v664 = vunpack.c.l.b16 %v649
      %v665 = vpack.c.b16 %v662, %v661
      %v666 = vpack.c.b16 %v664, %v663
      %v670 = vsel %vm523, %v656, 0
      %v673 = vsel %vm523, %v655, 0
      %675 = vmatprep.subr.bf16.mxu0 0
      %676 = vmatpush1.bf16.msra.mxu0 %v665
      %677 = vmatprep.subr.bf16.mxu0 0
      %678 = vmatpush1.bf16.msra.mxu0 %v666
      %679 = vmatprep.subr.bf16.mxu0 0
      %680 = vmatpush1.bf16.msra.mxu0 0
      %681 = vmatprep.subr.bf16.mxu0 0
      %682 = vmatpush1.bf16.msra.mxu0 0
      %683 = vmatprep.subr.bf16.mxu0 0
      %684 = vmatpush1.bf16.msra.mxu0 0
      %685 = vmatprep.subr.bf16.mxu0 0
      %686 = vmatpush1.bf16.msra.mxu0 0
      %687 = vmatprep.subr.bf16.mxu0 0
      %688 = vmatpush1.bf16.msra.mxu0 0
      %689 = vmatprep.subr.bf16.mxu0 0
      %690 = vmatpush1.bf16.msra.mxu0 0
      %691 = vmatprep.subr.bf16.mxu0 0
      %692 = vmatpush1.bf16.msra.mxu0 0
      %693 = vmatprep.subr.bf16.mxu0 0
      %694 = vmatpush1.bf16.msra.mxu0 0
      %695 = vmatprep.subr.bf16.mxu0 0
      %696 = vmatpush1.bf16.msra.mxu0 0
      %697 = vmatprep.subr.bf16.mxu0 0
      %698 = vmatpush1.bf16.msra.mxu0 0
      %699 = vmatprep.subr.bf16.mxu0 0
      %700 = vmatpush1.bf16.msra.mxu0 0
      %701 = vmatprep.subr.bf16.mxu0 0
      %702 = vmatpush1.bf16.msra.mxu0 0
      %703 = vmatprep.subr.bf16.mxu0 0
      %704 = vmatpush1.bf16.msra.mxu0 0
      %705 = vmatprep.subr.bf16.mxu0 0
      %706 = vmatpush1.bf16.msra.mxu0 0
      %707 = vmatprep.mubr.bf16.mxu0 0
      %708 = vmatmul.mubr.bf16.gmra.mrb[0].mxu0 %v670
      %v709 = vpop.f32.mrb[0].mxu0
      %v710 = vadd.f32 0.0, %v709
      %v711 = vpop.f32.mrb[0].mxu0
      %v712 = vpop.f32.mrb[0].mxu0
      %v713 = vadd.f32 0.0, %v712
      %v714 = vpop.f32.mrb[0].mxu0
      %715 = vmatprep.mubr.bf16.mxu0 0
      %716 = vmatmul.mubr.bf16.gmra.mrb[0].mxu0 %v673
      %v717 = vpop.f32.mrb[0].mxu0
      %v718 = vadd.f32 0.0, %v717
      %v719 = vpop.f32.mrb[0].mxu0
      %v720 = vpop.f32.mrb[0].mxu0
      %v721 = vpop.f32.mrb[0].mxu0
      %722 = vdwg.mxu0
      %v723 = vadd.f32 %v631, %v710
      %v724 = vadd.f32 %v634, %v713
      %v725 = vadd.f32 %v639, %v718
      %v726 = vld [vmem:[%s462] sm:$0x8]
      %v727 = vld [vmem:[%s462 + $0xc] sm:$0x7]
      %s728 = scalar_lea.vmem %s2, 48
      %v729 = vld [vmem:[%s728] sm:$0xf]
      %v730 = vld [vmem:[%s728 + $0x4] sm:$0xf]
      %v731 = vld [vmem:[%s728 + $0x8] sm:$0xf]
      %v732 = vld [vmem:[%s728 + $0xc] sm:$0xf]
      %v735 = vunpack.c.l.b16 %v726
      %v736 = vunpack.c.l.b16 %v727
      %v737 = vpack.c.b16 %v490, %v735
      %v738 = vpack.c.b16 %v736, %v491
      %vm739 = vcmask 1044480
      %v740 = vrot.slane %v737, 3
      %v741 = vrot.slane %v738, 3
      %v742 = vsel %vm739, %v740, %v741
      %v747 = vunpack.c.l.b16 %v729
      %v748 = vunpack.c.l.b16 %v730
      %v749 = vunpack.c.l.b16 %v731
      %v750 = vunpack.c.l.b16 %v732
      %v751 = vpack.c.b16 %v748, %v747
      %v752 = vpack.c.b16 %v750, %v749
      %v756 = vsel %vm523, %v742, 0
      %v759 = vsel %vm523, %v741, 0
      %761 = vmatprep.subr.bf16.mxu0 0
      %762 = vmatpush1.bf16.msra.mxu0 %v751
      %763 = vmatprep.subr.bf16.mxu0 0
      %764 = vmatpush1.bf16.msra.mxu0 %v752
      %765 = vmatprep.subr.bf16.mxu0 0
      %766 = vmatpush1.bf16.msra.mxu0 0
      %767 = vmatprep.subr.bf16.mxu0 0
      %768 = vmatpush1.bf16.msra.mxu0 0
      %769 = vmatprep.subr.bf16.mxu0 0
      %770 = vmatpush1.bf16.msra.mxu0 0
      %771 = vmatprep.subr.bf16.mxu0 0
      %772 = vmatpush1.bf16.msra.mxu0 0
      %773 = vmatprep.subr.bf16.mxu0 0
      %774 = vmatpush1.bf16.msra.mxu0 0
      %775 = vmatprep.subr.bf16.mxu0 0
      %776 = vmatpush1.bf16.msra.mxu0 0
      %777 = vmatprep.subr.bf16.mxu0 0
      %778 = vmatpush1.bf16.msra.mxu0 0
      %779 = vmatprep.subr.bf16.mxu0 0
      %780 = vmatpush1.bf16.msra.mxu0 0
      %781 = vmatprep.subr.bf16.mxu0 0
      %782 = vmatpush1.bf16.msra.mxu0 0
      %783 = vmatprep.subr.bf16.mxu0 0
      %784 = vmatpush1.bf16.msra.mxu0 0
      %785 = vmatprep.subr.bf16.mxu0 0
      %786 = vmatpush1.bf16.msra.mxu0 0
      %787 = vmatprep.subr.bf16.mxu0 0
      %788 = vmatpush1.bf16.msra.mxu0 0
      %789 = vmatprep.subr.bf16.mxu0 0
      %790 = vmatpush1.bf16.msra.mxu0 0
      %791 = vmatprep.subr.bf16.mxu0 0
      %792 = vmatpush1.bf16.msra.mxu0 0
      %793 = vmatprep.mubr.bf16.mxu0 0
      %794 = vmatmul.mubr.bf16.gmra.mrb[0].mxu0 %v756
      %v795 = vpop.f32.mrb[0].mxu0
      %v796 = vadd.f32 0.0, %v795
      %v797 = vpop.f32.mrb[0].mxu0
      %v798 = vpop.f32.mrb[0].mxu0
      %v799 = vadd.f32 0.0, %v798
      %v800 = vpop.f32.mrb[0].mxu0
      %801 = vmatprep.mubr.bf16.mxu0 0
      %802 = vmatmul.mubr.bf16.gmra.mrb[0].mxu0 %v759
      %v803 = vpop.f32.mrb[0].mxu0
      %v804 = vadd.f32 0.0, %v803
      %v805 = vpop.f32.mrb[0].mxu0
      %v806 = vpop.f32.mrb[0].mxu0
      %v807 = vpop.f32.mrb[0].mxu0
      %808 = vdwg.mxu0
      %v809 = vadd.f32 %v723, %v796
      %v810 = vadd.f32 %v724, %v799
      %v811 = vadd.f32 %v725, %v804
      %v812 = vld [vmem:[%s462 + $0xc] sm:$0xf]
      %s813 = scalar_lea.vmem %s2, 64
      %v814 = vld [vmem:[%s813] sm:$0xf]
      %v815 = vld [vmem:[%s813 + $0x4] sm:$0xf]
      %v816 = vld [vmem:[%s813 + $0x8] sm:$0xf]
      %v817 = vld [vmem:[%s813 + $0xc] sm:$0xf]
      %v819 = vunpack.c.l.b16 %v812
      %v820 = vpack.c.b16 %v819, %v491
      %vm821 = vsmask.f32 4352
      %v823 = vshrl.u32 %v737, 16
      %v825 = vrot.slane %v823, 3
      %v826 = vshll.u32 %v737, 16
      %v828 = vrot.slane %v826, 4
      %v829 = vor.u32 %v825, %v828
      %v831 = vshrl.u32 %v820, 16
      %v833 = vrot.slane %v831, 3
      %v834 = vshll.u32 %v820, 16
      %v836 = vrot.slane %v834, 4
      %v837 = vor.u32 %v833, %v836
      %v838 = vsel %vm821, %v829, %v837
      %v843 = vunpack.c.l.b16 %v814
      %v844 = vunpack.c.l.b16 %v815
      %v845 = vunpack.c.l.b16 %v816
      %v846 = vunpack.c.l.b16 %v817
      %v847 = vpack.c.b16 %v844, %v843
      %v848 = vpack.c.b16 %v846, %v845
      %v852 = vsel %vm523, %v838, 0
      %v855 = vsel %vm523, %v837, 0
      %857 = vmatprep.subr.bf16.mxu0 0
      %858 = vmatpush1.bf16.msra.mxu0 %v847
      %859 = vmatprep.subr.bf16.mxu0 0
      %860 = vmatpush1.bf16.msra.mxu0 %v848
      %861 = vmatprep.subr.bf16.mxu0 0
      %862 = vmatpush1.bf16.msra.mxu0 0
      %863 = vmatprep.subr.bf16.mxu0 0
      %864 = vmatpush1.bf16.msra.mxu0 0
      %865 = vmatprep.subr.bf16.mxu0 0
      %866 = vmatpush1.bf16.msra.mxu0 0
      %867 = vmatprep.subr.bf16.mxu0 0
      %868 = vmatpush1.bf16.msra.mxu0 0
      %869 = vmatprep.subr.bf16.mxu0 0
      %870 = vmatpush1.bf16.msra.mxu0 0
      %871 = vmatprep.subr.bf16.mxu0 0
      %872 = vmatpush1.bf16.msra.mxu0 0
      %873 = vmatprep.subr.bf16.mxu0 0
      %874 = vmatpush1.bf16.msra.mxu0 0
      %875 = vmatprep.subr.bf16.mxu0 0
      %876 = vmatpush1.bf16.msra.mxu0 0
      %877 = vmatprep.subr.bf16.mxu0 0
      %878 = vmatpush1.bf16.msra.mxu0 0
      %879 = vmatprep.subr.bf16.mxu0 0
      %880 = vmatpush1.bf16.msra.mxu0 0
      %881 = vmatprep.subr.bf16.mxu0 0
      %882 = vmatpush1.bf16.msra.mxu0 0
      %883 = vmatprep.subr.bf16.mxu0 0
      %884 = vmatpush1.bf16.msra.mxu0 0
      %885 = vmatprep.subr.bf16.mxu0 0
      %886 = vmatpush1.bf16.msra.mxu0 0
      %887 = vmatprep.subr.bf16.mxu0 0
      %888 = vmatpush1.bf16.msra.mxu0 0
      %889 = vmatprep.mubr.bf16.mxu0 0
      %890 = vmatmul.mubr.bf16.gmra.mrb[0].mxu0 %v852
      %v891 = vpop.f32.mrb[0].mxu0
      %v892 = vadd.f32 0.0, %v891
      %v893 = vpop.f32.mrb[0].mxu0
      %v894 = vpop.f32.mrb[0].mxu0
      %v895 = vadd.f32 0.0, %v894
      %v896 = vpop.f32.mrb[0].mxu0
      %897 = vmatprep.mubr.bf16.mxu0 0
      %898 = vmatmul.mubr.bf16.gmra.mrb[0].mxu0 %v855
      %v899 = vpop.f32.mrb[0].mxu0
      %v900 = vadd.f32 0.0, %v899
      %v901 = vpop.f32.mrb[0].mxu0
      %v902 = vpop.f32.mrb[0].mxu0
      %v903 = vpop.f32.mrb[0].mxu0
      %904 = vdwg.mxu0
      %v905 = vadd.f32 %v809, %v892
      %v906 = vadd.f32 %v810, %v895
      %v907 = vadd.f32 %v811, %v900
      %s908 = scalar_lea.vmem %s2, 80
      %v909 = vld [vmem:[%s908] sm:$0xf]
      %v910 = vld [vmem:[%s908 + $0x4] sm:$0xf]
      %v911 = vld [vmem:[%s908 + $0x8] sm:$0xf]
      %v912 = vld [vmem:[%s908 + $0xc] sm:$0xf]
      %v913 = vpack.c.b16 %v491, %v490
      %v914 = vpack.c.b16 %v819, %v819
      %v919 = vunpack.c.l.b16 %v909
      %v920 = vunpack.c.l.b16 %v910
      %v921 = vunpack.c.l.b16 %v911
      %v922 = vunpack.c.l.b16 %v912
      %v923 = vpack.c.b16 %v920, %v919
      %v924 = vpack.c.b16 %v922, %v921
      %v928 = vsel %vm523, %v913, 0
      %v931 = vsel %vm523, %v914, 0
      %933 = vmatprep.subr.bf16.mxu0 0
      %934 = vmatpush1.bf16.msra.mxu0 %v923
      %935 = vmatprep.subr.bf16.mxu0 0
      %936 = vmatpush1.bf16.msra.mxu0 %v924
      %937 = vmatprep.subr.bf16.mxu0 0
      %938 = vmatpush1.bf16.msra.mxu0 0
      %939 = vmatprep.subr.bf16.mxu0 0
      %940 = vmatpush1.bf16.msra.mxu0 0
      %941 = vmatprep.subr.bf16.mxu0 0
      %942 = vmatpush1.bf16.msra.mxu0 0
      %943 = vmatprep.subr.bf16.mxu0 0
      %944 = vmatpush1.bf16.msra.mxu0 0
      %945 = vmatprep.subr.bf16.mxu0 0
      %946 = vmatpush1.bf16.msra.mxu0 0
      %947 = vmatprep.subr.bf16.mxu0 0
      %948 = vmatpush1.bf16.msra.mxu0 0
      %949 = vmatprep.subr.bf16.mxu0 0
      %950 = vmatpush1.bf16.msra.mxu0 0
      %951 = vmatprep.subr.bf16.mxu0 0
      %952 = vmatpush1.bf16.msra.mxu0 0
      %953 = vmatprep.subr.bf16.mxu0 0
      %954 = vmatpush1.bf16.msra.mxu0 0
      %955 = vmatprep.subr.bf16.mxu0 0
      %956 = vmatpush1.bf16.msra.mxu0 0
      %957 = vmatprep.subr.bf16.mxu0 0
      %958 = vmatpush1.bf16.msra.mxu0 0
      %959 = vmatprep.subr.bf16.mxu0 0
      %960 = vmatpush1.bf16.msra.mxu0 0
      %961 = vmatprep.subr.bf16.mxu0 0
      %962 = vmatpush1.bf16.msra.mxu0 0
      %963 = vmatprep.subr.bf16.mxu0 0
      %964 = vmatpush1.bf16.msra.mxu0 0
      %965 = vmatprep.mubr.bf16.mxu0 0
      %966 = vmatmul.mubr.bf16.gmra.mrb[0].mxu0 %v928
      %v967 = vpop.f32.mrb[0].mxu0
      %v968 = vadd.f32 0.0, %v967
      %v969 = vpop.f32.mrb[0].mxu0
      %v970 = vpop.f32.mrb[0].mxu0
      %v971 = vadd.f32 0.0, %v970
      %v972 = vpop.f32.mrb[0].mxu0
      %973 = vmatprep.mubr.bf16.mxu0 0
      %974 = vmatmul.mubr.bf16.gmra.mrb[0].mxu0 %v931
      %v975 = vpop.f32.mrb[0].mxu0
      %v976 = vadd.f32 0.0, %v975
      %v977 = vpop.f32.mrb[0].mxu0
      %v978 = vpop.f32.mrb[0].mxu0
      %v979 = vpop.f32.mrb[0].mxu0
      %980 = vdwg.mxu0
      %v981 = vadd.f32 %v905, %v968
      %v982 = vadd.f32 %v906, %v971
      %v983 = vadd.f32 %v907, %v976
      %v984 = vld [vmem:[%s462 + $0x4] sm:$0xc]
      %v985 = vld [vmem:[%s462 + $0x8] sm:$0xf]
      %v986 = vld [vmem:[%s462 + $0xc] sm:$0xf]
      %v987 = vld [vmem:[%s462 + $0x10] sm:$0x3]
      %s988 = scalar_lea.vmem %s2, 96
      %v989 = vld [vmem:[%s988] sm:$0xf]
      %v990 = vld [vmem:[%s988 + $0x4] sm:$0xf]
      %v991 = vld [vmem:[%s988 + $0x8] sm:$0xf]
      %v992 = vld [vmem:[%s988 + $0xc] sm:$0xf]
      %v997 = vunpack.c.l.b16 %v984
      %v998 = vunpack.c.l.b16 %v985
      %v999 = vunpack.c.l.b16 %v986
      %v1000 = vunpack.c.l.b16 %v987
      %v1001 = vpack.c.b16 %v998, %v997
      %v1002 = vpack.c.b16 %v1000, %v999
      %vm1003 = vcmask 1045504
      %v1004 = vrot.slane %v1001, 2
      %v1005 = vrot.slane %v1002, 2
      %v1006 = vsel %vm1003, %v1004, %v1005
      %v1011 = vunpack.c.l.b16 %v989
      %v1012 = vunpack.c.l.b16 %v990
      %v1013 = vunpack.c.l.b16 %v991
      %v1014 = vunpack.c.l.b16 %v992
      %v1015 = vpack.c.b16 %v1012, %v1011
      %v1016 = vpack.c.b16 %v1014, %v1013
      %v1020 = vsel %vm523, %v1006, 0
      %v1023 = vsel %vm523, %v1005, 0
      %1025 = vmatprep.subr.bf16.mxu0 0
      %1026 = vmatpush1.bf16.msra.mxu0 %v1015
      %1027 = vmatprep.subr.bf16.mxu0 0
      %1028 = vmatpush1.bf16.msra.mxu0 %v1016
      %1029 = vmatprep.subr.bf16.mxu0 0
      %1030 = vmatpush1.bf16.msra.mxu0 0
      %1031 = vmatprep.subr.bf16.mxu0 0
      %1032 = vmatpush1.bf16.msra.mxu0 0
      %1033 = vmatprep.subr.bf16.mxu0 0
      %1034 = vmatpush1.bf16.msra.mxu0 0
      %1035 = vmatprep.subr.bf16.mxu0 0
      %1036 = vmatpush1.bf16.msra.mxu0 0
      %1037 = vmatprep.subr.bf16.mxu0 0
      %1038 = vmatpush1.bf16.msra.mxu0 0
      %1039 = vmatprep.subr.bf16.mxu0 0
      %1040 = vmatpush1.bf16.msra.mxu0 0
      %1041 = vmatprep.subr.bf16.mxu0 0
      %1042 = vmatpush1.bf16.msra.mxu0 0
      %1043 = vmatprep.subr.bf16.mxu0 0
      %1044 = vmatpush1.bf16.msra.mxu0 0
      %1045 = vmatprep.subr.bf16.mxu0 0
      %1046 = vmatpush1.bf16.msra.mxu0 0
      %1047 = vmatprep.subr.bf16.mxu0 0
      %1048 = vmatpush1.bf16.msra.mxu0 0
      %1049 = vmatprep.subr.bf16.mxu0 0
      %1050 = vmatpush1.bf16.msra.mxu0 0
      %1051 = vmatprep.subr.bf16.mxu0 0
      %1052 = vmatpush1.bf16.msra.mxu0 0
      %1053 = vmatprep.subr.bf16.mxu0 0
      %1054 = vmatpush1.bf16.msra.mxu0 0
      %1055 = vmatprep.subr.bf16.mxu0 0
      %1056 = vmatpush1.bf16.msra.mxu0 0
      %1057 = vmatprep.mubr.bf16.mxu0 0
      %1058 = vmatmul.mubr.bf16.gmra.mrb[0].mxu0 %v1020
      %v1059 = vpop.f32.mrb[0].mxu0
      %v1060 = vadd.f32 0.0, %v1059
      %v1061 = vpop.f32.mrb[0].mxu0
      %v1062 = vpop.f32.mrb[0].mxu0
      %v1063 = vadd.f32 0.0, %v1062
      %v1064 = vpop.f32.mrb[0].mxu0
      %1065 = vmatprep.mubr.bf16.mxu0 0
      %1066 = vmatmul.mubr.bf16.gmra.mrb[0].mxu0 %v1023
      %v1067 = vpop.f32.mrb[0].mxu0
      %v1068 = vadd.f32 0.0, %v1067
      %v1069 = vpop.f32.mrb[0].mxu0
      %v1070 = vpop.f32.mrb[0].mxu0
      %v1071 = vpop.f32.mrb[0].mxu0
      %1072 = vdwg.mxu0
      %v1073 = vadd.f32 %v981, %v1060
      %v1074 = vadd.f32 %v982, %v1063
      %v1075 = vadd.f32 %v983, %v1068
      %v1076 = vld [vmem:[%s462 + $0x10] sm:$0x7]
      %s1077 = scalar_lea.vmem %s2, 112
      %v1078 = vld [vmem:[%s1077] sm:$0xf]
      %v1079 = vld [vmem:[%s1077 + $0x4] sm:$0xf]
      %v1080 = vld [vmem:[%s1077 + $0x8] sm:$0xf]
      %v1081 = vld [vmem:[%s1077 + $0xc] sm:$0xf]
      %v1083 = vunpack.c.l.b16 %v1076
      %v1084 = vpack.c.b16 %v1083, %v999
      %vm1085 = vsmask.f32 5376
      %v1087 = vshrl.u32 %v1001, 16
      %v1089 = vrot.slane %v1087, 2
      %v1090 = vshll.u32 %v1001, 16
      %v1092 = vrot.slane %v1090, 3
      %v1093 = vor.u32 %v1089, %v1092
      %v1095 = vshrl.u32 %v1084, 16
      %v1097 = vrot.slane %v1095, 2
      %v1098 = vshll.u32 %v1084, 16
      %v1100 = vrot.slane %v1098, 3
      %v1101 = vor.u32 %v1097, %v1100
      %v1102 = vsel %vm1085, %v1093, %v1101
      %v1107 = vunpack.c.l.b16 %v1078
      %v1108 = vunpack.c.l.b16 %v1079
      %v1109 = vunpack.c.l.b16 %v1080
      %v1110 = vunpack.c.l.b16 %v1081
      %v1111 = vpack.c.b16 %v1108, %v1107
      %v1112 = vpack.c.b16 %v1110, %v1109
      %v1116 = vsel %vm523, %v1102, 0
      %v1119 = vsel %vm523, %v1101, 0
      %1121 = vmatprep.subr.bf16.mxu0 0
      %1122 = vmatpush1.bf16.msra.mxu0 %v1111
      %1123 = vmatprep.subr.bf16.mxu0 0
      %1124 = vmatpush1.bf16.msra.mxu0 %v1112
      %1125 = vmatprep.subr.bf16.mxu0 0
      %1126 = vmatpush1.bf16.msra.mxu0 0
      %1127 = vmatprep.subr.bf16.mxu0 0
      %1128 = vmatpush1.bf16.msra.mxu0 0
      %1129 = vmatprep.subr.bf16.mxu0 0
      %1130 = vmatpush1.bf16.msra.mxu0 0
      %1131 = vmatprep.subr.bf16.mxu0 0
      %1132 = vmatpush1.bf16.msra.mxu0 0
      %1133 = vmatprep.subr.bf16.mxu0 0
      %1134 = vmatpush1.bf16.msra.mxu0 0
      %1135 = vmatprep.subr.bf16.mxu0 0
      %1136 = vmatpush1.bf16.msra.mxu0 0
      %1137 = vmatprep.subr.bf16.mxu0 0
      %1138 = vmatpush1.bf16.msra.mxu0 0
      %1139 = vmatprep.subr.bf16.mxu0 0
      %1140 = vmatpush1.bf16.msra.mxu0 0
      %1141 = vmatprep.subr.bf16.mxu0 0
      %1142 = vmatpush1.bf16.msra.mxu0 0
      %1143 = vmatprep.subr.bf16.mxu0 0
      %1144 = vmatpush1.bf16.msra.mxu0 0
      %1145 = vmatprep.subr.bf16.mxu0 0
      %1146 = vmatpush1.bf16.msra.mxu0 0
      %1147 = vmatprep.subr.bf16.mxu0 0
      %1148 = vmatpush1.bf16.msra.mxu0 0
      %1149 = vmatprep.subr.bf16.mxu0 0
      %1150 = vmatpush1.bf16.msra.mxu0 0
      %1151 = vmatprep.subr.bf16.mxu0 0
      %1152 = vmatpush1.bf16.msra.mxu0 0
      %1153 = vmatprep.mubr.bf16.mxu0 0
      %1154 = vmatmul.mubr.bf16.gmra.mrb[0].mxu0 %v1116
      %v1155 = vpop.f32.mrb[0].mxu0
      %v1156 = vadd.f32 0.0, %v1155
      %v1157 = vpop.f32.mrb[0].mxu0
      %v1158 = vpop.f32.mrb[0].mxu0
      %v1159 = vadd.f32 0.0, %v1158
      %v1160 = vpop.f32.mrb[0].mxu0
      %1161 = vmatprep.mubr.bf16.mxu0 0
      %1162 = vmatmul.mubr.bf16.gmra.mrb[0].mxu0 %v1119
      %v1163 = vpop.f32.mrb[0].mxu0
      %v1164 = vadd.f32 0.0, %v1163
      %v1165 = vpop.f32.mrb[0].mxu0
      %v1166 = vpop.f32.mrb[0].mxu0
      %v1167 = vpop.f32.mrb[0].mxu0
      %1168 = vdwg.mxu0
      %v1169 = vadd.f32 %v1073, %v1156
      %v1170 = vadd.f32 %v1074, %v1159
      %v1171 = vadd.f32 %v1075, %v1164
      %v1172 = vld [vmem:[%s462 + $0x4] sm:$0x8]
      %s1173 = scalar_lea.vmem %s2, 128
      %v1174 = vld [vmem:[%s1173] sm:$0xf]
      %v1175 = vld [vmem:[%s1173 + $0x4] sm:$0xf]
      %v1176 = vld [vmem:[%s1173 + $0x8] sm:$0xf]
      %v1177 = vld [vmem:[%s1173 + $0xc] sm:$0xf]
      %v1179 = vunpack.c.l.b16 %v1172
      %v1180 = vpack.c.b16 %v998, %v1179
      %v1181 = vrot.slane %v1180, 3
      %v1182 = vrot.slane %v1084, 3
      %v1183 = vsel %vm739, %v1181, %v1182
      %v1188 = vunpack.c.l.b16 %v1174
      %v1189 = vunpack.c.l.b16 %v1175
      %v1190 = vunpack.c.l.b16 %v1176
      %v1191 = vunpack.c.l.b16 %v1177
      %v1192 = vpack.c.b16 %v1189, %v1188
      %v1193 = vpack.c.b16 %v1191, %v1190
      %v1197 = vsel %vm523, %v1183, 0
      %v1200 = vsel %vm523, %v1182, 0
      %1202 = vmatprep.subr.bf16.mxu0 0
      %1203 = vmatpush1.bf16.msra.mxu0 %v1192
      %1204 = vmatprep.subr.bf16.mxu0 0
      %1205 = vmatpush1.bf16.msra.mxu0 %v1193
      %1206 = vmatprep.subr.bf16.mxu0 0
      %1207 = vmatpush1.bf16.msra.mxu0 0
      %1208 = vmatprep.subr.bf16.mxu0 0
      %1209 = vmatpush1.bf16.msra.mxu0 0
      %1210 = vmatprep.subr.bf16.mxu0 0
      %1211 = vmatpush1.bf16.msra.mxu0 0
      %1212 = vmatprep.subr.bf16.mxu0 0
      %1213 = vmatpush1.bf16.msra.mxu0 0
      %1214 = vmatprep.subr.bf16.mxu0 0
      %1215 = vmatpush1.bf16.msra.mxu0 0
      %1216 = vmatprep.subr.bf16.mxu0 0
      %1217 = vmatpush1.bf16.msra.mxu0 0
      %1218 = vmatprep.subr.bf16.mxu0 0
      %1219 = vmatpush1.bf16.msra.mxu0 0
      %1220 = vmatprep.subr.bf16.mxu0 0
      %1221 = vmatpush1.bf16.msra.mxu0 0
      %1222 = vmatprep.subr.bf16.mxu0 0
      %1223 = vmatpush1.bf16.msra.mxu0 0
      %1224 = vmatprep.subr.bf16.mxu0 0
      %1225 = vmatpush1.bf16.msra.mxu0 0
      %1226 = vmatprep.subr.bf16.mxu0 0
      %1227 = vmatpush1.bf16.msra.mxu0 0
      %1228 = vmatprep.subr.bf16.mxu0 0
      %1229 = vmatpush1.bf16.msra.mxu0 0
      %1230 = vmatprep.subr.bf16.mxu0 0
      %1231 = vmatpush1.bf16.msra.mxu0 0
      %1232 = vmatprep.subr.bf16.mxu0 0
      %1233 = vmatpush1.bf16.msra.mxu0 0
      %1234 = vmatprep.mubr.bf16.mxu0 0
      %1235 = vmatmul.mubr.bf16.gmra.mrb[0].mxu0 %v1197
      %v1236 = vpop.f32.mrb[0].mxu0
      %v1237 = vadd.f32 0.0, %v1236
      %v1238 = vpop.f32.mrb[0].mxu0
      %v1239 = vpop.f32.mrb[0].mxu0
      %v1240 = vadd.f32 0.0, %v1239
      %v1241 = vpop.f32.mrb[0].mxu0
      %1242 = vmatprep.mubr.bf16.mxu0 0
      %1243 = vmatmul.mubr.bf16.gmra.mrb[0].mxu0 %v1200
      %v1244 = vpop.f32.mrb[0].mxu0
      %v1245 = vadd.f32 0.0, %v1244
      %v1246 = vpop.f32.mrb[0].mxu0
      %v1247 = vpop.f32.mrb[0].mxu0
      %v1248 = vpop.f32.mrb[0].mxu0
      %1249 = vdwg.mxu0
      %v1250 = vadd.f32 %v1169, %v1237
      %v1251 = vadd.f32 %v1170, %v1240
      %v1252 = vadd.f32 %v1171, %v1245
      %v1253 = vld [vmem:[%s3] sm:$0x1]
      %v1255 = vlaneseq
      %v1256 = vshrl.u32 %v1255, 7
      %v1257 = vsub.s32 0, %v1256
      %v1258 = vrot.slane %v1253, %v1257
      %v1260 = vadd.f32 %v1250, %v1258
      %v1261 = vadd.f32 %v1251, %v1258
      %v1262 = vadd.f32 %v1252, %v1258
      %v1263 = vmax.f32 %v1260, 0.0
      %v1264 = vmax.f32 %v1261, 0.0
      %v1265 = vmax.f32 %v1262, 0.0
      %vm1266 = vcmask 257024
      %1267 = vst.msk [vmem:[#allocation2] sm:$0xf] %vm1266, 0
      %1268 = vst.msk [vmem:[#allocation2 + $0x4] sm:$0xf] %vm1266, 0
      %1269 = vst.msk [vmem:[#allocation2 + $0x8] sm:$0xf] %vm1266, 0
      %1270 = vst.msk [vmem:[#allocation2 + $0xc] sm:$0xf] %vm1266, 0
      %1271 = vst.msk [vmem:[#allocation2 + $0x10] sm:$0xf] %vm1266, 0
      %1273 = vset.pattern.permute.xlu0 0
      %1274 = vperm.xlu0 %1273, %v469
      %v1275 = vpop.permute.xlu0 %1274
      %1278 = vset.pattern.permute.xlu0 0
      %1279 = vperm.xlu0 %1278, %v470
      %v1280 = vpop.permute.xlu0 %1279
      %1283 = vset.pattern.permute.xlu0 0
      %1284 = vperm.xlu0 %1283, %v471
      %v1285 = vpop.permute.xlu0 %1284
      %v1287 = vmul.f32 %v1263, %v1275
      %v1288 = vmul.f32 %v1264, %v1280
      %v1289 = vmul.f32 %v1265, %v1285
      %v1290 = vpack.c.bf16 %v1288, %v1287
      %v1291 = vpack.c.bf16 %v1289, %v1289
      %v1294 = vunpack.c.l.b16 %v1290
      %v1295 = vunpack.c.h.b16 %v1290
      %v1296 = vunpack.c.l.b16 %v1291
      %v1297 = vpack.c.b16 %v1294, %v1294
      %v1298 = vpack.c.b16 %v1295, %v1295
      %v1299 = vpack.c.b16 %v1296, %v1296
      %vm1300 = vsmask.f32 3328
      %vm1301 = vsmask.f32 7440
      %vm1302 = vmor %vm1300, %vm1301
      %v1304 = vshll.u32 %v1297, 16
      %v1306 = vrot.slane %v1304, 5
      %v1307 = vshrl.u32 %v1297, 16
      %v1309 = vrot.slane %v1307, 4
      %v1310 = vor.u32 %v1309, %v1306
      %v1311 = vrot.slane %v1310, 4
      %v1313 = vshll.u32 %v1298, 16
      %v1315 = vrot.slane %v1313, 5
      %v1316 = vsel %vm1302, %v1311, %v1315
      %v1317 = vshrl.u32 %v1298, 16
      %v1319 = vrot.slane %v1317, 4
      %v1320 = vor.u32 %v1319, %v1315
      %v1321 = vrot.slane %v1320, 4
      %v1323 = vshll.u32 %v1299, 16
      %v1325 = vrot.slane %v1323, 5
      %v1326 = vsel %vm1302, %v1321, %v1325
      %v1327 = vshrl.u32 %v1299, 16
      %v1329 = vrot.slane %v1327, 4
      %v1330 = vor.u32 %v1329, %v1325
      %v1331 = vrot.slane %v1330, 4
      %vm1336 = vcmask 257027
      %vm1337 = vsmask.f32 7950
      %vm1338 = vmand %vm1336, %vm1337
      %v1339 = vld [vmem:[#allocation2] sm:$0x8]
      %v1340 = vsel %vm1338, %v1306, %v1339
      %1341 = vst [vmem:[#allocation2] sm:$0x8] %v1340
      %1342 = vst.msk [vmem:[#allocation2 + $0x4] sm:$0xf] %vm1266, %v1316
      %1343 = vst.msk [vmem:[#allocation2 + $0x8] sm:$0xf] %vm1266, %v1326
      %vm1344 = vcmask 257024
      %vm1345 = vmand %vm1344, %vm1300
      %v1346 = vld [vmem:[#allocation2 + $0xc] sm:$0xf]
      %v1347 = vsel %vm1345, %v1331, %v1346
      %1348 = vst [vmem:[#allocation2 + $0xc] sm:$0xf] %v1347
      %v1349 = vld [vmem:[#allocation2] sm:$0xf]
      %v1350 = vld [vmem:[#allocation2 + $0x4] sm:$0xf]
      %v1351 = vld [vmem:[#allocation2 + $0x8] sm:$0xf]
      %v1352 = vld [vmem:[%s4] sm:$0xf]
      %v1353 = vld [vmem:[%s4 + $0x4] sm:$0xf]
      %v1354 = vld [vmem:[%s4 + $0x8] sm:$0xf]
      %v1355 = vld [vmem:[%s4 + $0xc] sm:$0xf]
      %v1356 = vld [vmem:[#allocation2 + $0xc] sm:$0x1]
      %s1357 = scalar_lea.vmem %s4, 16
      %v1358 = vld [vmem:[%s1357] sm:$0xf]
      %v1359 = vld [vmem:[%s1357 + $0x4] sm:$0xf]
      %v1360 = vld [vmem:[%s1357 + $0x8] sm:$0xf]
      %v1361 = vld [vmem:[%s1357 + $0xc] sm:$0xf]
      %v1366 = vunpack.c.l.b16 %v1349
      %v1367 = vunpack.c.l.b16 %v1350
      %v1368 = vunpack.c.l.b16 %v1351
      %v1369 = vunpack.c.l.b16 %v1356
      %v1370 = vpack.c.b16 %v1367, %v1366
      %v1371 = vpack.c.b16 %v1369, %v1368
      %v1373 = vshrl.u32 %v1370, 16
      %v1375 = vshll.u32 %v1370, 16
      %v1377 = vrot.slane %v1375, 1
      %v1378 = vor.u32 %v1373, %v1377
      %v1380 = vshll.u32 %v1371, 16
      %v1382 = vrot.slane %v1380, 1
      %v1383 = vsel %vm495, %v1378, %v1382
      %v1384 = vshrl.u32 %v1371, 16
      %v1386 = vor.u32 %v1384, %v1382
      %v1391 = vunpack.c.l.b16 %v1358
      %v1392 = vunpack.c.l.b16 %v1359
      %v1393 = vunpack.c.l.b16 %v1360
      %v1394 = vunpack.c.l.b16 %v1361
      %v1395 = vpack.c.b16 %v1392, %v1391
      %v1396 = vpack.c.b16 %v1394, %v1393
      %v1400 = vsel %vm523, %v1383, 0
      %v1403 = vsel %vm523, %v1386, 0
      %1405 = vmatprep.subr.bf16.mxu0 0
      %1406 = vmatpush1.bf16.msra.mxu0 %v1395
      %1407 = vmatprep.subr.bf16.mxu0 0
      %1408 = vmatpush1.bf16.msra.mxu0 %v1396
      %1409 = vmatprep.subr.bf16.mxu0 0
      %1410 = vmatpush1.bf16.msra.mxu0 0
      %1411 = vmatprep.subr.bf16.mxu0 0
      %1412 = vmatpush1.bf16.msra.mxu0 0
      %1413 = vmatprep.subr.bf16.mxu0 0
      %1414 = vmatpush1.bf16.msra.mxu0 0
      %1415 = vmatprep.subr.bf16.mxu0 0
      %1416 = vmatpush1.bf16.msra.mxu0 0
      %1417 = vmatprep.subr.bf16.mxu0 0
      %1418 = vmatpush1.bf16.msra.mxu0 0
      %1419 = vmatprep.subr.bf16.mxu0 0
      %1420 = vmatpush1.bf16.msra.mxu0 0
      %1421 = vmatprep.subr.bf16.mxu0 0
      %1422 = vmatpush1.bf16.msra.mxu0 0
      %1423 = vmatprep.subr.bf16.mxu0 0
      %1424 = vmatpush1.bf16.msra.mxu0 0
      %1425 = vmatprep.subr.bf16.mxu0 0
      %1426 = vmatpush1.bf16.msra.mxu0 0
      %1427 = vmatprep.subr.bf16.mxu0 0
      %1428 = vmatpush1.bf16.msra.mxu0 0
      %1429 = vmatprep.subr.bf16.mxu0 0
      %1430 = vmatpush1.bf16.msra.mxu0 0
      %1431 = vmatprep.subr.bf16.mxu0 0
      %1432 = vmatpush1.bf16.msra.mxu0 0
      %1433 = vmatprep.subr.bf16.mxu0 0
      %1434 = vmatpush1.bf16.msra.mxu0 0
      %1435 = vmatprep.subr.bf16.mxu0 0
      %1436 = vmatpush1.bf16.msra.mxu0 0
      %1437 = vmatprep.mubr.bf16.mxu0 0
      %1438 = vmatmul.mubr.bf16.gmra.mrb[0].mxu0 %v1400
      %v1439 = vpop.f32.mrb[0].mxu0
      %v1440 = vadd.f32 0.0, %v1439
      %v1441 = vpop.f32.mrb[0].mxu0
      %v1442 = vpop.f32.mrb[0].mxu0
      %v1443 = vadd.f32 0.0, %v1442
      %v1444 = vpop.f32.mrb[0].mxu0
      %1445 = vmatprep.mubr.bf16.mxu0 0
      %1446 = vmatmul.mubr.bf16.gmra.mrb[0].mxu0 %v1403
      %v1447 = vpop.f32.mrb[0].mxu0
      %v1448 = vadd.f32 0.0, %v1447
      %v1449 = vpop.f32.mrb[0].mxu0
      %v1450 = vpop.f32.mrb[0].mxu0
      %v1451 = vpop.f32.mrb[0].mxu0
      %1452 = vdwg.mxu0
      %v1453 = vpack.c.b16 %v1368, %v1368
      %v1458 = vunpack.c.l.b16 %v1352
      %v1459 = vunpack.c.l.b16 %v1353
      %v1460 = vunpack.c.l.b16 %v1354
      %v1461 = vunpack.c.l.b16 %v1355
      %v1462 = vpack.c.b16 %v1459, %v1458
      %v1463 = vpack.c.b16 %v1461, %v1460
      %v1466 = vsel %vm523, %v1370, 0
      %v1469 = vsel %vm523, %v1453, 0
      %1471 = vmatprep.subr.bf16.mxu0 0
      %1472 = vmatpush1.bf16.msra.mxu0 %v1462
      %1473 = vmatprep.subr.bf16.mxu0 0
      %1474 = vmatpush1.bf16.msra.mxu0 %v1463
      %1475 = vmatprep.subr.bf16.mxu0 0
      %1476 = vmatpush1.bf16.msra.mxu0 0
      %1477 = vmatprep.subr.bf16.mxu0 0
      %1478 = vmatpush1.bf16.msra.mxu0 0
      %1479 = vmatprep.subr.bf16.mxu0 0
      %1480 = vmatpush1.bf16.msra.mxu0 0
      %1481 = vmatprep.subr.bf16.mxu0 0
      %1482 = vmatpush1.bf16.msra.mxu0 0
      %1483 = vmatprep.subr.bf16.mxu0 0
      %1484 = vmatpush1.bf16.msra.mxu0 0
      %1485 = vmatprep.subr.bf16.mxu0 0
      %1486 = vmatpush1.bf16.msra.mxu0 0
      %1487 = vmatprep.subr.bf16.mxu0 0
      %1488 = vmatpush1.bf16.msra.mxu0 0
      %1489 = vmatprep.subr.bf16.mxu0 0
      %1490 = vmatpush1.bf16.msra.mxu0 0
      %1491 = vmatprep.subr.bf16.mxu0 0
      %1492 = vmatpush1.bf16.msra.mxu0 0
      %1493 = vmatprep.subr.bf16.mxu0 0
      %1494 = vmatpush1.bf16.msra.mxu0 0
      %1495 = vmatprep.subr.bf16.mxu0 0
      %1496 = vmatpush1.bf16.msra.mxu0 0
      %1497 = vmatprep.subr.bf16.mxu0 0
      %1498 = vmatpush1.bf16.msra.mxu0 0
      %1499 = vmatprep.subr.bf16.mxu0 0
      %1500 = vmatpush1.bf16.msra.mxu0 0
      %1501 = vmatprep.subr.bf16.mxu0 0
      %1502 = vmatpush1.bf16.msra.mxu0 0
      %1503 = vmatprep.mubr.bf16.mxu0 0
      %1504 = vmatmul.mubr.bf16.gmra.mrb[0].mxu0 %v1466
      %v1505 = vpop.f32.mrb[0].mxu0
      %v1506 = vadd.f32 %v1440, %v1505
      %v1507 = vpop.f32.mrb[0].mxu0
      %v1508 = vpop.f32.mrb[0].mxu0
      %v1509 = vadd.f32 %v1443, %v1508
      %v1510 = vpop.f32.mrb[0].mxu0
      %1511 = vmatprep.mubr.bf16.mxu0 0
      %1512 = vmatmul.mubr.bf16.gmra.mrb[0].mxu0 %v1469
      %v1513 = vpop.f32.mrb[0].mxu0
      %v1514 = vadd.f32 %v1448, %v1513
      %v1515 = vpop.f32.mrb[0].mxu0
      %v1516 = vpop.f32.mrb[0].mxu0
      %v1517 = vpop.f32.mrb[0].mxu0
      %1518 = vdwg.mxu0
      %v1519 = vld [vmem:[#allocation2] sm:$0xe]
      %s1520 = scalar_lea.vmem %s4, 32
      %v1521 = vld [vmem:[%s1520] sm:$0xf]
      %v1522 = vld [vmem:[%s1520 + $0x4] sm:$0xf]
      %v1523 = vld [vmem:[%s1520 + $0x8] sm:$0xf]
      %v1524 = vld [vmem:[%s1520 + $0xc] sm:$0xf]
      %v1526 = vunpack.c.l.b16 %v1519
      %v1527 = vpack.c.b16 %v1367, %v1526
      %v1528 = vrot.slane %v1527, 1
      %v1529 = vrot.slane %v1371, 1
      %v1530 = vsel %vm653, %v1528, %v1529
      %v1535 = vunpack.c.l.b16 %v1521
      %v1536 = vunpack.c.l.b16 %v1522
      %v1537 = vunpack.c.l.b16 %v1523
      %v1538 = vunpack.c.l.b16 %v1524
      %v1539 = vpack.c.b16 %v1536, %v1535
      %v1540 = vpack.c.b16 %v1538, %v1537
      %v1544 = vsel %vm523, %v1530, 0
      %v1547 = vsel %vm523, %v1529, 0
      %1549 = vmatprep.subr.bf16.mxu0 0
      %1550 = vmatpush1.bf16.msra.mxu0 %v1539
      %1551 = vmatprep.subr.bf16.mxu0 0
      %1552 = vmatpush1.bf16.msra.mxu0 %v1540
      %1553 = vmatprep.subr.bf16.mxu0 0
      %1554 = vmatpush1.bf16.msra.mxu0 0
      %1555 = vmatprep.subr.bf16.mxu0 0
      %1556 = vmatpush1.bf16.msra.mxu0 0
      %1557 = vmatprep.subr.bf16.mxu0 0
      %1558 = vmatpush1.bf16.msra.mxu0 0
      %1559 = vmatprep.subr.bf16.mxu0 0
      %1560 = vmatpush1.bf16.msra.mxu0 0
      %1561 = vmatprep.subr.bf16.mxu0 0
      %1562 = vmatpush1.bf16.msra.mxu0 0
      %1563 = vmatprep.subr.bf16.mxu0 0
      %1564 = vmatpush1.bf16.msra.mxu0 0
      %1565 = vmatprep.subr.bf16.mxu0 0
      %1566 = vmatpush1.bf16.msra.mxu0 0
      %1567 = vmatprep.subr.bf16.mxu0 0
      %1568 = vmatpush1.bf16.msra.mxu0 0
      %1569 = vmatprep.subr.bf16.mxu0 0
      %1570 = vmatpush1.bf16.msra.mxu0 0
      %1571 = vmatprep.subr.bf16.mxu0 0
      %1572 = vmatpush1.bf16.msra.mxu0 0
      %1573 = vmatprep.subr.bf16.mxu0 0
      %1574 = vmatpush1.bf16.msra.mxu0 0
      %1575 = vmatprep.subr.bf16.mxu0 0
      %1576 = vmatpush1.bf16.msra.mxu0 0
      %1577 = vmatprep.subr.bf16.mxu0 0
      %1578 = vmatpush1.bf16.msra.mxu0 0
      %1579 = vmatprep.subr.bf16.mxu0 0
      %1580 = vmatpush1.bf16.msra.mxu0 0
      %1581 = vmatprep.mubr.bf16.mxu0 0
      %1582 = vmatmul.mubr.bf16.gmra.mrb[0].mxu0 %v1544
      %v1583 = vpop.f32.mrb[0].mxu0
      %v1584 = vadd.f32 0.0, %v1583
      %v1585 = vpop.f32.mrb[0].mxu0
      %v1586 = vpop.f32.mrb[0].mxu0
      %v1587 = vadd.f32 0.0, %v1586
      %v1588 = vpop.f32.mrb[0].mxu0
      %1589 = vmatprep.mubr.bf16.mxu0 0
      %1590 = vmatmul.mubr.bf16.gmra.mrb[0].mxu0 %v1547
      %v1591 = vpop.f32.mrb[0].mxu0
      %v1592 = vadd.f32 0.0, %v1591
      %v1593 = vpop.f32.mrb[0].mxu0
      %v1594 = vpop.f32.mrb[0].mxu0
      %v1595 = vpop.f32.mrb[0].mxu0
      %1596 = vdwg.mxu0
      %v1597 = vadd.f32 %v1506, %v1584
      %v1598 = vadd.f32 %v1509, %v1587
      %v1599 = vadd.f32 %v1514, %v1592
      %v1600 = vld [vmem:[#allocation2] sm:$0x8]
      %v1601 = vld [vmem:[#allocation2 + $0xc] sm:$0x7]
      %s1602 = scalar_lea.vmem %s4, 48
      %v1603 = vld [vmem:[%s1602] sm:$0xf]
      %v1604 = vld [vmem:[%s1602 + $0x4] sm:$0xf]
      %v1605 = vld [vmem:[%s1602 + $0x8] sm:$0xf]
      %v1606 = vld [vmem:[%s1602 + $0xc] sm:$0xf]
      %v1609 = vunpack.c.l.b16 %v1600
      %v1610 = vunpack.c.l.b16 %v1601
      %v1611 = vpack.c.b16 %v1367, %v1609
      %v1612 = vpack.c.b16 %v1610, %v1368
      %v1613 = vrot.slane %v1611, 3
      %v1614 = vrot.slane %v1612, 3
      %v1615 = vsel %vm739, %v1613, %v1614
      %v1620 = vunpack.c.l.b16 %v1603
      %v1621 = vunpack.c.l.b16 %v1604
      %v1622 = vunpack.c.l.b16 %v1605
      %v1623 = vunpack.c.l.b16 %v1606
      %v1624 = vpack.c.b16 %v1621, %v1620
      %v1625 = vpack.c.b16 %v1623, %v1622
      %v1629 = vsel %vm523, %v1615, 0
      %v1632 = vsel %vm523, %v1614, 0
      %1634 = vmatprep.subr.bf16.mxu0 0
      %1635 = vmatpush1.bf16.msra.mxu0 %v1624
      %1636 = vmatprep.subr.bf16.mxu0 0
      %1637 = vmatpush1.bf16.msra.mxu0 %v1625
      %1638 = vmatprep.subr.bf16.mxu0 0
      %1639 = vmatpush1.bf16.msra.mxu0 0
      %1640 = vmatprep.subr.bf16.mxu0 0
      %1641 = vmatpush1.bf16.msra.mxu0 0
      %1642 = vmatprep.subr.bf16.mxu0 0
      %1643 = vmatpush1.bf16.msra.mxu0 0
      %1644 = vmatprep.subr.bf16.mxu0 0
      %1645 = vmatpush1.bf16.msra.mxu0 0
      %1646 = vmatprep.subr.bf16.mxu0 0
      %1647 = vmatpush1.bf16.msra.mxu0 0
      %1648 = vmatprep.subr.bf16.mxu0 0
      %1649 = vmatpush1.bf16.msra.mxu0 0
      %1650 = vmatprep.subr.bf16.mxu0 0
      %1651 = vmatpush1.bf16.msra.mxu0 0
      %1652 = vmatprep.subr.bf16.mxu0 0
      %1653 = vmatpush1.bf16.msra.mxu0 0
      %1654 = vmatprep.subr.bf16.mxu0 0
      %1655 = vmatpush1.bf16.msra.mxu0 0
      %1656 = vmatprep.subr.bf16.mxu0 0
      %1657 = vmatpush1.bf16.msra.mxu0 0
      %1658 = vmatprep.subr.bf16.mxu0 0
      %1659 = vmatpush1.bf16.msra.mxu0 0
      %1660 = vmatprep.subr.bf16.mxu0 0
      %1661 = vmatpush1.bf16.msra.mxu0 0
      %1662 = vmatprep.subr.bf16.mxu0 0
      %1663 = vmatpush1.bf16.msra.mxu0 0
      %1664 = vmatprep.subr.bf16.mxu0 0
      %1665 = vmatpush1.bf16.msra.mxu0 0
      %1666 = vmatprep.mubr.bf16.mxu0 0
      %1667 = vmatmul.mubr.bf16.gmra.mrb[0].mxu0 %v1629
      %v1668 = vpop.f32.mrb[0].mxu0
      %v1669 = vadd.f32 0.0, %v1668
      %v1670 = vpop.f32.mrb[0].mxu0
      %v1671 = vpop.f32.mrb[0].mxu0
      %v1672 = vadd.f32 0.0, %v1671
      %v1673 = vpop.f32.mrb[0].mxu0
      %1674 = vmatprep.mubr.bf16.mxu0 0
      %1675 = vmatmul.mubr.bf16.gmra.mrb[0].mxu0 %v1632
      %v1676 = vpop.f32.mrb[0].mxu0
      %v1677 = vadd.f32 0.0, %v1676
      %v1678 = vpop.f32.mrb[0].mxu0
      %v1679 = vpop.f32.mrb[0].mxu0
      %v1680 = vpop.f32.mrb[0].mxu0
      %1681 = vdwg.mxu0
      %v1682 = vadd.f32 %v1597, %v1669
      %v1683 = vadd.f32 %v1598, %v1672
      %v1684 = vadd.f32 %v1599, %v1677
      %v1685 = vld [vmem:[#allocation2 + $0xc] sm:$0xf]
      %s1686 = scalar_lea.vmem %s4, 64
      %v1687 = vld [vmem:[%s1686] sm:$0xf]
      %v1688 = vld [vmem:[%s1686 + $0x4] sm:$0xf]
      %v1689 = vld [vmem:[%s1686 + $0x8] sm:$0xf]
      %v1690 = vld [vmem:[%s1686 + $0xc] sm:$0xf]
      %v1692 = vunpack.c.l.b16 %v1685
      %v1693 = vpack.c.b16 %v1692, %v1368
      %v1695 = vshrl.u32 %v1611, 16
      %v1697 = vrot.slane %v1695, 3
      %v1698 = vshll.u32 %v1611, 16
      %v1700 = vrot.slane %v1698, 4
      %v1701 = vor.u32 %v1697, %v1700
      %v1703 = vshrl.u32 %v1693, 16
      %v1705 = vrot.slane %v1703, 3
      %v1706 = vshll.u32 %v1693, 16
      %v1708 = vrot.slane %v1706, 4
      %v1709 = vor.u32 %v1705, %v1708
      %v1710 = vsel %vm821, %v1701, %v1709
      %v1715 = vunpack.c.l.b16 %v1687
      %v1716 = vunpack.c.l.b16 %v1688
      %v1717 = vunpack.c.l.b16 %v1689
      %v1718 = vunpack.c.l.b16 %v1690
      %v1719 = vpack.c.b16 %v1716, %v1715
      %v1720 = vpack.c.b16 %v1718, %v1717
      %v1724 = vsel %vm523, %v1710, 0
      %v1727 = vsel %vm523, %v1709, 0
      %1729 = vmatprep.subr.bf16.mxu0 0
      %1730 = vmatpush1.bf16.msra.mxu0 %v1719
      %1731 = vmatprep.subr.bf16.mxu0 0
      %1732 = vmatpush1.bf16.msra.mxu0 %v1720
      %1733 = vmatprep.subr.bf16.mxu0 0
      %1734 = vmatpush1.bf16.msra.mxu0 0
      %1735 = vmatprep.subr.bf16.mxu0 0
      %1736 = vmatpush1.bf16.msra.mxu0 0
      %1737 = vmatprep.subr.bf16.mxu0 0
      %1738 = vmatpush1.bf16.msra.mxu0 0
      %1739 = vmatprep.subr.bf16.mxu0 0
      %1740 = vmatpush1.bf16.msra.mxu0 0
      %1741 = vmatprep.subr.bf16.mxu0 0
      %1742 = vmatpush1.bf16.msra.mxu0 0
      %1743 = vmatprep.subr.bf16.mxu0 0
      %1744 = vmatpush1.bf16.msra.mxu0 0
      %1745 = vmatprep.subr.bf16.mxu0 0
      %1746 = vmatpush1.bf16.msra.mxu0 0
      %1747 = vmatprep.subr.bf16.mxu0 0
      %1748 = vmatpush1.bf16.msra.mxu0 0
      %1749 = vmatprep.subr.bf16.mxu0 0
      %1750 = vmatpush1.bf16.msra.mxu0 0
      %1751 = vmatprep.subr.bf16.mxu0 0
      %1752 = vmatpush1.bf16.msra.mxu0 0
      %1753 = vmatprep.subr.bf16.mxu0 0
      %1754 = vmatpush1.bf16.msra.mxu0 0
      %1755 = vmatprep.subr.bf16.mxu0 0
      %1756 = vmatpush1.bf16.msra.mxu0 0
      %1757 = vmatprep.subr.bf16.mxu0 0
      %1758 = vmatpush1.bf16.msra.mxu0 0
      %1759 = vmatprep.subr.bf16.mxu0 0
      %1760 = vmatpush1.bf16.msra.mxu0 0
      %1761 = vmatprep.mubr.bf16.mxu0 0
      %1762 = vmatmul.mubr.bf16.gmra.mrb[0].mxu0 %v1724
      %v1763 = vpop.f32.mrb[0].mxu0
      %v1764 = vadd.f32 0.0, %v1763
      %v1765 = vpop.f32.mrb[0].mxu0
      %v1766 = vpop.f32.mrb[0].mxu0
      %v1767 = vadd.f32 0.0, %v1766
      %v1768 = vpop.f32.mrb[0].mxu0
      %1769 = vmatprep.mubr.bf16.mxu0 0
      %1770 = vmatmul.mubr.bf16.gmra.mrb[0].mxu0 %v1727
      %v1771 = vpop.f32.mrb[0].mxu0
      %v1772 = vadd.f32 0.0, %v1771
      %v1773 = vpop.f32.mrb[0].mxu0
      %v1774 = vpop.f32.mrb[0].mxu0
      %v1775 = vpop.f32.mrb[0].mxu0
      %1776 = vdwg.mxu0
      %v1777 = vadd.f32 %v1682, %v1764
      %v1778 = vadd.f32 %v1683, %v1767
      %v1779 = vadd.f32 %v1684, %v1772
      %s1780 = scalar_lea.vmem %s4, 80
      %v1781 = vld [vmem:[%s1780] sm:$0xf]
      %v1782 = vld [vmem:[%s1780 + $0x4] sm:$0xf]
      %v1783 = vld [vmem:[%s1780 + $0x8] sm:$0xf]
      %v1784 = vld [vmem:[%s1780 + $0xc] sm:$0xf]
      %v1785 = vpack.c.b16 %v1368, %v1367
      %v1786 = vpack.c.b16 %v1692, %v1692
      %v1791 = vunpack.c.l.b16 %v1781
      %v1792 = vunpack.c.l.b16 %v1782
      %v1793 = vunpack.c.l.b16 %v1783
      %v1794 = vunpack.c.l.b16 %v1784
      %v1795 = vpack.c.b16 %v1792, %v1791
      %v1796 = vpack.c.b16 %v1794, %v1793
      %v1800 = vsel %vm523, %v1785, 0
      %v1803 = vsel %vm523, %v1786, 0
      %1805 = vmatprep.subr.bf16.mxu0 0
      %1806 = vmatpush1.bf16.msra.mxu0 %v1795
      %1807 = vmatprep.subr.bf16.mxu0 0
      %1808 = vmatpush1.bf16.msra.mxu0 %v1796
      %1809 = vmatprep.subr.bf16.mxu0 0
      %1810 = vmatpush1.bf16.msra.mxu0 0
      %1811 = vmatprep.subr.bf16.mxu0 0
      %1812 = vmatpush1.bf16.msra.mxu0 0
      %1813 = vmatprep.subr.bf16.mxu0 0
      %1814 = vmatpush1.bf16.msra.mxu0 0
      %1815 = vmatprep.subr.bf16.mxu0 0
      %1816 = vmatpush1.bf16.msra.mxu0 0
      %1817 = vmatprep.subr.bf16.mxu0 0
      %1818 = vmatpush1.bf16.msra.mxu0 0
      %1819 = vmatprep.subr.bf16.mxu0 0
      %1820 = vmatpush1.bf16.msra.mxu0 0
      %1821 = vmatprep.subr.bf16.mxu0 0
      %1822 = vmatpush1.bf16.msra.mxu0 0
      %1823 = vmatprep.subr.bf16.mxu0 0
      %1824 = vmatpush1.bf16.msra.mxu0 0
      %1825 = vmatprep.subr.bf16.mxu0 0
      %1826 = vmatpush1.bf16.msra.mxu0 0
      %1827 = vmatprep.subr.bf16.mxu0 0
      %1828 = vmatpush1.bf16.msra.mxu0 0
      %1829 = vmatprep.subr.bf16.mxu0 0
      %1830 = vmatpush1.bf16.msra.mxu0 0
      %1831 = vmatprep.subr.bf16.mxu0 0
      %1832 = vmatpush1.bf16.msra.mxu0 0
      %1833 = vmatprep.subr.bf16.mxu0 0
      %1834 = vmatpush1.bf16.msra.mxu0 0
      %1835 = vmatprep.subr.bf16.mxu0 0
      %1836 = vmatpush1.bf16.msra.mxu0 0
      %1837 = vmatprep.mubr.bf16.mxu0 0
      %1838 = vmatmul.mubr.bf16.gmra.mrb[0].mxu0 %v1800
      %v1839 = vpop.f32.mrb[0].mxu0
      %v1840 = vadd.f32 0.0, %v1839
      %v1841 = vpop.f32.mrb[0].mxu0
      %v1842 = vpop.f32.mrb[0].mxu0
      %v1843 = vadd.f32 0.0, %v1842
      %v1844 = vpop.f32.mrb[0].mxu0
      %1845 = vmatprep.mubr.bf16.mxu0 0
      %1846 = vmatmul.mubr.bf16.gmra.mrb[0].mxu0 %v1803
      %v1847 = vpop.f32.mrb[0].mxu0
      %v1848 = vadd.f32 0.0, %v1847
      %v1849 = vpop.f32.mrb[0].mxu0
      %v1850 = vpop.f32.mrb[0].mxu0
      %v1851 = vpop.f32.mrb[0].mxu0
      %1852 = vdwg.mxu0
      %v1853 = vadd.f32 %v1777, %v1840
      %v1854 = vadd.f32 %v1778, %v1843
      %v1855 = vadd.f32 %v1779, %v1848
      %v1856 = vld [vmem:[#allocation2 + $0x4] sm:$0xc]
      %v1857 = vld [vmem:[#allocation2 + $0x8] sm:$0xf]
      %v1858 = vld [vmem:[#allocation2 + $0xc] sm:$0xf]
      %v1859 = vld [vmem:[#allocation2 + $0x10] sm:$0x3]
      %s1860 = scalar_lea.vmem %s4, 96
      %v1861 = vld [vmem:[%s1860] sm:$0xf]
      %v1862 = vld [vmem:[%s1860 + $0x4] sm:$0xf]
      %v1863 = vld [vmem:[%s1860 + $0x8] sm:$0xf]
      %v1864 = vld [vmem:[%s1860 + $0xc] sm:$0xf]
      %v1869 = vunpack.c.l.b16 %v1856
      %v1870 = vunpack.c.l.b16 %v1857
      %v1871 = vunpack.c.l.b16 %v1858
      %v1872 = vunpack.c.l.b16 %v1859
      %v1873 = vpack.c.b16 %v1870, %v1869
      %v1874 = vpack.c.b16 %v1872, %v1871
      %v1875 = vrot.slane %v1873, 2
      %v1876 = vrot.slane %v1874, 2
      %v1877 = vsel %vm1003, %v1875, %v1876
      %v1882 = vunpack.c.l.b16 %v1861
      %v1883 = vunpack.c.l.b16 %v1862
      %v1884 = vunpack.c.l.b16 %v1863
      %v1885 = vunpack.c.l.b16 %v1864
      %v1886 = vpack.c.b16 %v1883, %v1882
      %v1887 = vpack.c.b16 %v1885, %v1884
      %v1891 = vsel %vm523, %v1877, 0
      %v1894 = vsel %vm523, %v1876, 0
      %1896 = vmatprep.subr.bf16.mxu0 0
      %1897 = vmatpush1.bf16.msra.mxu0 %v1886
      %1898 = vmatprep.subr.bf16.mxu0 0
      %1899 = vmatpush1.bf16.msra.mxu0 %v1887
      %1900 = vmatprep.subr.bf16.mxu0 0
      %1901 = vmatpush1.bf16.msra.mxu0 0
      %1902 = vmatprep.subr.bf16.mxu0 0
      %1903 = vmatpush1.bf16.msra.mxu0 0
      %1904 = vmatprep.subr.bf16.mxu0 0
      %1905 = vmatpush1.bf16.msra.mxu0 0
      %1906 = vmatprep.subr.bf16.mxu0 0
      %1907 = vmatpush1.bf16.msra.mxu0 0
      %1908 = vmatprep.subr.bf16.mxu0 0
      %1909 = vmatpush1.bf16.msra.mxu0 0
      %1910 = vmatprep.subr.bf16.mxu0 0
      %1911 = vmatpush1.bf16.msra.mxu0 0
      %1912 = vmatprep.subr.bf16.mxu0 0
      %1913 = vmatpush1.bf16.msra.mxu0 0
      %1914 = vmatprep.subr.bf16.mxu0 0
      %1915 = vmatpush1.bf16.msra.mxu0 0
      %1916 = vmatprep.subr.bf16.mxu0 0
      %1917 = vmatpush1.bf16.msra.mxu0 0
      %1918 = vmatprep.subr.bf16.mxu0 0
      %1919 = vmatpush1.bf16.msra.mxu0 0
      %1920 = vmatprep.subr.bf16.mxu0 0
      %1921 = vmatpush1.bf16.msra.mxu0 0
      %1922 = vmatprep.subr.bf16.mxu0 0
      %1923 = vmatpush1.bf16.msra.mxu0 0
      %1924 = vmatprep.subr.bf16.mxu0 0
      %1925 = vmatpush1.bf16.msra.mxu0 0
      %1926 = vmatprep.subr.bf16.mxu0 0
      %1927 = vmatpush1.bf16.msra.mxu0 0
      %1928 = vmatprep.mubr.bf16.mxu0 0
      %1929 = vmatmul.mubr.bf16.gmra.mrb[0].mxu0 %v1891
      %v1930 = vpop.f32.mrb[0].mxu0
      %v1931 = vadd.f32 0.0, %v1930
      %v1932 = vpop.f32.mrb[0].mxu0
      %v1933 = vpop.f32.mrb[0].mxu0
      %v1934 = vadd.f32 0.0, %v1933
      %v1935 = vpop.f32.mrb[0].mxu0
      %1936 = vmatprep.mubr.bf16.mxu0 0
      %1937 = vmatmul.mubr.bf16.gmra.mrb[0].mxu0 %v1894
      %v1938 = vpop.f32.mrb[0].mxu0
      %v1939 = vadd.f32 0.0, %v1938
      %v1940 = vpop.f32.mrb[0].mxu0
      %v1941 = vpop.f32.mrb[0].mxu0
      %v1942 = vpop.f32.mrb[0].mxu0
      %1943 = vdwg.mxu0
      %v1944 = vadd.f32 %v1853, %v1931
      %v1945 = vadd.f32 %v1854, %v1934
      %v1946 = vadd.f32 %v1855, %v1939
      %v1947 = vld [vmem:[#allocation2 + $0x10] sm:$0x7]
      %s1948 = scalar_lea.vmem %s4, 112
      %v1949 = vld [vmem:[%s1948] sm:$0xf]
      %v1950 = vld [vmem:[%s1948 + $0x4] sm:$0xf]
      %v1951 = vld [vmem:[%s1948 + $0x8] sm:$0xf]
      %v1952 = vld [vmem:[%s1948 + $0xc] sm:$0xf]
      %v1954 = vunpack.c.l.b16 %v1947
      %v1955 = vpack.c.b16 %v1954, %v1871
      %v1957 = vshrl.u32 %v1873, 16
      %v1959 = vrot.slane %v1957, 2
      %v1960 = vshll.u32 %v1873, 16
      %v1962 = vrot.slane %v1960, 3
      %v1963 = vor.u32 %v1959, %v1962
      %v1965 = vshrl.u32 %v1955, 16
      %v1967 = vrot.slane %v1965, 2
      %v1968 = vshll.u32 %v1955, 16
      %v1970 = vrot.slane %v1968, 3
      %v1971 = vor.u32 %v1967, %v1970
      %v1972 = vsel %vm1085, %v1963, %v1971
      %v1977 = vunpack.c.l.b16 %v1949
      %v1978 = vunpack.c.l.b16 %v1950
      %v1979 = vunpack.c.l.b16 %v1951
      %v1980 = vunpack.c.l.b16 %v1952
      %v1981 = vpack.c.b16 %v1978, %v1977
      %v1982 = vpack.c.b16 %v1980, %v1979
      %v1986 = vsel %vm523, %v1972, 0
      %v1989 = vsel %vm523, %v1971, 0
      %1991 = vmatprep.subr.bf16.mxu0 0
      %1992 = vmatpush1.bf16.msra.mxu0 %v1981
      %1993 = vmatprep.subr.bf16.mxu0 0
      %1994 = vmatpush1.bf16.msra.mxu0 %v1982
      %1995 = vmatprep.subr.bf16.mxu0 0
      %1996 = vmatpush1.bf16.msra.mxu0 0
      %1997 = vmatprep.subr.bf16.mxu0 0
      %1998 = vmatpush1.bf16.msra.mxu0 0
      %1999 = vmatprep.subr.bf16.mxu0 0
      %2000 = vmatpush1.bf16.msra.mxu0 0
      %2001 = vmatprep.subr.bf16.mxu0 0
      %2002 = vmatpush1.bf16.msra.mxu0 0
      %2003 = vmatprep.subr.bf16.mxu0 0
      %2004 = vmatpush1.bf16.msra.mxu0 0
      %2005 = vmatprep.subr.bf16.mxu0 0
      %2006 = vmatpush1.bf16.msra.mxu0 0
      %2007 = vmatprep.subr.bf16.mxu0 0
      %2008 = vmatpush1.bf16.msra.mxu0 0
      %2009 = vmatprep.subr.bf16.mxu0 0
      %2010 = vmatpush1.bf16.msra.mxu0 0
      %2011 = vmatprep.subr.bf16.mxu0 0
      %2012 = vmatpush1.bf16.msra.mxu0 0
      %2013 = vmatprep.subr.bf16.mxu0 0
      %2014 = vmatpush1.bf16.msra.mxu0 0
      %2015 = vmatprep.subr.bf16.mxu0 0
      %2016 = vmatpush1.bf16.msra.mxu0 0
      %2017 = vmatprep.subr.bf16.mxu0 0
      %2018 = vmatpush1.bf16.msra.mxu0 0
      %2019 = vmatprep.subr.bf16.mxu0 0
      %2020 = vmatpush1.bf16.msra.mxu0 0
      %2021 = vmatprep.subr.bf16.mxu0 0
      %2022 = vmatpush1.bf16.msra.mxu0 0
      %2023 = vmatprep.mubr.bf16.mxu0 0
      %2024 = vmatmul.mubr.bf16.gmra.mrb[0].mxu0 %v1986
      %v2025 = vpop.f32.mrb[0].mxu0
      %v2026 = vadd.f32 0.0, %v2025
      %v2027 = vpop.f32.mrb[0].mxu0
      %v2028 = vpop.f32.mrb[0].mxu0
      %v2029 = vadd.f32 0.0, %v2028
      %v2030 = vpop.f32.mrb[0].mxu0
      %2031 = vmatprep.mubr.bf16.mxu0 0
      %2032 = vmatmul.mubr.bf16.gmra.mrb[0].mxu0 %v1989
      %v2033 = vpop.f32.mrb[0].mxu0
      %v2034 = vadd.f32 0.0, %v2033
      %v2035 = vpop.f32.mrb[0].mxu0
      %v2036 = vpop.f32.mrb[0].mxu0
      %v2037 = vpop.f32.mrb[0].mxu0
      %2038 = vdwg.mxu0
      %v2039 = vadd.f32 %v1944, %v2026
      %v2040 = vadd.f32 %v1945, %v2029
      %v2041 = vadd.f32 %v1946, %v2034
      %v2042 = vld [vmem:[#allocation2 + $0x4] sm:$0x8]
      %s2043 = scalar_lea.vmem %s4, 128
      %v2044 = vld [vmem:[%s2043] sm:$0xf]
      %v2045 = vld [vmem:[%s2043 + $0x4] sm:$0xf]
      %v2046 = vld [vmem:[%s2043 + $0x8] sm:$0xf]
      %v2047 = vld [vmem:[%s2043 + $0xc] sm:$0xf]
      %v2049 = vunpack.c.l.b16 %v2042
      %v2050 = vpack.c.b16 %v1870, %v2049
      %v2051 = vrot.slane %v2050, 3
      %v2052 = vrot.slane %v1955, 3
      %v2053 = vsel %vm739, %v2051, %v2052
      %v2058 = vunpack.c.l.b16 %v2044
      %v2059 = vunpack.c.l.b16 %v2045
      %v2060 = vunpack.c.l.b16 %v2046
      %v2061 = vunpack.c.l.b16 %v2047
      %v2062 = vpack.c.b16 %v2059, %v2058
      %v2063 = vpack.c.b16 %v2061, %v2060
      %v2067 = vsel %vm523, %v2053, 0
      %v2070 = vsel %vm523, %v2052, 0
      %2072 = vmatprep.subr.bf16.mxu0 0
      %2073 = vmatpush1.bf16.msra.mxu0 %v2062
      %2074 = vmatprep.subr.bf16.mxu0 0
      %2075 = vmatpush1.bf16.msra.mxu0 %v2063
      %2076 = vmatprep.subr.bf16.mxu0 0
      %2077 = vmatpush1.bf16.msra.mxu0 0
      %2078 = vmatprep.subr.bf16.mxu0 0
      %2079 = vmatpush1.bf16.msra.mxu0 0
      %2080 = vmatprep.subr.bf16.mxu0 0
      %2081 = vmatpush1.bf16.msra.mxu0 0
      %2082 = vmatprep.subr.bf16.mxu0 0
      %2083 = vmatpush1.bf16.msra.mxu0 0
      %2084 = vmatprep.subr.bf16.mxu0 0
      %2085 = vmatpush1.bf16.msra.mxu0 0
      %2086 = vmatprep.subr.bf16.mxu0 0
      %2087 = vmatpush1.bf16.msra.mxu0 0
      %2088 = vmatprep.subr.bf16.mxu0 0
      %2089 = vmatpush1.bf16.msra.mxu0 0
      %2090 = vmatprep.subr.bf16.mxu0 0
      %2091 = vmatpush1.bf16.msra.mxu0 0
      %2092 = vmatprep.subr.bf16.mxu0 0
      %2093 = vmatpush1.bf16.msra.mxu0 0
      %2094 = vmatprep.subr.bf16.mxu0 0
      %2095 = vmatpush1.bf16.msra.mxu0 0
      %2096 = vmatprep.subr.bf16.mxu0 0
      %2097 = vmatpush1.bf16.msra.mxu0 0
      %2098 = vmatprep.subr.bf16.mxu0 0
      %2099 = vmatpush1.bf16.msra.mxu0 0
      %2100 = vmatprep.subr.bf16.mxu0 0
      %2101 = vmatpush1.bf16.msra.mxu0 0
      %2102 = vmatprep.subr.bf16.mxu0 0
      %2103 = vmatpush1.bf16.msra.mxu0 0
      %2104 = vmatprep.mubr.bf16.mxu0 0
      %2105 = vmatmul.mubr.bf16.gmra.mrb[0].mxu0 %v2067
      %v2106 = vpop.f32.mrb[0].mxu0
      %v2107 = vadd.f32 0.0, %v2106
      %v2108 = vpop.f32.mrb[0].mxu0
      %v2109 = vpop.f32.mrb[0].mxu0
      %v2110 = vadd.f32 0.0, %v2109
      %v2111 = vpop.f32.mrb[0].mxu0
      %2112 = vmatprep.mubr.bf16.mxu0 0
      %2113 = vmatmul.mubr.bf16.gmra.mrb[0].mxu0 %v2070
      %v2114 = vpop.f32.mrb[0].mxu0
      %v2115 = vadd.f32 0.0, %v2114
      %v2116 = vpop.f32.mrb[0].mxu0
      %v2117 = vpop.f32.mrb[0].mxu0
      %v2118 = vpop.f32.mrb[0].mxu0
      %2119 = vdwg.mxu0
      %v2120 = vadd.f32 %v2039, %v2107
      %v2121 = vadd.f32 %v2040, %v2110
      %v2122 = vadd.f32 %v2041, %v2115
      %v2123 = vld [vmem:[%s5] sm:$0x1]
      %v2125 = vlaneseq
      %v2126 = vshrl.u32 %v2125, 7
      %v2127 = vsub.s32 0, %v2126
      %v2128 = vrot.slane %v2123, %v2127
      %v2130 = vadd.f32 %v2120, %v2128
      %v2131 = vadd.f32 %v2121, %v2128
      %v2132 = vadd.f32 %v2122, %v2128
      %v2133 = vmax.f32 %v2130, 0.0
      %v2134 = vmax.f32 %v2131, 0.0
      %v2135 = vmax.f32 %v2132, 0.0
      %v2136 = vpack.c.bf16 %v2134, %v2133
      %v2137 = vpack.c.bf16 %v2135, %v2135
      %v2138 = vld [vmem:[%s6] sm:$0xf]
      %v2139 = vld [vmem:[%s7] sm:$0x1]
      %v2141 = vlaneseq
      %v2142 = vshrl.u32 %v2141, 7
      %v2143 = vsub.s32 0, %v2142
      %v2144 = vrot.slane %v2139, %v2143
      %vm2146 = vcmask 64512
      %v2148 = vsel %vm2146, %v2136, 0
      %v2151 = vsel %vm2146, %v2137, 0
      %vm2153 = vcmask 1043456
      %v2155 = vsel %vm2153, %v2138, 0
      %2157 = vmatprep.subr.bf16.mxu0 0
      %2158 = vmatpush1.bf16.msra.mxu0 %v2155
      %2159 = vmatprep.subr.bf16.mxu0 0
      %2160 = vmatpush1.bf16.msra.mxu0 0
      %2161 = vmatprep.subr.bf16.mxu0 0
      %2162 = vmatpush1.bf16.msra.mxu0 0
      %2163 = vmatprep.subr.bf16.mxu0 0
      %2164 = vmatpush1.bf16.msra.mxu0 0
      %2165 = vmatprep.subr.bf16.mxu0 0
      %2166 = vmatpush1.bf16.msra.mxu0 0
      %2167 = vmatprep.subr.bf16.mxu0 0
      %2168 = vmatpush1.bf16.msra.mxu0 0
      %2169 = vmatprep.subr.bf16.mxu0 0
      %2170 = vmatpush1.bf16.msra.mxu0 0
      %2171 = vmatprep.subr.bf16.mxu0 0
      %2172 = vmatpush1.bf16.msra.mxu0 0
      %2173 = vmatprep.subr.bf16.mxu0 0
      %2174 = vmatpush1.bf16.msra.mxu0 0
      %2175 = vmatprep.subr.bf16.mxu0 0
      %2176 = vmatpush1.bf16.msra.mxu0 0
      %2177 = vmatprep.subr.bf16.mxu0 0
      %2178 = vmatpush1.bf16.msra.mxu0 0
      %2179 = vmatprep.subr.bf16.mxu0 0
      %2180 = vmatpush1.bf16.msra.mxu0 0
      %2181 = vmatprep.subr.bf16.mxu0 0
      %2182 = vmatpush1.bf16.msra.mxu0 0
      %2183 = vmatprep.subr.bf16.mxu0 0
      %2184 = vmatpush1.bf16.msra.mxu0 0
      %2185 = vmatprep.subr.bf16.mxu0 0
      %2186 = vmatpush1.bf16.msra.mxu0 0
      %2187 = vmatprep.subr.bf16.mxu0 0
      %2188 = vmatpush1.bf16.msra.mxu0 0
      %2189 = vmatprep.mubr.bf16.mxu0 0
      %2190 = vmatmul.mubr.bf16.gmra.mrb[0].mxu0 %v2148
      %v2191 = vpop.f32.mrb[0].mxu0
      %v2192 = vadd.f32 %v2144, %v2191
      %v2193 = vpop.f32.mrb[0].mxu0
      %v2194 = vpop.f32.mrb[0].mxu0
      %v2195 = vadd.f32 %v2144, %v2194
      %v2196 = vpop.f32.mrb[0].mxu0
      %2197 = vmatprep.mubr.bf16.mxu0 0
      %2198 = vmatmul.mubr.bf16.gmra.mrb[0].mxu0 %v2151
      %v2199 = vpop.f32.mrb[0].mxu0
      %v2200 = vadd.f32 %v2144, %v2199
      %v2201 = vpop.f32.mrb[0].mxu0
      %v2202 = vpop.f32.mrb[0].mxu0
      %v2203 = vpop.f32.mrb[0].mxu0
      %2204 = vdwg.mxu0
      %v2205 = vadd.f32 %v2192, %v1263
      %v2206 = vadd.f32 %v2195, %v1264
      %v2207 = vadd.f32 %v2200, %v1265
      %v2208 = vmax.f32 %v2205, 0.0
      %v2209 = vmax.f32 %v2206, 0.0
      %v2210 = vmax.f32 %v2207, 0.0
      %2211 = vst.msk [vmem:[#allocation3] sm:$0xf] %vm1266, 0
      %2212 = vst.msk [vmem:[#allocation3 + $0x4] sm:$0xf] %vm1266, 0
      %2213 = vst.msk [vmem:[#allocation3 + $0x8] sm:$0xf] %vm1266, 0
      %2214 = vst.msk [vmem:[#allocation3 + $0xc] sm:$0xf] %vm1266, 0
      %2215 = vst.msk [vmem:[#allocation3 + $0x10] sm:$0xf] %vm1266, 0
      %v2216 = vmul.f32 %v2208, %v1275
      %v2217 = vmul.f32 %v2209, %v1280
      %v2218 = vmul.f32 %v2210, %v1285
      %v2219 = vpack.c.bf16 %v2217, %v2216
      %v2220 = vpack.c.bf16 %v2218, %v2218
      %v2223 = vunpack.c.l.b16 %v2219
      %v2224 = vunpack.c.h.b16 %v2219
      %v2225 = vunpack.c.l.b16 %v2220
      %v2226 = vpack.c.b16 %v2223, %v2223
      %v2227 = vpack.c.b16 %v2224, %v2224
      %v2228 = vpack.c.b16 %v2225, %v2225
      %v2230 = vshll.u32 %v2226, 16
      %v2232 = vrot.slane %v2230, 5
      %v2233 = vshrl.u32 %v2226, 16
      %v2235 = vrot.slane %v2233, 4
      %v2236 = vor.u32 %v2235, %v2232
      %v2237 = vrot.slane %v2236, 4
      %v2239 = vshll.u32 %v2227, 16
      %v2241 = vrot.slane %v2239, 5
      %v2242 = vsel %vm1302, %v2237, %v2241
      %v2243 = vshrl.u32 %v2227, 16
      %v2245 = vrot.slane %v2243, 4
      %v2246 = vor.u32 %v2245, %v2241
      %v2247 = vrot.slane %v2246, 4
      %v2249 = vshll.u32 %v2228, 16
      %v2251 = vrot.slane %v2249, 5
      %v2252 = vsel %vm1302, %v2247, %v2251
      %v2253 = vshrl.u32 %v2228, 16
      %v2255 = vrot.slane %v2253, 4
      %v2256 = vor.u32 %v2255, %v2251
      %v2257 = vrot.slane %v2256, 4
      %v2262 = vld [vmem:[#allocation3] sm:$0x8]
      %v2263 = vsel %vm1338, %v2232, %v2262
      %2264 = vst [vmem:[#allocation3] sm:$0x8] %v2263
      %2265 = vst.msk [vmem:[#allocation3 + $0x4] sm:$0xf] %vm1266, %v2242
      %2266 = vst.msk [vmem:[#allocation3 + $0x8] sm:$0xf] %vm1266, %v2252
      %v2267 = vld [vmem:[#allocation3 + $0xc] sm:$0xf]
      %v2268 = vsel %vm1345, %v2257, %v2267
      %2269 = vst [vmem:[#allocation3 + $0xc] sm:$0xf] %v2268
      %v2270 = vld [vmem:[#allocation3] sm:$0xf]
      %v2271 = vld [vmem:[#allocation3 + $0x4] sm:$0xf]
      %v2272 = vld [vmem:[#allocation3 + $0x8] sm:$0xf]
      %v2273 = vld [vmem:[%s8] sm:$0xf]
      %v2274 = vld [vmem:[%s8 + $0x4] sm:$0xf]
      %v2275 = vld [vmem:[%s8 + $0x8] sm:$0xf]
      %v2276 = vld [vmem:[%s8 + $0xc] sm:$0xf]
      %v2277 = vld [vmem:[#allocation3 + $0xc] sm:$0x1]
      %s2278 = scalar_lea.vmem %s8, 16
      %v2279 = vld [vmem:[%s2278] sm:$0xf]
      %v2280 = vld [vmem:[%s2278 + $0x4] sm:$0xf]
      %v2281 = vld [vmem:[%s2278 + $0x8] sm:$0xf]
      %v2282 = vld [vmem:[%s2278 + $0xc] sm:$0xf]
      %v2287 = vunpack.c.l.b16 %v2270
      %v2288 = vunpack.c.l.b16 %v2271
      %v2289 = vunpack.c.l.b16 %v2272
      %v2290 = vunpack.c.l.b16 %v2277
      %v2291 = vpack.c.b16 %v2288, %v2287
      %v2292 = vpack.c.b16 %v2290, %v2289
      %v2294 = vshrl.u32 %v2291, 16
      %v2296 = vshll.u32 %v2291, 16
      %v2298 = vrot.slane %v2296, 1
      %v2299 = vor.u32 %v2294, %v2298
      %v2301 = vshll.u32 %v2292, 16
      %v2303 = vrot.slane %v2301, 1
      %v2304 = vsel %vm495, %v2299, %v2303
      %v2305 = vshrl.u32 %v2292, 16
      %v2307 = vor.u32 %v2305, %v2303
      %v2312 = vunpack.c.l.b16 %v2279
      %v2313 = vunpack.c.l.b16 %v2280
      %v2314 = vunpack.c.l.b16 %v2281
      %v2315 = vunpack.c.l.b16 %v2282
      %v2316 = vpack.c.b16 %v2313, %v2312
      %v2317 = vpack.c.b16 %v2315, %v2314
      %v2321 = vsel %vm523, %v2304, 0
      %v2324 = vsel %vm523, %v2307, 0
      %2326 = vmatprep.subr.bf16.mxu0 0
      %2327 = vmatpush1.bf16.msra.mxu0 %v2316
      %2328 = vmatprep.subr.bf16.mxu0 0
      %2329 = vmatpush1.bf16.msra.mxu0 %v2317
      %2330 = vmatprep.subr.bf16.mxu0 0
      %2331 = vmatpush1.bf16.msra.mxu0 0
      %2332 = vmatprep.subr.bf16.mxu0 0
      %2333 = vmatpush1.bf16.msra.mxu0 0
      %2334 = vmatprep.subr.bf16.mxu0 0
      %2335 = vmatpush1.bf16.msra.mxu0 0
      %2336 = vmatprep.subr.bf16.mxu0 0
      %2337 = vmatpush1.bf16.msra.mxu0 0
      %2338 = vmatprep.subr.bf16.mxu0 0
      %2339 = vmatpush1.bf16.msra.mxu0 0
      %2340 = vmatprep.subr.bf16.mxu0 0
      %2341 = vmatpush1.bf16.msra.mxu0 0
      %2342 = vmatprep.subr.bf16.mxu0 0
      %2343 = vmatpush1.bf16.msra.mxu0 0
      %2344 = vmatprep.subr.bf16.mxu0 0
      %2345 = vmatpush1.bf16.msra.mxu0 0
      %2346 = vmatprep.subr.bf16.mxu0 0
      %2347 = vmatpush1.bf16.msra.mxu0 0
      %2348 = vmatprep.subr.bf16.mxu0 0
      %2349 = vmatpush1.bf16.msra.mxu0 0
      %2350 = vmatprep.subr.bf16.mxu0 0
      %2351 = vmatpush1.bf16.msra.mxu0 0
      %2352 = vmatprep.subr.bf16.mxu0 0
      %2353 = vmatpush1.bf16.msra.mxu0 0
      %2354 = vmatprep.subr.bf16.mxu0 0
      %2355 = vmatpush1.bf16.msra.mxu0 0
      %2356 = vmatprep.subr.bf16.mxu0 0
      %2357 = vmatpush1.bf16.msra.mxu0 0
      %2358 = vmatprep.mubr.bf16.mxu0 0
      %2359 = vmatmul.mubr.bf16.gmra.mrb[0].mxu0 %v2321
      %v2360 = vpop.f32.mrb[0].mxu0
      %v2361 = vadd.f32 0.0, %v2360
      %v2362 = vpop.f32.mrb[0].mxu0
      %v2363 = vpop.f32.mrb[0].mxu0
      %v2364 = vadd.f32 0.0, %v2363
      %v2365 = vpop.f32.mrb[0].mxu0
      %2366 = vmatprep.mubr.bf16.mxu0 0
      %2367 = vmatmul.mubr.bf16.gmra.mrb[0].mxu0 %v2324
      %v2368 = vpop.f32.mrb[0].mxu0
      %v2369 = vadd.f32 0.0, %v2368
      %v2370 = vpop.f32.mrb[0].mxu0
      %v2371 = vpop.f32.mrb[0].mxu0
      %v2372 = vpop.f32.mrb[0].mxu0
      %2373 = vdwg.mxu0
      %v2374 = vpack.c.b16 %v2289, %v2289
      %v2379 = vunpack.c.l.b16 %v2273
      %v2380 = vunpack.c.l.b16 %v2274
      %v2381 = vunpack.c.l.b16 %v2275
      %v2382 = vunpack.c.l.b16 %v2276
      %v2383 = vpack.c.b16 %v2380, %v2379
      %v2384 = vpack.c.b16 %v2382, %v2381
      %v2387 = vsel %vm523, %v2291, 0
      %v2390 = vsel %vm523, %v2374, 0
      %2392 = vmatprep.subr.bf16.mxu0 0
      %2393 = vmatpush1.bf16.msra.mxu0 %v2383
      %2394 = vmatprep.subr.bf16.mxu0 0
      %2395 = vmatpush1.bf16.msra.mxu0 %v2384
      %2396 = vmatprep.subr.bf16.mxu0 0
      %2397 = vmatpush1.bf16.msra.mxu0 0
      %2398 = vmatprep.subr.bf16.mxu0 0
      %2399 = vmatpush1.bf16.msra.mxu0 0
      %2400 = vmatprep.subr.bf16.mxu0 0
      %2401 = vmatpush1.bf16.msra.mxu0 0
      %2402 = vmatprep.subr.bf16.mxu0 0
      %2403 = vmatpush1.bf16.msra.mxu0 0
      %2404 = vmatprep.subr.bf16.mxu0 0
      %2405 = vmatpush1.bf16.msra.mxu0 0
      %2406 = vmatprep.subr.bf16.mxu0 0
      %2407 = vmatpush1.bf16.msra.mxu0 0
      %2408 = vmatprep.subr.bf16.mxu0 0
      %2409 = vmatpush1.bf16.msra.mxu0 0
      %2410 = vmatprep.subr.bf16.mxu0 0
      %2411 = vmatpush1.bf16.msra.mxu0 0
      %2412 = vmatprep.subr.bf16.mxu0 0
      %2413 = vmatpush1.bf16.msra.mxu0 0
      %2414 = vmatprep.subr.bf16.mxu0 0
      %2415 = vmatpush1.bf16.msra.mxu0 0
      %2416 = vmatprep.subr.bf16.mxu0 0
      %2417 = vmatpush1.bf16.msra.mxu0 0
      %2418 = vmatprep.subr.bf16.mxu0 0
      %2419 = vmatpush1.bf16.msra.mxu0 0
      %2420 = vmatprep.subr.bf16.mxu0 0
      %2421 = vmatpush1.bf16.msra.mxu0 0
      %2422 = vmatprep.subr.bf16.mxu0 0
      %2423 = vmatpush1.bf16.msra.mxu0 0
      %2424 = vmatprep.mubr.bf16.mxu0 0
      %2425 = vmatmul.mubr.bf16.gmra.mrb[0].mxu0 %v2387
      %v2426 = vpop.f32.mrb[0].mxu0
      %v2427 = vadd.f32 %v2361, %v2426
      %v2428 = vpop.f32.mrb[0].mxu0
      %v2429 = vpop.f32.mrb[0].mxu0
      %v2430 = vadd.f32 %v2364, %v2429
      %v2431 = vpop.f32.mrb[0].mxu0
      %2432 = vmatprep.mubr.bf16.mxu0 0
      %2433 = vmatmul.mubr.bf16.gmra.mrb[0].mxu0 %v2390
      %v2434 = vpop.f32.mrb[0].mxu0
      %v2435 = vadd.f32 %v2369, %v2434
      %v2436 = vpop.f32.mrb[0].mxu0
      %v2437 = vpop.f32.mrb[0].mxu0
      %v2438 = vpop.f32.mrb[0].mxu0
      %2439 = vdwg.mxu0
      %v2440 = vld [vmem:[#allocation3] sm:$0xe]
      %s2441 = scalar_lea.vmem %s8, 32
      %v2442 = vld [vmem:[%s2441] sm:$0xf]
      %v2443 = vld [vmem:[%s2441 + $0x4] sm:$0xf]
      %v2444 = vld [vmem:[%s2441 + $0x8] sm:$0xf]
      %v2445 = vld [vmem:[%s2441 + $0xc] sm:$0xf]
      %v2447 = vunpack.c.l.b16 %v2440
      %v2448 = vpack.c.b16 %v2288, %v2447
      %v2449 = vrot.slane %v2448, 1
      %v2450 = vrot.slane %v2292, 1
      %v2451 = vsel %vm653, %v2449, %v2450
      %v2456 = vunpack.c.l.b16 %v2442
      %v2457 = vunpack.c.l.b16 %v2443
      %v2458 = vunpack.c.l.b16 %v2444
      %v2459 = vunpack.c.l.b16 %v2445
      %v2460 = vpack.c.b16 %v2457, %v2456
      %v2461 = vpack.c.b16 %v2459, %v2458
      %v2465 = vsel %vm523, %v2451, 0
      %v2468 = vsel %vm523, %v2450, 0
      %2470 = vmatprep.subr.bf16.mxu0 0
      %2471 = vmatpush1.bf16.msra.mxu0 %v2460
      %2472 = vmatprep.subr.bf16.mxu0 0
      %2473 = vmatpush1.bf16.msra.mxu0 %v2461
      %2474 = vmatprep.subr.bf16.mxu0 0
      %2475 = vmatpush1.bf16.msra.mxu0 0
      %2476 = vmatprep.subr.bf16.mxu0 0
      %2477 = vmatpush1.bf16.msra.mxu0 0
      %2478 = vmatprep.subr.bf16.mxu0 0
      %2479 = vmatpush1.bf16.msra.mxu0 0
      %2480 = vmatprep.subr.bf16.mxu0 0
      %2481 = vmatpush1.bf16.msra.mxu0 0
      %2482 = vmatprep.subr.bf16.mxu0 0
      %2483 = vmatpush1.bf16.msra.mxu0 0
      %2484 = vmatprep.subr.bf16.mxu0 0
      %2485 = vmatpush1.bf16.msra.mxu0 0
      %2486 = vmatprep.subr.bf16.mxu0 0
      %2487 = vmatpush1.bf16.msra.mxu0 0
      %2488 = vmatprep.subr.bf16.mxu0 0
      %2489 = vmatpush1.bf16.msra.mxu0 0
      %2490 = vmatprep.subr.bf16.mxu0 0
      %2491 = vmatpush1.bf16.msra.mxu0 0
      %2492 = vmatprep.subr.bf16.mxu0 0
      %2493 = vmatpush1.bf16.msra.mxu0 0
      %2494 = vmatprep.subr.bf16.mxu0 0
      %2495 = vmatpush1.bf16.msra.mxu0 0
      %2496 = vmatprep.subr.bf16.mxu0 0
      %2497 = vmatpush1.bf16.msra.mxu0 0
      %2498 = vmatprep.subr.bf16.mxu0 0
      %2499 = vmatpush1.bf16.msra.mxu0 0
      %2500 = vmatprep.subr.bf16.mxu0 0
      %2501 = vmatpush1.bf16.msra.mxu0 0
      %2502 = vmatprep.mubr.bf16.mxu0 0
      %2503 = vmatmul.mubr.bf16.gmra.mrb[0].mxu0 %v2465
      %v2504 = vpop.f32.mrb[0].mxu0
      %v2505 = vadd.f32 0.0, %v2504
      %v2506 = vpop.f32.mrb[0].mxu0
      %v2507 = vpop.f32.mrb[0].mxu0
      %v2508 = vadd.f32 0.0, %v2507
      %v2509 = vpop.f32.mrb[0].mxu0
      %2510 = vmatprep.mubr.bf16.mxu0 0
      %2511 = vmatmul.mubr.bf16.gmra.mrb[0].mxu0 %v2468
      %v2512 = vpop.f32.mrb[0].mxu0
      %v2513 = vadd.f32 0.0, %v2512
      %v2514 = vpop.f32.mrb[0].mxu0
      %v2515 = vpop.f32.mrb[0].mxu0
      %v2516 = vpop.f32.mrb[0].mxu0
      %2517 = vdwg.mxu0
      %v2518 = vadd.f32 %v2427, %v2505
      %v2519 = vadd.f32 %v2430, %v2508
      %v2520 = vadd.f32 %v2435, %v2513
      %v2521 = vld [vmem:[#allocation3] sm:$0x8]
      %v2522 = vld [vmem:[#allocation3 + $0xc] sm:$0x7]
      %s2523 = scalar_lea.vmem %s8, 48
      %v2524 = vld [vmem:[%s2523] sm:$0xf]
      %v2525 = vld [vmem:[%s2523 + $0x4] sm:$0xf]
      %v2526 = vld [vmem:[%s2523 + $0x8] sm:$0xf]
      %v2527 = vld [vmem:[%s2523 + $0xc] sm:$0xf]
      %v2530 = vunpack.c.l.b16 %v2521
      %v2531 = vunpack.c.l.b16 %v2522
      %v2532 = vpack.c.b16 %v2288, %v2530
      %v2533 = vpack.c.b16 %v2531, %v2289
      %v2534 = vrot.slane %v2532, 3
      %v2535 = vrot.slane %v2533, 3
      %v2536 = vsel %vm739, %v2534, %v2535
      %v2541 = vunpack.c.l.b16 %v2524
      %v2542 = vunpack.c.l.b16 %v2525
      %v2543 = vunpack.c.l.b16 %v2526
      %v2544 = vunpack.c.l.b16 %v2527
      %v2545 = vpack.c.b16 %v2542, %v2541
      %v2546 = vpack.c.b16 %v2544, %v2543
      %v2550 = vsel %vm523, %v2536, 0
      %v2553 = vsel %vm523, %v2535, 0
      %2555 = vmatprep.subr.bf16.mxu0 0
      %2556 = vmatpush1.bf16.msra.mxu0 %v2545
      %2557 = vmatprep.subr.bf16.mxu0 0
      %2558 = vmatpush1.bf16.msra.mxu0 %v2546
      %2559 = vmatprep.subr.bf16.mxu0 0
      %2560 = vmatpush1.bf16.msra.mxu0 0
      %2561 = vmatprep.subr.bf16.mxu0 0
      %2562 = vmatpush1.bf16.msra.mxu0 0
      %2563 = vmatprep.subr.bf16.mxu0 0
      %2564 = vmatpush1.bf16.msra.mxu0 0
      %2565 = vmatprep.subr.bf16.mxu0 0
      %2566 = vmatpush1.bf16.msra.mxu0 0
      %2567 = vmatprep.subr.bf16.mxu0 0
      %2568 = vmatpush1.bf16.msra.mxu0 0
      %2569 = vmatprep.subr.bf16.mxu0 0
      %2570 = vmatpush1.bf16.msra.mxu0 0
      %2571 = vmatprep.subr.bf16.mxu0 0
      %2572 = vmatpush1.bf16.msra.mxu0 0
      %2573 = vmatprep.subr.bf16.mxu0 0
      %2574 = vmatpush1.bf16.msra.mxu0 0
      %2575 = vmatprep.subr.bf16.mxu0 0
      %2576 = vmatpush1.bf16.msra.mxu0 0
      %2577 = vmatprep.subr.bf16.mxu0 0
      %2578 = vmatpush1.bf16.msra.mxu0 0
      %2579 = vmatprep.subr.bf16.mxu0 0
      %2580 = vmatpush1.bf16.msra.mxu0 0
      %2581 = vmatprep.subr.bf16.mxu0 0
      %2582 = vmatpush1.bf16.msra.mxu0 0
      %2583 = vmatprep.subr.bf16.mxu0 0
      %2584 = vmatpush1.bf16.msra.mxu0 0
      %2585 = vmatprep.subr.bf16.mxu0 0
      %2586 = vmatpush1.bf16.msra.mxu0 0
      %2587 = vmatprep.mubr.bf16.mxu0 0
      %2588 = vmatmul.mubr.bf16.gmra.mrb[0].mxu0 %v2550
      %v2589 = vpop.f32.mrb[0].mxu0
      %v2590 = vadd.f32 0.0, %v2589
      %v2591 = vpop.f32.mrb[0].mxu0
      %v2592 = vpop.f32.mrb[0].mxu0
      %v2593 = vadd.f32 0.0, %v2592
      %v2594 = vpop.f32.mrb[0].mxu0
      %2595 = vmatprep.mubr.bf16.mxu0 0
      %2596 = vmatmul.mubr.bf16.gmra.mrb[0].mxu0 %v2553
      %v2597 = vpop.f32.mrb[0].mxu0
      %v2598 = vadd.f32 0.0, %v2597
      %v2599 = vpop.f32.mrb[0].mxu0
      %v2600 = vpop.f32.mrb[0].mxu0
      %v2601 = vpop.f32.mrb[0].mxu0
      %2602 = vdwg.mxu0
      %v2603 = vadd.f32 %v2518, %v2590
      %v2604 = vadd.f32 %v2519, %v2593
      %v2605 = vadd.f32 %v2520, %v2598
      %v2606 = vld [vmem:[#allocation3 + $0xc] sm:$0xf]
      %s2607 = scalar_lea.vmem %s8, 64
      %v2608 = vld [vmem:[%s2607] sm:$0xf]
      %v2609 = vld [vmem:[%s2607 + $0x4] sm:$0xf]
      %v2610 = vld [vmem:[%s2607 + $0x8] sm:$0xf]
      %v2611 = vld [vmem:[%s2607 + $0xc] sm:$0xf]
      %v2613 = vunpack.c.l.b16 %v2606
      %v2614 = vpack.c.b16 %v2613, %v2289
      %v2616 = vshrl.u32 %v2532, 16
      %v2618 = vrot.slane %v2616, 3
      %v2619 = vshll.u32 %v2532, 16
      %v2621 = vrot.slane %v2619, 4
      %v2622 = vor.u32 %v2618, %v2621
      %v2624 = vshrl.u32 %v2614, 16
      %v2626 = vrot.slane %v2624, 3
      %v2627 = vshll.u32 %v2614, 16
      %v2629 = vrot.slane %v2627, 4
      %v2630 = vor.u32 %v2626, %v2629
      %v2631 = vsel %vm821, %v2622, %v2630
      %v2636 = vunpack.c.l.b16 %v2608
      %v2637 = vunpack.c.l.b16 %v2609
      %v2638 = vunpack.c.l.b16 %v2610
      %v2639 = vunpack.c.l.b16 %v2611
      %v2640 = vpack.c.b16 %v2637, %v2636
      %v2641 = vpack.c.b16 %v2639, %v2638
      %v2645 = vsel %vm523, %v2631, 0
      %v2648 = vsel %vm523, %v2630, 0
      %2650 = vmatprep.subr.bf16.mxu0 0
      %2651 = vmatpush1.bf16.msra.mxu0 %v2640
      %2652 = vmatprep.subr.bf16.mxu0 0
      %2653 = vmatpush1.bf16.msra.mxu0 %v2641
      %2654 = vmatprep.subr.bf16.mxu0 0
      %2655 = vmatpush1.bf16.msra.mxu0 0
      %2656 = vmatprep.subr.bf16.mxu0 0
      %2657 = vmatpush1.bf16.msra.mxu0 0
      %2658 = vmatprep.subr.bf16.mxu0 0
      %2659 = vmatpush1.bf16.msra.mxu0 0
      %2660 = vmatprep.subr.bf16.mxu0 0
      %2661 = vmatpush1.bf16.msra.mxu0 0
      %2662 = vmatprep.subr.bf16.mxu0 0
      %2663 = vmatpush1.bf16.msra.mxu0 0
      %2664 = vmatprep.subr.bf16.mxu0 0
      %2665 = vmatpush1.bf16.msra.mxu0 0
      %2666 = vmatprep.subr.bf16.mxu0 0
      %2667 = vmatpush1.bf16.msra.mxu0 0
      %2668 = vmatprep.subr.bf16.mxu0 0
      %2669 = vmatpush1.bf16.msra.mxu0 0
      %2670 = vmatprep.subr.bf16.mxu0 0
      %2671 = vmatpush1.bf16.msra.mxu0 0
      %2672 = vmatprep.subr.bf16.mxu0 0
      %2673 = vmatpush1.bf16.msra.mxu0 0
      %2674 = vmatprep.subr.bf16.mxu0 0
      %2675 = vmatpush1.bf16.msra.mxu0 0
      %2676 = vmatprep.subr.bf16.mxu0 0
      %2677 = vmatpush1.bf16.msra.mxu0 0
      %2678 = vmatprep.subr.bf16.mxu0 0
      %2679 = vmatpush1.bf16.msra.mxu0 0
      %2680 = vmatprep.subr.bf16.mxu0 0
      %2681 = vmatpush1.bf16.msra.mxu0 0
      %2682 = vmatprep.mubr.bf16.mxu0 0
      %2683 = vmatmul.mubr.bf16.gmra.mrb[0].mxu0 %v2645
      %v2684 = vpop.f32.mrb[0].mxu0
      %v2685 = vadd.f32 0.0, %v2684
      %v2686 = vpop.f32.mrb[0].mxu0
      %v2687 = vpop.f32.mrb[0].mxu0
      %v2688 = vadd.f32 0.0, %v2687
      %v2689 = vpop.f32.mrb[0].mxu0
      %2690 = vmatprep.mubr.bf16.mxu0 0
      %2691 = vmatmul.mubr.bf16.gmra.mrb[0].mxu0 %v2648
      %v2692 = vpop.f32.mrb[0].mxu0
      %v2693 = vadd.f32 0.0, %v2692
      %v2694 = vpop.f32.mrb[0].mxu0
      %v2695 = vpop.f32.mrb[0].mxu0
      %v2696 = vpop.f32.mrb[0].mxu0
      %2697 = vdwg.mxu0
      %v2698 = vadd.f32 %v2603, %v2685
      %v2699 = vadd.f32 %v2604, %v2688
      %v2700 = vadd.f32 %v2605, %v2693
      %s2701 = scalar_lea.vmem %s8, 80
      %v2702 = vld [vmem:[%s2701] sm:$0xf]
      %v2703 = vld [vmem:[%s2701 + $0x4] sm:$0xf]
      %v2704 = vld [vmem:[%s2701 + $0x8] sm:$0xf]
      %v2705 = vld [vmem:[%s2701 + $0xc] sm:$0xf]
      %v2706 = vpack.c.b16 %v2289, %v2288
      %v2707 = vpack.c.b16 %v2613, %v2613
      %v2712 = vunpack.c.l.b16 %v2702
      %v2713 = vunpack.c.l.b16 %v2703
      %v2714 = vunpack.c.l.b16 %v2704
      %v2715 = vunpack.c.l.b16 %v2705
      %v2716 = vpack.c.b16 %v2713, %v2712
      %v2717 = vpack.c.b16 %v2715, %v2714
      %v2721 = vsel %vm523, %v2706, 0
      %v2724 = vsel %vm523, %v2707, 0
      %2726 = vmatprep.subr.bf16.mxu0 0
      %2727 = vmatpush1.bf16.msra.mxu0 %v2716
      %2728 = vmatprep.subr.bf16.mxu0 0
      %2729 = vmatpush1.bf16.msra.mxu0 %v2717
      %2730 = vmatprep.subr.bf16.mxu0 0
      %2731 = vmatpush1.bf16.msra.mxu0 0
      %2732 = vmatprep.subr.bf16.mxu0 0
      %2733 = vmatpush1.bf16.msra.mxu0 0
      %2734 = vmatprep.subr.bf16.mxu0 0
      %2735 = vmatpush1.bf16.msra.mxu0 0
      %2736 = vmatprep.subr.bf16.mxu0 0
      %2737 = vmatpush1.bf16.msra.mxu0 0
      %2738 = vmatprep.subr.bf16.mxu0 0
      %2739 = vmatpush1.bf16.msra.mxu0 0
      %2740 = vmatprep.subr.bf16.mxu0 0
      %2741 = vmatpush1.bf16.msra.mxu0 0
      %2742 = vmatprep.subr.bf16.mxu0 0
      %2743 = vmatpush1.bf16.msra.mxu0 0
      %2744 = vmatprep.subr.bf16.mxu0 0
      %2745 = vmatpush1.bf16.msra.mxu0 0
      %2746 = vmatprep.subr.bf16.mxu0 0
      %2747 = vmatpush1.bf16.msra.mxu0 0
      %2748 = vmatprep.subr.bf16.mxu0 0
      %2749 = vmatpush1.bf16.msra.mxu0 0
      %2750 = vmatprep.subr.bf16.mxu0 0
      %2751 = vmatpush1.bf16.msra.mxu0 0
      %2752 = vmatprep.subr.bf16.mxu0 0
      %2753 = vmatpush1.bf16.msra.mxu0 0
      %2754 = vmatprep.subr.bf16.mxu0 0
      %2755 = vmatpush1.bf16.msra.mxu0 0
      %2756 = vmatprep.subr.bf16.mxu0 0
      %2757 = vmatpush1.bf16.msra.mxu0 0
      %2758 = vmatprep.mubr.bf16.mxu0 0
      %2759 = vmatmul.mubr.bf16.gmra.mrb[0].mxu0 %v2721
      %v2760 = vpop.f32.mrb[0].mxu0
      %v2761 = vadd.f32 0.0, %v2760
      %v2762 = vpop.f32.mrb[0].mxu0
      %v2763 = vpop.f32.mrb[0].mxu0
      %v2764 = vadd.f32 0.0, %v2763
      %v2765 = vpop.f32.mrb[0].mxu0
      %2766 = vmatprep.mubr.bf16.mxu0 0
      %2767 = vmatmul.mubr.bf16.gmra.mrb[0].mxu0 %v2724
      %v2768 = vpop.f32.mrb[0].mxu0
      %v2769 = vadd.f32 0.0, %v2768
      %v2770 = vpop.f32.mrb[0].mxu0
      %v2771 = vpop.f32.mrb[0].mxu0
      %v2772 = vpop.f32.mrb[0].mxu0
      %2773 = vdwg.mxu0
      %v2774 = vadd.f32 %v2698, %v2761
      %v2775 = vadd.f32 %v2699, %v2764
      %v2776 = vadd.f32 %v2700, %v2769
      %v2777 = vld [vmem:[#allocation3 + $0x4] sm:$0xc]
      %v2778 = vld [vmem:[#allocation3 + $0x8] sm:$0xf]
      %v2779 = vld [vmem:[#allocation3 + $0xc] sm:$0xf]
      %v2780 = vld [vmem:[#allocation3 + $0x10] sm:$0x3]
      %s2781 = scalar_lea.vmem %s8, 96
      %v2782 = vld [vmem:[%s2781] sm:$0xf]
      %v2783 = vld [vmem:[%s2781 + $0x4] sm:$0xf]
      %v2784 = vld [vmem:[%s2781 + $0x8] sm:$0xf]
      %v2785 = vld [vmem:[%s2781 + $0xc] sm:$0xf]
      %v2790 = vunpack.c.l.b16 %v2777
      %v2791 = vunpack.c.l.b16 %v2778
      %v2792 = vunpack.c.l.b16 %v2779
      %v2793 = vunpack.c.l.b16 %v2780
      %v2794 = vpack.c.b16 %v2791, %v2790
      %v2795 = vpack.c.b16 %v2793, %v2792
      %v2796 = vrot.slane %v2794, 2
      %v2797 = vrot.slane %v2795, 2
      %v2798 = vsel %vm1003, %v2796, %v2797
      %v2803 = vunpack.c.l.b16 %v2782
      %v2804 = vunpack.c.l.b16 %v2783
      %v2805 = vunpack.c.l.b16 %v2784
      %v2806 = vunpack.c.l.b16 %v2785
      %v2807 = vpack.c.b16 %v2804, %v2803
      %v2808 = vpack.c.b16 %v2806, %v2805
      %v2812 = vsel %vm523, %v2798, 0
      %v2815 = vsel %vm523, %v2797, 0
      %2817 = vmatprep.subr.bf16.mxu0 0
      %2818 = vmatpush1.bf16.msra.mxu0 %v2807
      %2819 = vmatprep.subr.bf16.mxu0 0
      %2820 = vmatpush1.bf16.msra.mxu0 %v2808
      %2821 = vmatprep.subr.bf16.mxu0 0
      %2822 = vmatpush1.bf16.msra.mxu0 0
      %2823 = vmatprep.subr.bf16.mxu0 0
      %2824 = vmatpush1.bf16.msra.mxu0 0
      %2825 = vmatprep.subr.bf16.mxu0 0
      %2826 = vmatpush1.bf16.msra.mxu0 0
      %2827 = vmatprep.subr.bf16.mxu0 0
      %2828 = vmatpush1.bf16.msra.mxu0 0
      %2829 = vmatprep.subr.bf16.mxu0 0
      %2830 = vmatpush1.bf16.msra.mxu0 0
      %2831 = vmatprep.subr.bf16.mxu0 0
      %2832 = vmatpush1.bf16.msra.mxu0 0
      %2833 = vmatprep.subr.bf16.mxu0 0
      %2834 = vmatpush1.bf16.msra.mxu0 0
      %2835 = vmatprep.subr.bf16.mxu0 0
      %2836 = vmatpush1.bf16.msra.mxu0 0
      %2837 = vmatprep.subr.bf16.mxu0 0
      %2838 = vmatpush1.bf16.msra.mxu0 0
      %2839 = vmatprep.subr.bf16.mxu0 0
      %2840 = vmatpush1.bf16.msra.mxu0 0
      %2841 = vmatprep.subr.bf16.mxu0 0
      %2842 = vmatpush1.bf16.msra.mxu0 0
      %2843 = vmatprep.subr.bf16.mxu0 0
      %2844 = vmatpush1.bf16.msra.mxu0 0
      %2845 = vmatprep.subr.bf16.mxu0 0
      %2846 = vmatpush1.bf16.msra.mxu0 0
      %2847 = vmatprep.subr.bf16.mxu0 0
      %2848 = vmatpush1.bf16.msra.mxu0 0
      %2849 = vmatprep.mubr.bf16.mxu0 0
      %2850 = vmatmul.mubr.bf16.gmra.mrb[0].mxu0 %v2812
      %v2851 = vpop.f32.mrb[0].mxu0
      %v2852 = vadd.f32 0.0, %v2851
      %v2853 = vpop.f32.mrb[0].mxu0
      %v2854 = vpop.f32.mrb[0].mxu0
      %v2855 = vadd.f32 0.0, %v2854
      %v2856 = vpop.f32.mrb[0].mxu0
      %2857 = vmatprep.mubr.bf16.mxu0 0
      %2858 = vmatmul.mubr.bf16.gmra.mrb[0].mxu0 %v2815
      %v2859 = vpop.f32.mrb[0].mxu0
      %v2860 = vadd.f32 0.0, %v2859
      %v2861 = vpop.f32.mrb[0].mxu0
      %v2862 = vpop.f32.mrb[0].mxu0
      %v2863 = vpop.f32.mrb[0].mxu0
      %2864 = vdwg.mxu0
      %v2865 = vadd.f32 %v2774, %v2852
      %v2866 = vadd.f32 %v2775, %v2855
      %v2867 = vadd.f32 %v2776, %v2860
      %v2868 = vld [vmem:[#allocation3 + $0x10] sm:$0x7]
      %s2869 = scalar_lea.vmem %s8, 112
      %v2870 = vld [vmem:[%s2869] sm:$0xf]
      %v2871 = vld [vmem:[%s2869 + $0x4] sm:$0xf]
      %v2872 = vld [vmem:[%s2869 + $0x8] sm:$0xf]
      %v2873 = vld [vmem:[%s2869 + $0xc] sm:$0xf]
      %v2875 = vunpack.c.l.b16 %v2868
      %v2876 = vpack.c.b16 %v2875, %v2792
      %v2878 = vshrl.u32 %v2794, 16
      %v2880 = vrot.slane %v2878, 2
      %v2881 = vshll.u32 %v2794, 16
      %v2883 = vrot.slane %v2881, 3
      %v2884 = vor.u32 %v2880, %v2883
      %v2886 = vshrl.u32 %v2876, 16
      %v2888 = vrot.slane %v2886, 2
      %v2889 = vshll.u32 %v2876, 16
      %v2891 = vrot.slane %v2889, 3
      %v2892 = vor.u32 %v2888, %v2891
      %v2893 = vsel %vm1085, %v2884, %v2892
      %v2898 = vunpack.c.l.b16 %v2870
      %v2899 = vunpack.c.l.b16 %v2871
      %v2900 = vunpack.c.l.b16 %v2872
      %v2901 = vunpack.c.l.b16 %v2873
      %v2902 = vpack.c.b16 %v2899, %v2898
      %v2903 = vpack.c.b16 %v2901, %v2900
      %v2907 = vsel %vm523, %v2893, 0
      %v2910 = vsel %vm523, %v2892, 0
      %2912 = vmatprep.subr.bf16.mxu0 0
      %2913 = vmatpush1.bf16.msra.mxu0 %v2902
      %2914 = vmatprep.subr.bf16.mxu0 0
      %2915 = vmatpush1.bf16.msra.mxu0 %v2903
      %2916 = vmatprep.subr.bf16.mxu0 0
      %2917 = vmatpush1.bf16.msra.mxu0 0
      %2918 = vmatprep.subr.bf16.mxu0 0
      %2919 = vmatpush1.bf16.msra.mxu0 0
      %2920 = vmatprep.subr.bf16.mxu0 0
      %2921 = vmatpush1.bf16.msra.mxu0 0
      %2922 = vmatprep.subr.bf16.mxu0 0
      %2923 = vmatpush1.bf16.msra.mxu0 0
      %2924 = vmatprep.subr.bf16.mxu0 0
      %2925 = vmatpush1.bf16.msra.mxu0 0
      %2926 = vmatprep.subr.bf16.mxu0 0
      %2927 = vmatpush1.bf16.msra.mxu0 0
      %2928 = vmatprep.subr.bf16.mxu0 0
      %2929 = vmatpush1.bf16.msra.mxu0 0
      %2930 = vmatprep.subr.bf16.mxu0 0
      %2931 = vmatpush1.bf16.msra.mxu0 0
      %2932 = vmatprep.subr.bf16.mxu0 0
      %2933 = vmatpush1.bf16.msra.mxu0 0
      %2934 = vmatprep.subr.bf16.mxu0 0
      %2935 = vmatpush1.bf16.msra.mxu0 0
      %2936 = vmatprep.subr.bf16.mxu0 0
      %2937 = vmatpush1.bf16.msra.mxu0 0
      %2938 = vmatprep.subr.bf16.mxu0 0
      %2939 = vmatpush1.bf16.msra.mxu0 0
      %2940 = vmatprep.subr.bf16.mxu0 0
      %2941 = vmatpush1.bf16.msra.mxu0 0
      %2942 = vmatprep.subr.bf16.mxu0 0
      %2943 = vmatpush1.bf16.msra.mxu0 0
      %2944 = vmatprep.mubr.bf16.mxu0 0
      %2945 = vmatmul.mubr.bf16.gmra.mrb[0].mxu0 %v2907
      %v2946 = vpop.f32.mrb[0].mxu0
      %v2947 = vadd.f32 0.0, %v2946
      %v2948 = vpop.f32.mrb[0].mxu0
      %v2949 = vpop.f32.mrb[0].mxu0
      %v2950 = vadd.f32 0.0, %v2949
      %v2951 = vpop.f32.mrb[0].mxu0
      %2952 = vmatprep.mubr.bf16.mxu0 0
      %2953 = vmatmul.mubr.bf16.gmra.mrb[0].mxu0 %v2910
      %v2954 = vpop.f32.mrb[0].mxu0
      %v2955 = vadd.f32 0.0, %v2954
      %v2956 = vpop.f32.mrb[0].mxu0
      %v2957 = vpop.f32.mrb[0].mxu0
      %v2958 = vpop.f32.mrb[0].mxu0
      %2959 = vdwg.mxu0
      %v2960 = vadd.f32 %v2865, %v2947
      %v2961 = vadd.f32 %v2866, %v2950
      %v2962 = vadd.f32 %v2867, %v2955
      %v2963 = vld [vmem:[#allocation3 + $0x4] sm:$0x8]
      %s2964 = scalar_lea.vmem %s8, 128
      %v2965 = vld [vmem:[%s2964] sm:$0xf]
      %v2966 = vld [vmem:[%s2964 + $0x4] sm:$0xf]
      %v2967 = vld [vmem:[%s2964 + $0x8] sm:$0xf]
      %v2968 = vld [vmem:[%s2964 + $0xc] sm:$0xf]
      %v2970 = vunpack.c.l.b16 %v2963
      %v2971 = vpack.c.b16 %v2791, %v2970
      %v2972 = vrot.slane %v2971, 3
      %v2973 = vrot.slane %v2876, 3
      %v2974 = vsel %vm739, %v2972, %v2973
      %v2979 = vunpack.c.l.b16 %v2965
      %v2980 = vunpack.c.l.b16 %v2966
      %v2981 = vunpack.c.l.b16 %v2967
      %v2982 = vunpack.c.l.b16 %v2968
      %v2983 = vpack.c.b16 %v2980, %v2979
      %v2984 = vpack.c.b16 %v2982, %v2981
      %v2988 = vsel %vm523, %v2974, 0
      %v2991 = vsel %vm523, %v2973, 0
      %2993 = vmatprep.subr.bf16.mxu0 0
      %2994 = vmatpush1.bf16.msra.mxu0 %v2983
      %2995 = vmatprep.subr.bf16.mxu0 0
      %2996 = vmatpush1.bf16.msra.mxu0 %v2984
      %2997 = vmatprep.subr.bf16.mxu0 0
      %2998 = vmatpush1.bf16.msra.mxu0 0
      %2999 = vmatprep.subr.bf16.mxu0 0
      %3000 = vmatpush1.bf16.msra.mxu0 0
      %3001 = vmatprep.subr.bf16.mxu0 0
      %3002 = vmatpush1.bf16.msra.mxu0 0
      %3003 = vmatprep.subr.bf16.mxu0 0
      %3004 = vmatpush1.bf16.msra.mxu0 0
      %3005 = vmatprep.subr.bf16.mxu0 0
      %3006 = vmatpush1.bf16.msra.mxu0 0
      %3007 = vmatprep.subr.bf16.mxu0 0
      %3008 = vmatpush1.bf16.msra.mxu0 0
      %3009 = vmatprep.subr.bf16.mxu0 0
      %3010 = vmatpush1.bf16.msra.mxu0 0
      %3011 = vmatprep.subr.bf16.mxu0 0
      %3012 = vmatpush1.bf16.msra.mxu0 0
      %3013 = vmatprep.subr.bf16.mxu0 0
      %3014 = vmatpush1.bf16.msra.mxu0 0
      %3015 = vmatprep.subr.bf16.mxu0 0
      %3016 = vmatpush1.bf16.msra.mxu0 0
      %3017 = vmatprep.subr.bf16.mxu0 0
      %3018 = vmatpush1.bf16.msra.mxu0 0
      %3019 = vmatprep.subr.bf16.mxu0 0
      %3020 = vmatpush1.bf16.msra.mxu0 0
      %3021 = vmatprep.subr.bf16.mxu0 0
      %3022 = vmatpush1.bf16.msra.mxu0 0
      %3023 = vmatprep.subr.bf16.mxu0 0
      %3024 = vmatpush1.bf16.msra.mxu0 0
      %3025 = vmatprep.mubr.bf16.mxu0 0
      %3026 = vmatmul.mubr.bf16.gmra.mrb[0].mxu0 %v2988
      %v3027 = vpop.f32.mrb[0].mxu0
      %v3028 = vadd.f32 0.0, %v3027
      %v3029 = vpop.f32.mrb[0].mxu0
      %v3030 = vpop.f32.mrb[0].mxu0
      %v3031 = vadd.f32 0.0, %v3030
      %v3032 = vpop.f32.mrb[0].mxu0
      %3033 = vmatprep.mubr.bf16.mxu0 0
      %3034 = vmatmul.mubr.bf16.gmra.mrb[0].mxu0 %v2991
      %v3035 = vpop.f32.mrb[0].mxu0
      %v3036 = vadd.f32 0.0, %v3035
      %v3037 = vpop.f32.mrb[0].mxu0
      %v3038 = vpop.f32.mrb[0].mxu0
      %v3039 = vpop.f32.mrb[0].mxu0
      %3040 = vdwg.mxu0
      %v3041 = vadd.f32 %v2960, %v3028
      %v3042 = vadd.f32 %v2961, %v3031
      %v3043 = vadd.f32 %v2962, %v3036
      %v3044 = vld [vmem:[%s9] sm:$0x1]
      %v3046 = vlaneseq
      %v3047 = vshrl.u32 %v3046, 7
      %v3048 = vsub.s32 0, %v3047
      %v3049 = vrot.slane %v3044, %v3048
      %v3051 = vadd.f32 %v3041, %v3049
      %v3052 = vadd.f32 %v3042, %v3049
      %v3053 = vadd.f32 %v3043, %v3049
      %v3054 = vmax.f32 %v3051, 0.0
      %v3055 = vmax.f32 %v3052, 0.0
      %v3056 = vmax.f32 %v3053, 0.0
      %v3057 = vpack.c.bf16 %v3055, %v3054
      %v3058 = vpack.c.bf16 %v3056, %v3056
      %v3059 = vld [vmem:[%s10] sm:$0xf]
      %v3060 = vld [vmem:[%s11] sm:$0x1]
      %v3062 = vlaneseq
      %v3063 = vshrl.u32 %v3062, 7
      %v3064 = vsub.s32 0, %v3063
      %v3065 = vrot.slane %v3060, %v3064
      %v3068 = vsel %vm2146, %v3057, 0
      %v3071 = vsel %vm2146, %v3058, 0
      %v3074 = vsel %vm2153, %v3059, 0
      %3076 = vmatprep.subr.bf16.mxu0 0
      %3077 = vmatpush1.bf16.msra.mxu0 %v3074
      %3078 = vmatprep.subr.bf16.mxu0 0
      %3079 = vmatpush1.bf16.msra.mxu0 0
      %3080 = vmatprep.subr.bf16.mxu0 0
      %3081 = vmatpush1.bf16.msra.mxu0 0
      %3082 = vmatprep.subr.bf16.mxu0 0
      %3083 = vmatpush1.bf16.msra.mxu0 0
      %3084 = vmatprep.subr.bf16.mxu0 0
      %3085 = vmatpush1.bf16.msra.mxu0 0
      %3086 = vmatprep.subr.bf16.mxu0 0
      %3087 = vmatpush1.bf16.msra.mxu0 0
      %3088 = vmatprep.subr.bf16.mxu0 0
      %3089 = vmatpush1.bf16.msra.mxu0 0
      %3090 = vmatprep.subr.bf16.mxu0 0
      %3091 = vmatpush1.bf16.msra.mxu0 0
      %3092 = vmatprep.subr.bf16.mxu0 0
      %3093 = vmatpush1.bf16.msra.mxu0 0
      %3094 = vmatprep.subr.bf16.mxu0 0
      %3095 = vmatpush1.bf16.msra.mxu0 0
      %3096 = vmatprep.subr.bf16.mxu0 0
      %3097 = vmatpush1.bf16.msra.mxu0 0
      %3098 = vmatprep.subr.bf16.mxu0 0
      %3099 = vmatpush1.bf16.msra.mxu0 0
      %3100 = vmatprep.subr.bf16.mxu0 0
      %3101 = vmatpush1.bf16.msra.mxu0 0
      %3102 = vmatprep.subr.bf16.mxu0 0
      %3103 = vmatpush1.bf16.msra.mxu0 0
      %3104 = vmatprep.subr.bf16.mxu0 0
      %3105 = vmatpush1.bf16.msra.mxu0 0
      %3106 = vmatprep.subr.bf16.mxu0 0
      %3107 = vmatpush1.bf16.msra.mxu0 0
      %3108 = vmatprep.mubr.bf16.mxu0 0
      %3109 = vmatmul.mubr.bf16.gmra.mrb[0].mxu0 %v3068
      %v3110 = vpop.f32.mrb[0].mxu0
      %v3111 = vadd.f32 %v3065, %v3110
      %v3112 = vpop.f32.mrb[0].mxu0
      %v3113 = vpop.f32.mrb[0].mxu0
      %v3114 = vadd.f32 %v3065, %v3113
      %v3115 = vpop.f32.mrb[0].mxu0
      %3116 = vmatprep.mubr.bf16.mxu0 0
      %3117 = vmatmul.mubr.bf16.gmra.mrb[0].mxu0 %v3071
      %v3118 = vpop.f32.mrb[0].mxu0
      %v3119 = vadd.f32 %v3065, %v3118
      %v3120 = vpop.f32.mrb[0].mxu0
      %v3121 = vpop.f32.mrb[0].mxu0
      %v3122 = vpop.f32.mrb[0].mxu0
      %3123 = vdwg.mxu0
      %v3124 = vadd.f32 %v3111, %v2208
      %v3125 = vadd.f32 %v3114, %v2209
      %v3126 = vadd.f32 %v3119, %v2210
      %v3127 = vmax.f32 %v3124, 0.0
      %v3128 = vmax.f32 %v3125, 0.0
      %v3129 = vmax.f32 %v3126, 0.0
      %v3130 = vpack.c.bf16 %v3128, %v3127
      %v3131 = vpack.c.bf16 %v3129, %v3129
      %v3132 = vld [vmem:[%s12] sm:$0xf]
      %v3133 = vld [vmem:[%s12 + $0x4] sm:$0xf]
      %v3134 = vld [vmem:[%s12 + $0x8] sm:$0xf]
      %v3135 = vld [vmem:[%s12 + $0xc] sm:$0xf]
      %v3136 = vld [vmem:[%s13] sm:$0x1]
      %v3138 = vlaneseq
      %v3139 = vshrl.u32 %v3138, 7
      %v3140 = vsub.s32 0, %v3139
      %v3141 = vrot.slane %v3136, %v3140
      %v3147 = vunpack.c.l.b16 %v3132
      %v3148 = vunpack.c.l.b16 %v3133
      %v3149 = vunpack.c.l.b16 %v3134
      %v3150 = vunpack.c.l.b16 %v3135
      %v3151 = vpack.c.b16 %v3148, %v3147
      %v3152 = vpack.c.b16 %v3150, %v3149
      %v3156 = vsel %vm523, %v3130, 0
      %v3159 = vsel %vm523, %v3131, 0
      %3161 = vmatprep.subr.bf16.mxu0 0
      %3162 = vmatpush1.bf16.msra.mxu0 %v3151
      %3163 = vmatprep.subr.bf16.mxu0 0
      %3164 = vmatpush1.bf16.msra.mxu0 %v3152
      %3165 = vmatprep.subr.bf16.mxu0 0
      %3166 = vmatpush1.bf16.msra.mxu0 0
      %3167 = vmatprep.subr.bf16.mxu0 0
      %3168 = vmatpush1.bf16.msra.mxu0 0
      %3169 = vmatprep.subr.bf16.mxu0 0
      %3170 = vmatpush1.bf16.msra.mxu0 0
      %3171 = vmatprep.subr.bf16.mxu0 0
      %3172 = vmatpush1.bf16.msra.mxu0 0
      %3173 = vmatprep.subr.bf16.mxu0 0
      %3174 = vmatpush1.bf16.msra.mxu0 0
      %3175 = vmatprep.subr.bf16.mxu0 0
      %3176 = vmatpush1.bf16.msra.mxu0 0
      %3177 = vmatprep.subr.bf16.mxu0 0
      %3178 = vmatpush1.bf16.msra.mxu0 0
      %3179 = vmatprep.subr.bf16.mxu0 0
      %3180 = vmatpush1.bf16.msra.mxu0 0
      %3181 = vmatprep.subr.bf16.mxu0 0
      %3182 = vmatpush1.bf16.msra.mxu0 0
      %3183 = vmatprep.subr.bf16.mxu0 0
      %3184 = vmatpush1.bf16.msra.mxu0 0
      %3185 = vmatprep.subr.bf16.mxu0 0
      %3186 = vmatpush1.bf16.msra.mxu0 0
      %3187 = vmatprep.subr.bf16.mxu0 0
      %3188 = vmatpush1.bf16.msra.mxu0 0
      %3189 = vmatprep.subr.bf16.mxu0 0
      %3190 = vmatpush1.bf16.msra.mxu0 0
      %3191 = vmatprep.subr.bf16.mxu0 0
      %3192 = vmatpush1.bf16.msra.mxu0 0
      %3193 = vmatprep.mubr.bf16.mxu0 0
      %3194 = vmatmul.mubr.bf16.gmra.mrb[0].mxu0 %v3156
      %v3195 = vpop.f32.mrb[0].mxu0
      %v3196 = vadd.f32 %v3141, %v3195
      %v3197 = vpop.f32.mrb[0].mxu0
      %v3198 = vpop.f32.mrb[0].mxu0
      %v3199 = vadd.f32 %v3141, %v3198
      %v3200 = vpop.f32.mrb[0].mxu0
      %3201 = vmatprep.mubr.bf16.mxu0 0
      %3202 = vmatmul.mubr.bf16.gmra.mrb[0].mxu0 %v3159
      %v3203 = vpop.f32.mrb[0].mxu0
      %v3204 = vadd.f32 %v3141, %v3203
      %v3205 = vpop.f32.mrb[0].mxu0
      %v3206 = vpop.f32.mrb[0].mxu0
      %v3207 = vpop.f32.mrb[0].mxu0
      %3208 = vdwg.mxu0
      %vm3209 = vcmask 31744
      %3210 = vst.msk [vmem:[%s467] sm:$0xff] %vm3209, %v3196
      %3211 = vst.msk [vmem:[%s467 + $0x8] sm:$0xff] %vm3209, %v3199
      %3212 = vst.msk [vmem:[%s467 + $0x10] sm:$0xff] %vm3209, %v3204
      %p3213 = scmp.lt.s32.totalorder %s25, 1
      %s3214 = scalar_select %p3213, %s25, 1
      %s3215 = smul.addr %s3214, 3
      %s3216 = smul.addr %s3215, 8
      %s3217 = scalar_lea.vmem %s14, %s3216
      // Predicated region
      $region77: #{encoder_forward.5} parent=75 // pred_check
        %p3218 = pneg %p342
      $region78: #{encoder_forward.5} parent=75 // pred_check_branch
        %3220 = sbr.rel (%p3218) target = $region80
      $region79: #{encoder_forward.5} parent=75 // pred_region
        _
      $region80: #{encoder_forward.5} parent=75 // pred_fallthru
        _
    $region76: #{encoder_forward.5} parent=5 // pred_fallthru
      _
    %p3221 = scmp.le.s32.totalorder 2, %s20
    // Predicated region
    $region81: #{encoder_forward.5} parent=5 // pred_check
      %p3222 = pneg %p3221
    $region82: #{encoder_forward.5} parent=5 // pred_check_branch
      %3224 = sbr.rel (%p3222) target = $region84
    $region83: #{encoder_forward.5} parent=5 // pred_region
      %s3225 = ssub.s32 %s20, 2
      // Predicated region
      $region85: #{encoder_forward.5} parent=83 // pred_check
        %p3226 = pneg %p348
      $region86: #{encoder_forward.5} parent=83 // pred_check_branch
        %3228 = sbr.rel (%p3226) target = $region88
      $region87: #{encoder_forward.5} parent=83 // pred_region
        %p3229 = scmp.lt.s32.totalorder %s26, 1
        %s3230 = scalar_select %p3229, %s26, 1
        %s3231 = smul.addr %s3230, 3
        %s3232 = smul.addr %s3231, 8
        %s3233 = scalar_lea.vmem %s14, %s3232
      $region88: #{encoder_forward.5} parent=83 // pred_fallthru
        _
    $region84: #{encoder_forward.5} parent=5 // pred_fallthru
      _
  $region6: #{encoder_forward.5} parent=0 // loop_footer
    %s24 = sadd.s32 1, %s20
  $region7: #{encoder_forward.5} parent=0 // loop_footer_branch
    %19 = sbr.rel target = $region3
  $region8: #{encoder_forward.5} parent=0 // loop_exit
    _

</llo_original>
